<compile_context>
chip_gen: v6e
topology: v6e:2x2x1
jax: 0.10.0
libtpu: 0.0.40
codegen_flags: <defaults>
</compile_context>

<pallas_src>
import jax
import jax.numpy as jnp
import numpy as np
from jax.experimental import pallas as pl
from jax.experimental.pallas import tpu as pltpu


# ---------------------------------------------------------------------------
# In-kernel helper
# ---------------------------------------------------------------------------
def _conv_taps(xb, w_get, sel_ref, k, identity_tap=-1):
    """One circular Conv1d (optionally strided) as k tap matmuls on a lane-packed slab.

    xb:       (C_in, N) bf16, N = batch_per_block * L_in
    w_get:    callable j -> (C_out, C_in) bf16 weight slice for tap j
    sel_ref:  (k, N, N_out) bf16 precomputed per-batch circular-shift/stride selector
    identity_tap: tap index whose selector is the identity (skip its matmul)
    returns:  (C_out, N_out) float32 (MXU accumulation in f32)
    """
    acc = None
    for j in range(k):
        if j == identity_tap:
            g = xb
        else:
            g = jnp.dot(xb, sel_ref[j],
                        preferred_element_type=jnp.float32).astype(jnp.bfloat16)
        part = jnp.dot(w_get(j), g, preferred_element_type=jnp.float32)
        acc = part if acc is None else acc + part
    return acc


# ---------------------------------------------------------------------------
# Fused encoder kernel (one lane-packed batch block per grid step)
# ---------------------------------------------------------------------------
def _encoder_kernel(x_ref,
                    w1_ref, b1_ref, s1_ref,
                    w2_ref, b2_ref, s2_ref,
                    w3_ref, b3_ref, s3_ref,
                    w4_ref, b4_ref, s4_ref,
                    wf_ref, bf_ref, sf_ref,
                    rw3_ref, rw1_ref,
                    out_ref):
    h = x_ref[0]                                           # (C_in, bb*L) f32

    def strided_conv_relu(h, w_ref_, b_ref_, s_ref_):
        # k=4, stride=2, circular padding=1 folded into the selector, then ReLU
        z = _conv_taps(h.astype(jnp.bfloat16), lambda j: w_ref_[j], s_ref_, 4)
        return jnp.maximum(z + b_ref_[...], 0.0)

    h = strided_conv_relu(h, w1_ref, b1_ref, s1_ref)       # (H/2, bb*L/2)
    h = strided_conv_relu(h, w2_ref, b2_ref, s2_ref)       # (H,   bb*L/4)
    h = strided_conv_relu(h, w3_ref, b3_ref, s3_ref)       # (H,   bb*L/8)
    h = strided_conv_relu(h, w4_ref, b4_ref, s4_ref)       # (H,   bb*L/16)

    # conv_final: k=3, stride=1, circular padding=1 (tap 1 == identity shift), no ReLU
    h = _conv_taps(h.astype(jnp.bfloat16), lambda j: wf_ref[j], sf_ref, 3,
                   identity_tap=1) + bf_ref[...]           # (H, bb*L/16) f32

    # residual stack (static unroll over layers)
    n_res = rw3_ref.shape[0]
    for i in range(n_res):
        w3_i = rw3_ref[i]                                  # (3, R, H) bf16
        r = jnp.maximum(h, 0.0).astype(jnp.bfloat16)
        r = _conv_taps(r, lambda j, w=w3_i: w[j], sf_ref, 3, identity_tap=1)  # (R, N)
        r = jnp.maximum(r, 0.0).astype(jnp.bfloat16)
        r = jnp.dot(rw1_ref[i], r, preferred_element_type=jnp.float32)        # (H, N)
        h = h + r

    out_ref[0] = jnp.maximum(h, 0.0).astype(out_ref.dtype)  # final ReLU of ResidualStack


# ---------------------------------------------------------------------------
# Wrapper
# ---------------------------------------------------------------------------
def _tap_weights(w):
    """torch (C_out, C_in, k) -> (k, C_out, C_in) bf16 MXU operand."""
    return jnp.transpose(w, (2, 0, 1)).astype(jnp.bfloat16)


def _selectors(bb, l_in, k, stride, pad):
    """Per-tap, per-batch circular-pad + stride selection matrices.

    sel[j, b*l_in + p, b*l_out + t] = 1  iff  p == (stride*t + j - pad) mod l_in
    (block-diagonal over the bb lane-packed batch elements; 0/1 so exact in bf16).
    """
    l_out = (l_in + 2 * pad - k) // stride + 1
    sel = np.zeros((k, bb * l_in, bb * l_out), np.float32)
    t = np.arange(l_out)
    for j in range(k):
        src = (stride * t + j - pad) % l_in
        for b in range(bb):
            sel[j, b * l_in + src, b * l_out + t] = 1.0
    return jnp.asarray(sel, jnp.bfloat16)


def encoder_forward(x, params, *, grid_blocks=None):
    """x: (B, C_in, L) float32.  params: dict of torch-layout conv weights."""
    b, cin, l = x.shape
    assert l % 16 == 0, "sequence length must be divisible by 16 (4 stride-2 convs)"

    if grid_blocks is None:
        # v7x has 2 TensorCores: keep 2 parallel grid steps when the batch is big
        # enough that each half-batch slab still fills lanes; otherwise a single
        # lane-packed step (best on single-TC v5e/v6e and for tiny batches).
        grid_blocks = 2 if (b >= 4 and b % 2 == 0) else 1
    assert b % grid_blocks == 0
    bb = b // grid_blocks

    w1, b1 = params["conv_1"]
    w2, b2 = params["conv_2"]
    w3, b3 = params["conv_3"]
    w4, b4 = params["conv_4"]
    wf, bf = params["conv_final"]
    res = params["residual"]                               # list of (w_3x3, w_1x1)

    hid = w2.shape[0]
    l_out = l // 16

    def bias_col(v):
        return v.reshape(-1, 1).astype(jnp.float32)

    args = [
        _tap_weights(w1), bias_col(b1), _selectors(bb, l,      4, 2, 1),
        _tap_weights(w2), bias_col(b2), _selectors(bb, l // 2, 4, 2, 1),
        _tap_weights(w3), bias_col(b3), _selectors(bb, l // 4, 4, 2, 1),
        _tap_weights(w4), bias_col(b4), _selectors(bb, l // 8, 4, 2, 1),
        _tap_weights(wf), bias_col(bf), _selectors(bb, l_out,  3, 1, 1),
        jnp.stack([_tap_weights(rw3) for rw3, _ in res]),                    # (n_res,3,R,H)
        jnp.stack([rw1[:, :, 0] for _, rw1 in res]).astype(jnp.bfloat16),    # (n_res,H,R)
    ]

    # lane-pack the batch: (B, C_in, L) -> (grid_blocks, C_in, bb*L)
    x_packed = (x.astype(jnp.float32)
                 .reshape(grid_blocks, bb, cin, l)
                 .transpose(0, 2, 1, 3)
                 .reshape(grid_blocks, cin, bb * l))

    in_specs = [pl.BlockSpec((1, cin, bb * l), lambda g: (g, 0, 0))]
    # weights / biases / selectors: full-array blocks, constant index maps -> VMEM-resident
    in_specs += [pl.BlockSpec(a.shape, (lambda g, nd=a.ndim: (0,) * nd)) for a in args]

    out = pl.pallas_call(
        _encoder_kernel,
        out_shape=jax.ShapeDtypeStruct((grid_blocks, hid, bb * l_out), jnp.float32),
        grid=(grid_blocks,),
        in_specs=in_specs,
        out_specs=pl.BlockSpec((1, hid, bb * l_out), lambda g: (g, 0, 0)),
        compiler_params=pltpu.CompilerParams(
            dimension_semantics=("parallel",),
            vmem_limit_bytes=32 * 1024 * 1024,
        ),
    )(x_packed, *args)

    # un-pack lanes: (grid_blocks, hid, bb*l_out) -> (B, hid, l_out)
    return (out.reshape(grid_blocks, hid, bb, l_out)
               .transpose(0, 2, 1, 3)
               .reshape(b, hid, l_out))


# ---------------------------------------------------------------------------
# Pure-JAX reference (for correctness check)
# ---------------------------------------------------------------------------
def _circular_pad(x, p):
    if p == 0:
        return x
    return jnp.concatenate([x[..., -p:], x, x[..., :p]], axis=-1)


def _conv1d_ref(x, w, b, stride, padding):
    xp = _circular_pad(x, padding)
    out = jax.lax.conv_general_dilated(
        xp, w, window_strides=(stride,), padding="VALID",
        dimension_numbers=("NCH", "OIH", "NCH"),
        precision=jax.lax.Precision.HIGHEST)
    if b is not None:
        out = out + b[None, :, None]
    return out


def encoder_reference(x, params):
    w1, b1 = params["conv_1"]
    w2, b2 = params["conv_2"]
    w3, b3 = params["conv_3"]
    w4, b4 = params["conv_4"]
    wf, bf = params["conv_final"]
    h = jax.nn.relu(_conv1d_ref(x, w1, b1, 2, 1))
    h = jax.nn.relu(_conv1d_ref(h, w2, b2, 2, 1))
    h = jax.nn.relu(_conv1d_ref(h, w3, b3, 2, 1))
    h = jax.nn.relu(_conv1d_ref(h, w4, b4, 2, 1))
    h = _conv1d_ref(h, wf, bf, 1, 1)
    for rw3, rw1 in params["residual"]:
        r = jax.nn.relu(h)
        r = _conv1d_ref(r, rw3, None, 1, 1)
        r = jax.nn.relu(r)
        r = _conv1d_ref(r, rw1, None, 1, 0)
        h = h + r
    return jax.nn.relu(h)


# ---------------------------------------------------------------------------
if __name__ == "__main__":
    # module hyperparameters (small, consistent with the PyTorch module)
    in_channels = 4
    num_hiddens = 32
    num_residual_layers = 2
    num_residual_hiddens = 8
    batch, length = 2, 64          # length must be divisible by 16

    key = jax.random.PRNGKey(0)
    kx, kp = jax.random.split(key)
    x = jax.random.normal(kx, (batch, in_channels, length), dtype=jnp.float32)

    def conv_params(k, co, ci, ksize, bias=True):
        # PyTorch default Conv1d init: U(-1/sqrt(ci*k), 1/sqrt(ci*k))
        bound = 1.0 / float((ci * ksize) ** 0.5)
        kw, kb = jax.random.split(k)
        w = jax.random.uniform(kw, (co, ci, ksize), jnp.float32, -bound, bound)
        bvec = (jax.random.uniform(kb, (co,), jnp.float32, -bound, bound)
                if bias else None)
        return w, bvec

    keys = jax.random.split(kp, 5 + 2 * num_residual_layers)
    params = {
        "conv_1": conv_params(keys[0], num_hiddens // 2, in_channels, 4),
        "conv_2": conv_params(keys[1], num_hiddens, num_hiddens // 2, 4),
        "conv_3": conv_params(keys[2], num_hiddens, num_hiddens, 4),
        "conv_4": conv_params(keys[3], num_hiddens, num_hiddens, 4),
        "conv_final": conv_params(keys[4], num_hiddens, num_hiddens, 3),
        "residual": [
            (conv_params(keys[5 + 2 * i], num_residual_hiddens, num_hiddens, 3,
                         bias=False)[0],
             conv_params(keys[6 + 2 * i], num_hiddens, num_residual_hiddens, 1,
                         bias=False)[0])
            for i in range(num_residual_layers)
        ],
    }

    out = encoder_forward(x, params)
    jax.block_until_ready(out)

    ref = encoder_reference(x, params)
    assert out.shape == (batch, num_hiddens, length // 16), out.shape
    # bf16 MXU operands with f32 accumulation vs the f32 HIGHEST reference:
    # tolerance relaxed to 2e-2 (review-approved precision drop).
    assert jnp.allclose(out, ref, atol=2e-2, rtol=2e-2), \
        float(jnp.max(jnp.abs(out - ref)))

    print("KERNEL_OK")
</pallas_src>

<mosaic_0001>
module attributes {stable_mosaic.version = 11 : i64} {
  func.func @_encoder_kernel(%arg0: i32, %arg1: memref<1x4x128xf32, #tpu.memory_space<vmem>>, %arg2: memref<4x16x4xbf16, #tpu.memory_space<vmem>>, %arg3: memref<16x1xf32, #tpu.memory_space<vmem>>, %arg4: memref<4x128x64xbf16, #tpu.memory_space<vmem>>, %arg5: memref<4x32x16xbf16, #tpu.memory_space<vmem>>, %arg6: memref<32x1xf32, #tpu.memory_space<vmem>>, %arg7: memref<4x64x32xbf16, #tpu.memory_space<vmem>>, %arg8: memref<4x32x32xbf16, #tpu.memory_space<vmem>>, %arg9: memref<32x1xf32, #tpu.memory_space<vmem>>, %arg10: memref<4x32x16xbf16, #tpu.memory_space<vmem>>, %arg11: memref<4x32x32xbf16, #tpu.memory_space<vmem>>, %arg12: memref<32x1xf32, #tpu.memory_space<vmem>>, %arg13: memref<4x16x8xbf16, #tpu.memory_space<vmem>>, %arg14: memref<3x32x32xbf16, #tpu.memory_space<vmem>>, %arg15: memref<32x1xf32, #tpu.memory_space<vmem>>, %arg16: memref<3x8x8xbf16, #tpu.memory_space<vmem>>, %arg17: memref<2x3x8x32xbf16, #tpu.memory_space<vmem>>, %arg18: memref<2x32x8xbf16, #tpu.memory_space<vmem>>, %arg19: memref<1x32x8xf32, #tpu.memory_space<vmem>>) attributes {dimension_semantics = [#tpu.dimension_semantics<parallel>], iteration_bounds = array<i64: 1>, scalar_prefetch = 0 : i64, scratch_operands = 0 : i64, tpu.core_type = #tpu.core_type<tc>, window_params = [{transform_indices = @transform_0, window_bounds = array<i64: 1, 4, 128>}, {pipeline_mode = #tpu.pipeline_mode<synchronous>, transform_indices = @transform_1, window_bounds = array<i64: 4, 16, 4>}, {pipeline_mode = #tpu.pipeline_mode<synchronous>, transform_indices = @transform_2, window_bounds = array<i64: 16, 1>}, {pipeline_mode = #tpu.pipeline_mode<synchronous>, transform_indices = @transform_3, window_bounds = array<i64: 4, 128, 64>}, {pipeline_mode = #tpu.pipeline_mode<synchronous>, transform_indices = @transform_4, window_bounds = array<i64: 4, 32, 16>}, {pipeline_mode = #tpu.pipeline_mode<synchronous>, transform_indices = @transform_5, window_bounds = array<i64: 32, 1>}, {pipeline_mode = #tpu.pipeline_mode<synchronous>, transform_indices = @transform_6, window_bounds = array<i64: 4, 64, 32>}, {pipeline_mode = #tpu.pipeline_mode<synchronous>, transform_indices = @transform_7, window_bounds = array<i64: 4, 32, 32>}, {pipeline_mode = #tpu.pipeline_mode<synchronous>, transform_indices = @transform_8, window_bounds = array<i64: 32, 1>}, {pipeline_mode = #tpu.pipeline_mode<synchronous>, transform_indices = @transform_9, window_bounds = array<i64: 4, 32, 16>}, {pipeline_mode = #tpu.pipeline_mode<synchronous>, transform_indices = @transform_10, window_bounds = array<i64: 4, 32, 32>}, {pipeline_mode = #tpu.pipeline_mode<synchronous>, transform_indices = @transform_11, window_bounds = array<i64: 32, 1>}, {pipeline_mode = #tpu.pipeline_mode<synchronous>, transform_indices = @transform_12, window_bounds = array<i64: 4, 16, 8>}, {pipeline_mode = #tpu.pipeline_mode<synchronous>, transform_indices = @transform_13, window_bounds = array<i64: 3, 32, 32>}, {pipeline_mode = #tpu.pipeline_mode<synchronous>, transform_indices = @transform_14, window_bounds = array<i64: 32, 1>}, {pipeline_mode = #tpu.pipeline_mode<synchronous>, transform_indices = @transform_15, window_bounds = array<i64: 3, 8, 8>}, {pipeline_mode = #tpu.pipeline_mode<synchronous>, transform_indices = @transform_16, window_bounds = array<i64: 2, 3, 8, 32>}, {pipeline_mode = #tpu.pipeline_mode<synchronous>, transform_indices = @transform_17, window_bounds = array<i64: 2, 32, 8>}, {transform_indices = @transform_18, window_bounds = array<i64: 1, 32, 8>}]} {
    %c0 = arith.constant 0 : index
    %c0_0 = arith.constant 0 : index
    %c0_1 = arith.constant 0 : index
    %0 = vector.load %arg1[%c0, %c0_0, %c0_1] : memref<1x4x128xf32, #tpu.memory_space<vmem>>, vector<1x4x128xf32>
    %1 = vector.shape_cast %0 : vector<1x4x128xf32> to vector<4x128xf32>
    %2 = arith.truncf %1 : vector<4x128xf32> to vector<4x128xbf16>
    %c0_2 = arith.constant 0 : index
    %c0_3 = arith.constant 0 : index
    %c0_4 = arith.constant 0 : index
    %3 = vector.load %arg4[%c0_2, %c0_3, %c0_4] : memref<4x128x64xbf16, #tpu.memory_space<vmem>>, vector<1x128x64xbf16>
    %4 = vector.shape_cast %3 : vector<1x128x64xbf16> to vector<128x64xbf16>
    %cst = arith.constant dense<0.000000e+00> : vector<4x64xf32>
    %5 = tpu.matmul %2, %4, %cst {dimension_numbers = #tpu.dot_dimension_numbers<[1], [0], [0], [1], [0, 0, 1, 1], [], []>} : vector<4x128xbf16>, vector<128x64xbf16>, vector<4x64xf32> -> vector<4x64xf32>
    %6 = arith.truncf %5 : vector<4x64xf32> to vector<4x64xbf16>
    %c0_5 = arith.constant 0 : index
    %c0_6 = arith.constant 0 : index
    %c0_7 = arith.constant 0 : index
    %7 = vector.load %arg2[%c0_5, %c0_6, %c0_7] : memref<4x16x4xbf16, #tpu.memory_space<vmem>>, vector<1x16x4xbf16>
    %8 = vector.shape_cast %7 : vector<1x16x4xbf16> to vector<16x4xbf16>
    %cst_8 = arith.constant dense<0.000000e+00> : vector<16x64xf32>
    %9 = tpu.matmul %8, %6, %cst_8 {dimension_numbers = #tpu.dot_dimension_numbers<[1], [0], [0], [1], [0, 0, 1, 1], [], []>} : vector<16x4xbf16>, vector<4x64xbf16>, vector<16x64xf32> -> vector<16x64xf32>
    %c1 = arith.constant 1 : index
    %c0_9 = arith.constant 0 : index
    %c0_10 = arith.constant 0 : index
    %10 = vector.load %arg4[%c1, %c0_9, %c0_10] : memref<4x128x64xbf16, #tpu.memory_space<vmem>>, vector<1x128x64xbf16>
    %11 = vector.shape_cast %10 : vector<1x128x64xbf16> to vector<128x64xbf16>
    %cst_11 = arith.constant dense<0.000000e+00> : vector<4x64xf32>
    %12 = tpu.matmul %2, %11, %cst_11 {dimension_numbers = #tpu.dot_dimension_numbers<[1], [0], [0], [1], [0, 0, 1, 1], [], []>} : vector<4x128xbf16>, vector<128x64xbf16>, vector<4x64xf32> -> vector<4x64xf32>
    %13 = arith.truncf %12 : vector<4x64xf32> to vector<4x64xbf16>
    %c1_12 = arith.constant 1 : index
    %c0_13 = arith.constant 0 : index
    %c0_14 = arith.constant 0 : index
    %14 = vector.load %arg2[%c1_12, %c0_13, %c0_14] : memref<4x16x4xbf16, #tpu.memory_space<vmem>>, vector<1x16x4xbf16>
    %15 = vector.shape_cast %14 : vector<1x16x4xbf16> to vector<16x4xbf16>
    %cst_15 = arith.constant dense<0.000000e+00> : vector<16x64xf32>
    %16 = tpu.matmul %15, %13, %cst_15 {dimension_numbers = #tpu.dot_dimension_numbers<[1], [0], [0], [1], [0, 0, 1, 1], [], []>} : vector<16x4xbf16>, vector<4x64xbf16>, vector<16x64xf32> -> vector<16x64xf32>
    %17 = arith.addf %9, %16 : vector<16x64xf32>
    %c2 = arith.constant 2 : index
    %c0_16 = arith.constant 0 : index
    %c0_17 = arith.constant 0 : index
    %18 = vector.load %arg4[%c2, %c0_16, %c0_17] : memref<4x128x64xbf16, #tpu.memory_space<vmem>>, vector<1x128x64xbf16>
    %19 = vector.shape_cast %18 : vector<1x128x64xbf16> to vector<128x64xbf16>
    %cst_18 = arith.constant dense<0.000000e+00> : vector<4x64xf32>
    %20 = tpu.matmul %2, %19, %cst_18 {dimension_numbers = #tpu.dot_dimension_numbers<[1], [0], [0], [1], [0, 0, 1, 1], [], []>} : vector<4x128xbf16>, vector<128x64xbf16>, vector<4x64xf32> -> vector<4x64xf32>
    %21 = arith.truncf %20 : vector<4x64xf32> to vector<4x64xbf16>
    %c2_19 = arith.constant 2 : index
    %c0_20 = arith.constant 0 : index
    %c0_21 = arith.constant 0 : index
    %22 = vector.load %arg2[%c2_19, %c0_20, %c0_21] : memref<4x16x4xbf16, #tpu.memory_space<vmem>>, vector<1x16x4xbf16>
    %23 = vector.shape_cast %22 : vector<1x16x4xbf16> to vector<16x4xbf16>
    %cst_22 = arith.constant dense<0.000000e+00> : vector<16x64xf32>
    %24 = tpu.matmul %23, %21, %cst_22 {dimension_numbers = #tpu.dot_dimension_numbers<[1], [0], [0], [1], [0, 0, 1, 1], [], []>} : vector<16x4xbf16>, vector<4x64xbf16>, vector<16x64xf32> -> vector<16x64xf32>
    %25 = arith.addf %17, %24 : vector<16x64xf32>
    %c3 = arith.constant 3 : index
    %c0_23 = arith.constant 0 : index
    %c0_24 = arith.constant 0 : index
    %26 = vector.load %arg4[%c3, %c0_23, %c0_24] : memref<4x128x64xbf16, #tpu.memory_space<vmem>>, vector<1x128x64xbf16>
    %27 = vector.shape_cast %26 : vector<1x128x64xbf16> to vector<128x64xbf16>
    %cst_25 = arith.constant dense<0.000000e+00> : vector<4x64xf32>
    %28 = tpu.matmul %2, %27, %cst_25 {dimension_numbers = #tpu.dot_dimension_numbers<[1], [0], [0], [1], [0, 0, 1, 1], [], []>} : vector<4x128xbf16>, vector<128x64xbf16>, vector<4x64xf32> -> vector<4x64xf32>
    %29 = arith.truncf %28 : vector<4x64xf32> to vector<4x64xbf16>
    %c3_26 = arith.constant 3 : index
    %c0_27 = arith.constant 0 : index
    %c0_28 = arith.constant 0 : index
    %30 = vector.load %arg2[%c3_26, %c0_27, %c0_28] : memref<4x16x4xbf16, #tpu.memory_space<vmem>>, vector<1x16x4xbf16>
    %31 = vector.shape_cast %30 : vector<1x16x4xbf16> to vector<16x4xbf16>
    %cst_29 = arith.constant dense<0.000000e+00> : vector<16x64xf32>
    %32 = tpu.matmul %31, %29, %cst_29 {dimension_numbers = #tpu.dot_dimension_numbers<[1], [0], [0], [1], [0, 0, 1, 1], [], []>} : vector<16x4xbf16>, vector<4x64xbf16>, vector<16x64xf32> -> vector<16x64xf32>
    %33 = arith.addf %25, %32 : vector<16x64xf32>
    %c0_30 = arith.constant 0 : index
    %c0_31 = arith.constant 0 : index
    %34 = vector.load %arg3[%c0_30, %c0_31] : memref<16x1xf32, #tpu.memory_space<vmem>>, vector<16x1xf32>
    %35 = vector.broadcast %34 : vector<16x1xf32> to vector<16x64xf32>
    %36 = arith.addf %33, %35 : vector<16x64xf32>
    %cst_32 = arith.constant 0.000000e+00 : f32
    %37 = vector.broadcast %cst_32 : f32 to vector<16x64xf32>
    %38 = arith.maximumf %36, %37 : vector<16x64xf32>
    %39 = arith.truncf %38 : vector<16x64xf32> to vector<16x64xbf16>
    %c0_33 = arith.constant 0 : index
    %c0_34 = arith.constant 0 : index
    %c0_35 = arith.constant 0 : index
    %40 = vector.load %arg7[%c0_33, %c0_34, %c0_35] : memref<4x64x32xbf16, #tpu.memory_space<vmem>>, vector<1x64x32xbf16>
    %41 = vector.shape_cast %40 : vector<1x64x32xbf16> to vector<64x32xbf16>
    %cst_36 = arith.constant dense<0.000000e+00> : vector<16x32xf32>
    %42 = tpu.matmul %39, %41, %cst_36 {dimension_numbers = #tpu.dot_dimension_numbers<[1], [0], [0], [1], [0, 0, 1, 1], [], []>} : vector<16x64xbf16>, vector<64x32xbf16>, vector<16x32xf32> -> vector<16x32xf32>
    %43 = arith.truncf %42 : vector<16x32xf32> to vector<16x32xbf16>
    %c0_37 = arith.constant 0 : index
    %c0_38 = arith.constant 0 : index
    %c0_39 = arith.constant 0 : index
    %44 = vector.load %arg5[%c0_37, %c0_38, %c0_39] : memref<4x32x16xbf16, #tpu.memory_space<vmem>>, vector<1x32x16xbf16>
    %45 = vector.shape_cast %44 : vector<1x32x16xbf16> to vector<32x16xbf16>
    %cst_40 = arith.constant dense<0.000000e+00> : vector<32x32xf32>
    %46 = tpu.matmul %45, %43, %cst_40 {dimension_numbers = #tpu.dot_dimension_numbers<[1], [0], [0], [1], [0, 0, 1, 1], [], []>} : vector<32x16xbf16>, vector<16x32xbf16>, vector<32x32xf32> -> vector<32x32xf32>
    %c1_41 = arith.constant 1 : index
    %c0_42 = arith.constant 0 : index
    %c0_43 = arith.constant 0 : index
    %47 = vector.load %arg7[%c1_41, %c0_42, %c0_43] : memref<4x64x32xbf16, #tpu.memory_space<vmem>>, vector<1x64x32xbf16>
    %48 = vector.shape_cast %47 : vector<1x64x32xbf16> to vector<64x32xbf16>
    %cst_44 = arith.constant dense<0.000000e+00> : vector<16x32xf32>
    %49 = tpu.matmul %39, %48, %cst_44 {dimension_numbers = #tpu.dot_dimension_numbers<[1], [0], [0], [1], [0, 0, 1, 1], [], []>} : vector<16x64xbf16>, vector<64x32xbf16>, vector<16x32xf32> -> vector<16x32xf32>
    %50 = arith.truncf %49 : vector<16x32xf32> to vector<16x32xbf16>
    %c1_45 = arith.constant 1 : index
    %c0_46 = arith.constant 0 : index
    %c0_47 = arith.constant 0 : index
    %51 = vector.load %arg5[%c1_45, %c0_46, %c0_47] : memref<4x32x16xbf16, #tpu.memory_space<vmem>>, vector<1x32x16xbf16>
    %52 = vector.shape_cast %51 : vector<1x32x16xbf16> to vector<32x16xbf16>
    %cst_48 = arith.constant dense<0.000000e+00> : vector<32x32xf32>
    %53 = tpu.matmul %52, %50, %cst_48 {dimension_numbers = #tpu.dot_dimension_numbers<[1], [0], [0], [1], [0, 0, 1, 1], [], []>} : vector<32x16xbf16>, vector<16x32xbf16>, vector<32x32xf32> -> vector<32x32xf32>
    %54 = arith.addf %46, %53 : vector<32x32xf32>
    %c2_49 = arith.constant 2 : index
    %c0_50 = arith.constant 0 : index
    %c0_51 = arith.constant 0 : index
    %55 = vector.load %arg7[%c2_49, %c0_50, %c0_51] : memref<4x64x32xbf16, #tpu.memory_space<vmem>>, vector<1x64x32xbf16>
    %56 = vector.shape_cast %55 : vector<1x64x32xbf16> to vector<64x32xbf16>
    %cst_52 = arith.constant dense<0.000000e+00> : vector<16x32xf32>
    %57 = tpu.matmul %39, %56, %cst_52 {dimension_numbers = #tpu.dot_dimension_numbers<[1], [0], [0], [1], [0, 0, 1, 1], [], []>} : vector<16x64xbf16>, vector<64x32xbf16>, vector<16x32xf32> -> vector<16x32xf32>
    %58 = arith.truncf %57 : vector<16x32xf32> to vector<16x32xbf16>
    %c2_53 = arith.constant 2 : index
    %c0_54 = arith.constant 0 : index
    %c0_55 = arith.constant 0 : index
    %59 = vector.load %arg5[%c2_53, %c0_54, %c0_55] : memref<4x32x16xbf16, #tpu.memory_space<vmem>>, vector<1x32x16xbf16>
    %60 = vector.shape_cast %59 : vector<1x32x16xbf16> to vector<32x16xbf16>
    %cst_56 = arith.constant dense<0.000000e+00> : vector<32x32xf32>
    %61 = tpu.matmul %60, %58, %cst_56 {dimension_numbers = #tpu.dot_dimension_numbers<[1], [0], [0], [1], [0, 0, 1, 1], [], []>} : vector<32x16xbf16>, vector<16x32xbf16>, vector<32x32xf32> -> vector<32x32xf32>
    %62 = arith.addf %54, %61 : vector<32x32xf32>
    %c3_57 = arith.constant 3 : index
    %c0_58 = arith.constant 0 : index
    %c0_59 = arith.constant 0 : index
    %63 = vector.load %arg7[%c3_57, %c0_58, %c0_59] : memref<4x64x32xbf16, #tpu.memory_space<vmem>>, vector<1x64x32xbf16>
    %64 = vector.shape_cast %63 : vector<1x64x32xbf16> to vector<64x32xbf16>
    %cst_60 = arith.constant dense<0.000000e+00> : vector<16x32xf32>
    %65 = tpu.matmul %39, %64, %cst_60 {dimension_numbers = #tpu.dot_dimension_numbers<[1], [0], [0], [1], [0, 0, 1, 1], [], []>} : vector<16x64xbf16>, vector<64x32xbf16>, vector<16x32xf32> -> vector<16x32xf32>
    %66 = arith.truncf %65 : vector<16x32xf32> to vector<16x32xbf16>
    %c3_61 = arith.constant 3 : index
    %c0_62 = arith.constant 0 : index
    %c0_63 = arith.constant 0 : index
    %67 = vector.load %arg5[%c3_61, %c0_62, %c0_63] : memref<4x32x16xbf16, #tpu.memory_space<vmem>>, vector<1x32x16xbf16>
    %68 = vector.shape_cast %67 : vector<1x32x16xbf16> to vector<32x16xbf16>
    %cst_64 = arith.constant dense<0.000000e+00> : vector<32x32xf32>
    %69 = tpu.matmul %68, %66, %cst_64 {dimension_numbers = #tpu.dot_dimension_numbers<[1], [0], [0], [1], [0, 0, 1, 1], [], []>} : vector<32x16xbf16>, vector<16x32xbf16>, vector<32x32xf32> -> vector<32x32xf32>
    %70 = arith.addf %62, %69 : vector<32x32xf32>
    %c0_65 = arith.constant 0 : index
    %c0_66 = arith.constant 0 : index
    %71 = vector.load %arg6[%c0_65, %c0_66] : memref<32x1xf32, #tpu.memory_space<vmem>>, vector<32x1xf32>
    %72 = vector.broadcast %71 : vector<32x1xf32> to vector<32x32xf32>
    %73 = arith.addf %70, %72 : vector<32x32xf32>
    %cst_67 = arith.constant 0.000000e+00 : f32
    %74 = vector.broadcast %cst_67 : f32 to vector<32x32xf32>
    %75 = arith.maximumf %73, %74 : vector<32x32xf32>
    %76 = arith.truncf %75 : vector<32x32xf32> to vector<32x32xbf16>
    %c0_68 = arith.constant 0 : index
    %c0_69 = arith.constant 0 : index
    %c0_70 = arith.constant 0 : index
    %77 = vector.load %arg10[%c0_68, %c0_69, %c0_70] : memref<4x32x16xbf16, #tpu.memory_space<vmem>>, vector<1x32x16xbf16>
    %78 = vector.shape_cast %77 : vector<1x32x16xbf16> to vector<32x16xbf16>
    %cst_71 = arith.constant dense<0.000000e+00> : vector<32x16xf32>
    %79 = tpu.matmul %76, %78, %cst_71 {dimension_numbers = #tpu.dot_dimension_numbers<[1], [0], [0], [1], [0, 0, 1, 1], [], []>} : vector<32x32xbf16>, vector<32x16xbf16>, vector<32x16xf32> -> vector<32x16xf32>
    %80 = arith.truncf %79 : vector<32x16xf32> to vector<32x16xbf16>
    %c0_72 = arith.constant 0 : index
    %c0_73 = arith.constant 0 : index
    %c0_74 = arith.constant 0 : index
    %81 = vector.load %arg8[%c0_72, %c0_73, %c0_74] : memref<4x32x32xbf16, #tpu.memory_space<vmem>>, vector<1x32x32xbf16>
    %82 = vector.shape_cast %81 : vector<1x32x32xbf16> to vector<32x32xbf16>
    %cst_75 = arith.constant dense<0.000000e+00> : vector<32x16xf32>
    %83 = tpu.matmul %82, %80, %cst_75 {dimension_numbers = #tpu.dot_dimension_numbers<[1], [0], [0], [1], [0, 0, 1, 1], [], []>} : vector<32x32xbf16>, vector<32x16xbf16>, vector<32x16xf32> -> vector<32x16xf32>
    %c1_76 = arith.constant 1 : index
    %c0_77 = arith.constant 0 : index
    %c0_78 = arith.constant 0 : index
    %84 = vector.load %arg10[%c1_76, %c0_77, %c0_78] : memref<4x32x16xbf16, #tpu.memory_space<vmem>>, vector<1x32x16xbf16>
    %85 = vector.shape_cast %84 : vector<1x32x16xbf16> to vector<32x16xbf16>
    %cst_79 = arith.constant dense<0.000000e+00> : vector<32x16xf32>
    %86 = tpu.matmul %76, %85, %cst_79 {dimension_numbers = #tpu.dot_dimension_numbers<[1], [0], [0], [1], [0, 0, 1, 1], [], []>} : vector<32x32xbf16>, vector<32x16xbf16>, vector<32x16xf32> -> vector<32x16xf32>
    %87 = arith.truncf %86 : vector<32x16xf32> to vector<32x16xbf16>
    %c1_80 = arith.constant 1 : index
    %c0_81 = arith.constant 0 : index
    %c0_82 = arith.constant 0 : index
    %88 = vector.load %arg8[%c1_80, %c0_81, %c0_82] : memref<4x32x32xbf16, #tpu.memory_space<vmem>>, vector<1x32x32xbf16>
    %89 = vector.shape_cast %88 : vector<1x32x32xbf16> to vector<32x32xbf16>
    %cst_83 = arith.constant dense<0.000000e+00> : vector<32x16xf32>
    %90 = tpu.matmul %89, %87, %cst_83 {dimension_numbers = #tpu.dot_dimension_numbers<[1], [0], [0], [1], [0, 0, 1, 1], [], []>} : vector<32x32xbf16>, vector<32x16xbf16>, vector<32x16xf32> -> vector<32x16xf32>
    %91 = arith.addf %83, %90 : vector<32x16xf32>
    %c2_84 = arith.constant 2 : index
    %c0_85 = arith.constant 0 : index
    %c0_86 = arith.constant 0 : index
    %92 = vector.load %arg10[%c2_84, %c0_85, %c0_86] : memref<4x32x16xbf16, #tpu.memory_space<vmem>>, vector<1x32x16xbf16>
    %93 = vector.shape_cast %92 : vector<1x32x16xbf16> to vector<32x16xbf16>
    %cst_87 = arith.constant dense<0.000000e+00> : vector<32x16xf32>
    %94 = tpu.matmul %76, %93, %cst_87 {dimension_numbers = #tpu.dot_dimension_numbers<[1], [0], [0], [1], [0, 0, 1, 1], [], []>} : vector<32x32xbf16>, vector<32x16xbf16>, vector<32x16xf32> -> vector<32x16xf32>
    %95 = arith.truncf %94 : vector<32x16xf32> to vector<32x16xbf16>
    %c2_88 = arith.constant 2 : index
    %c0_89 = arith.constant 0 : index
    %c0_90 = arith.constant 0 : index
    %96 = vector.load %arg8[%c2_88, %c0_89, %c0_90] : memref<4x32x32xbf16, #tpu.memory_space<vmem>>, vector<1x32x32xbf16>
    %97 = vector.shape_cast %96 : vector<1x32x32xbf16> to vector<32x32xbf16>
    %cst_91 = arith.constant dense<0.000000e+00> : vector<32x16xf32>
    %98 = tpu.matmul %97, %95, %cst_91 {dimension_numbers = #tpu.dot_dimension_numbers<[1], [0], [0], [1], [0, 0, 1, 1], [], []>} : vector<32x32xbf16>, vector<32x16xbf16>, vector<32x16xf32> -> vector<32x16xf32>
    %99 = arith.addf %91, %98 : vector<32x16xf32>
    %c3_92 = arith.constant 3 : index
    %c0_93 = arith.constant 0 : index
    %c0_94 = arith.constant 0 : index
    %100 = vector.load %arg10[%c3_92, %c0_93, %c0_94] : memref<4x32x16xbf16, #tpu.memory_space<vmem>>, vector<1x32x16xbf16>
    %101 = vector.shape_cast %100 : vector<1x32x16xbf16> to vector<32x16xbf16>
    %cst_95 = arith.constant dense<0.000000e+00> : vector<32x16xf32>
    %102 = tpu.matmul %76, %101, %cst_95 {dimension_numbers = #tpu.dot_dimension_numbers<[1], [0], [0], [1], [0, 0, 1, 1], [], []>} : vector<32x32xbf16>, vector<32x16xbf16>, vector<32x16xf32> -> vector<32x16xf32>
    %103 = arith.truncf %102 : vector<32x16xf32> to vector<32x16xbf16>
    %c3_96 = arith.constant 3 : index
    %c0_97 = arith.constant 0 : index
    %c0_98 = arith.constant 0 : index
    %104 = vector.load %arg8[%c3_96, %c0_97, %c0_98] : memref<4x32x32xbf16, #tpu.memory_space<vmem>>, vector<1x32x32xbf16>
    %105 = vector.shape_cast %104 : vector<1x32x32xbf16> to vector<32x32xbf16>
    %cst_99 = arith.constant dense<0.000000e+00> : vector<32x16xf32>
    %106 = tpu.matmul %105, %103, %cst_99 {dimension_numbers = #tpu.dot_dimension_numbers<[1], [0], [0], [1], [0, 0, 1, 1], [], []>} : vector<32x32xbf16>, vector<32x16xbf16>, vector<32x16xf32> -> vector<32x16xf32>
    %107 = arith.addf %99, %106 : vector<32x16xf32>
    %c0_100 = arith.constant 0 : index
    %c0_101 = arith.constant 0 : index
    %108 = vector.load %arg9[%c0_100, %c0_101] : memref<32x1xf32, #tpu.memory_space<vmem>>, vector<32x1xf32>
    %109 = vector.broadcast %108 : vector<32x1xf32> to vector<32x16xf32>
    %110 = arith.addf %107, %109 : vector<32x16xf32>
    %cst_102 = arith.constant 0.000000e+00 : f32
    %111 = vector.broadcast %cst_102 : f32 to vector<32x16xf32>
    %112 = arith.maximumf %110, %111 : vector<32x16xf32>
    %113 = arith.truncf %112 : vector<32x16xf32> to vector<32x16xbf16>
    %c0_103 = arith.constant 0 : index
    %c0_104 = arith.constant 0 : index
    %c0_105 = arith.constant 0 : index
    %114 = vector.load %arg13[%c0_103, %c0_104, %c0_105] : memref<4x16x8xbf16, #tpu.memory_space<vmem>>, vector<1x16x8xbf16>
    %115 = vector.shape_cast %114 : vector<1x16x8xbf16> to vector<16x8xbf16>
    %cst_106 = arith.constant dense<0.000000e+00> : vector<32x8xf32>
    %116 = tpu.matmul %113, %115, %cst_106 {dimension_numbers = #tpu.dot_dimension_numbers<[1], [0], [0], [1], [0, 0, 1, 1], [], []>} : vector<32x16xbf16>, vector<16x8xbf16>, vector<32x8xf32> -> vector<32x8xf32>
    %117 = arith.truncf %116 : vector<32x8xf32> to vector<32x8xbf16>
    %c0_107 = arith.constant 0 : index
    %c0_108 = arith.constant 0 : index
    %c0_109 = arith.constant 0 : index
    %118 = vector.load %arg11[%c0_107, %c0_108, %c0_109] : memref<4x32x32xbf16, #tpu.memory_space<vmem>>, vector<1x32x32xbf16>
    %119 = vector.shape_cast %118 : vector<1x32x32xbf16> to vector<32x32xbf16>
    %cst_110 = arith.constant dense<0.000000e+00> : vector<32x8xf32>
    %120 = tpu.matmul %119, %117, %cst_110 {dimension_numbers = #tpu.dot_dimension_numbers<[1], [0], [0], [1], [0, 0, 1, 1], [], []>} : vector<32x32xbf16>, vector<32x8xbf16>, vector<32x8xf32> -> vector<32x8xf32>
    %c1_111 = arith.constant 1 : index
    %c0_112 = arith.constant 0 : index
    %c0_113 = arith.constant 0 : index
    %121 = vector.load %arg13[%c1_111, %c0_112, %c0_113] : memref<4x16x8xbf16, #tpu.memory_space<vmem>>, vector<1x16x8xbf16>
    %122 = vector.shape_cast %121 : vector<1x16x8xbf16> to vector<16x8xbf16>
    %cst_114 = arith.constant dense<0.000000e+00> : vector<32x8xf32>
    %123 = tpu.matmul %113, %122, %cst_114 {dimension_numbers = #tpu.dot_dimension_numbers<[1], [0], [0], [1], [0, 0, 1, 1], [], []>} : vector<32x16xbf16>, vector<16x8xbf16>, vector<32x8xf32> -> vector<32x8xf32>
    %124 = arith.truncf %123 : vector<32x8xf32> to vector<32x8xbf16>
    %c1_115 = arith.constant 1 : index
    %c0_116 = arith.constant 0 : index
    %c0_117 = arith.constant 0 : index
    %125 = vector.load %arg11[%c1_115, %c0_116, %c0_117] : memref<4x32x32xbf16, #tpu.memory_space<vmem>>, vector<1x32x32xbf16>
    %126 = vector.shape_cast %125 : vector<1x32x32xbf16> to vector<32x32xbf16>
    %cst_118 = arith.constant dense<0.000000e+00> : vector<32x8xf32>
    %127 = tpu.matmul %126, %124, %cst_118 {dimension_numbers = #tpu.dot_dimension_numbers<[1], [0], [0], [1], [0, 0, 1, 1], [], []>} : vector<32x32xbf16>, vector<32x8xbf16>, vector<32x8xf32> -> vector<32x8xf32>
    %128 = arith.addf %120, %127 : vector<32x8xf32>
    %c2_119 = arith.constant 2 : index
    %c0_120 = arith.constant 0 : index
    %c0_121 = arith.constant 0 : index
    %129 = vector.load %arg13[%c2_119, %c0_120, %c0_121] : memref<4x16x8xbf16, #tpu.memory_space<vmem>>, vector<1x16x8xbf16>
    %130 = vector.shape_cast %129 : vector<1x16x8xbf16> to vector<16x8xbf16>
    %cst_122 = arith.constant dense<0.000000e+00> : vector<32x8xf32>
    %131 = tpu.matmul %113, %130, %cst_122 {dimension_numbers = #tpu.dot_dimension_numbers<[1], [0], [0], [1], [0, 0, 1, 1], [], []>} : vector<32x16xbf16>, vector<16x8xbf16>, vector<32x8xf32> -> vector<32x8xf32>
    %132 = arith.truncf %131 : vector<32x8xf32> to vector<32x8xbf16>
    %c2_123 = arith.constant 2 : index
    %c0_124 = arith.constant 0 : index
    %c0_125 = arith.constant 0 : index
    %133 = vector.load %arg11[%c2_123, %c0_124, %c0_125] : memref<4x32x32xbf16, #tpu.memory_space<vmem>>, vector<1x32x32xbf16>
    %134 = vector.shape_cast %133 : vector<1x32x32xbf16> to vector<32x32xbf16>
    %cst_126 = arith.constant dense<0.000000e+00> : vector<32x8xf32>
    %135 = tpu.matmul %134, %132, %cst_126 {dimension_numbers = #tpu.dot_dimension_numbers<[1], [0], [0], [1], [0, 0, 1, 1], [], []>} : vector<32x32xbf16>, vector<32x8xbf16>, vector<32x8xf32> -> vector<32x8xf32>
    %136 = arith.addf %128, %135 : vector<32x8xf32>
    %c3_127 = arith.constant 3 : index
    %c0_128 = arith.constant 0 : index
    %c0_129 = arith.constant 0 : index
    %137 = vector.load %arg13[%c3_127, %c0_128, %c0_129] : memref<4x16x8xbf16, #tpu.memory_space<vmem>>, vector<1x16x8xbf16>
    %138 = vector.shape_cast %137 : vector<1x16x8xbf16> to vector<16x8xbf16>
    %cst_130 = arith.constant dense<0.000000e+00> : vector<32x8xf32>
    %139 = tpu.matmul %113, %138, %cst_130 {dimension_numbers = #tpu.dot_dimension_numbers<[1], [0], [0], [1], [0, 0, 1, 1], [], []>} : vector<32x16xbf16>, vector<16x8xbf16>, vector<32x8xf32> -> vector<32x8xf32>
    %140 = arith.truncf %139 : vector<32x8xf32> to vector<32x8xbf16>
    %c3_131 = arith.constant 3 : index
    %c0_132 = arith.constant 0 : index
    %c0_133 = arith.constant 0 : index
    %141 = vector.load %arg11[%c3_131, %c0_132, %c0_133] : memref<4x32x32xbf16, #tpu.memory_space<vmem>>, vector<1x32x32xbf16>
    %142 = vector.shape_cast %141 : vector<1x32x32xbf16> to vector<32x32xbf16>
    %cst_134 = arith.constant dense<0.000000e+00> : vector<32x8xf32>
    %143 = tpu.matmul %142, %140, %cst_134 {dimension_numbers = #tpu.dot_dimension_numbers<[1], [0], [0], [1], [0, 0, 1, 1], [], []>} : vector<32x32xbf16>, vector<32x8xbf16>, vector<32x8xf32> -> vector<32x8xf32>
    %144 = arith.addf %136, %143 : vector<32x8xf32>
    %c0_135 = arith.constant 0 : index
    %c0_136 = arith.constant 0 : index
    %145 = vector.load %arg12[%c0_135, %c0_136] : memref<32x1xf32, #tpu.memory_space<vmem>>, vector<32x1xf32>
    %146 = vector.broadcast %145 : vector<32x1xf32> to vector<32x8xf32>
    %147 = arith.addf %144, %146 : vector<32x8xf32>
    %cst_137 = arith.constant 0.000000e+00 : f32
    %148 = vector.broadcast %cst_137 : f32 to vector<32x8xf32>
    %149 = arith.maximumf %147, %148 : vector<32x8xf32>
    %150 = arith.truncf %149 : vector<32x8xf32> to vector<32x8xbf16>
    %c0_138 = arith.constant 0 : index
    %c0_139 = arith.constant 0 : index
    %c0_140 = arith.constant 0 : index
    %151 = vector.load %arg16[%c0_138, %c0_139, %c0_140] : memref<3x8x8xbf16, #tpu.memory_space<vmem>>, vector<1x8x8xbf16>
    %152 = vector.shape_cast %151 : vector<1x8x8xbf16> to vector<8x8xbf16>
    %cst_141 = arith.constant dense<0.000000e+00> : vector<32x8xf32>
    %153 = tpu.matmul %150, %152, %cst_141 {dimension_numbers = #tpu.dot_dimension_numbers<[1], [0], [0], [1], [0, 0, 1, 1], [], []>} : vector<32x8xbf16>, vector<8x8xbf16>, vector<32x8xf32> -> vector<32x8xf32>
    %154 = arith.truncf %153 : vector<32x8xf32> to vector<32x8xbf16>
    %c0_142 = arith.constant 0 : index
    %c0_143 = arith.constant 0 : index
    %c0_144 = arith.constant 0 : index
    %155 = vector.load %arg14[%c0_142, %c0_143, %c0_144] : memref<3x32x32xbf16, #tpu.memory_space<vmem>>, vector<1x32x32xbf16>
    %156 = vector.shape_cast %155 : vector<1x32x32xbf16> to vector<32x32xbf16>
    %cst_145 = arith.constant dense<0.000000e+00> : vector<32x8xf32>
    %157 = tpu.matmul %156, %154, %cst_145 {dimension_numbers = #tpu.dot_dimension_numbers<[1], [0], [0], [1], [0, 0, 1, 1], [], []>} : vector<32x32xbf16>, vector<32x8xbf16>, vector<32x8xf32> -> vector<32x8xf32>
    %c1_146 = arith.constant 1 : index
    %c0_147 = arith.constant 0 : index
    %c0_148 = arith.constant 0 : index
    %158 = vector.load %arg14[%c1_146, %c0_147, %c0_148] : memref<3x32x32xbf16, #tpu.memory_space<vmem>>, vector<1x32x32xbf16>
    %159 = vector.shape_cast %158 : vector<1x32x32xbf16> to vector<32x32xbf16>
    %cst_149 = arith.constant dense<0.000000e+00> : vector<32x8xf32>
    %160 = tpu.matmul %159, %150, %cst_149 {dimension_numbers = #tpu.dot_dimension_numbers<[1], [0], [0], [1], [0, 0, 1, 1], [], []>} : vector<32x32xbf16>, vector<32x8xbf16>, vector<32x8xf32> -> vector<32x8xf32>
    %161 = arith.addf %157, %160 : vector<32x8xf32>
    %c2_150 = arith.constant 2 : index
    %c0_151 = arith.constant 0 : index
    %c0_152 = arith.constant 0 : index
    %162 = vector.load %arg16[%c2_150, %c0_151, %c0_152] : memref<3x8x8xbf16, #tpu.memory_space<vmem>>, vector<1x8x8xbf16>
    %163 = vector.shape_cast %162 : vector<1x8x8xbf16> to vector<8x8xbf16>
    %cst_153 = arith.constant dense<0.000000e+00> : vector<32x8xf32>
    %164 = tpu.matmul %150, %163, %cst_153 {dimension_numbers = #tpu.dot_dimension_numbers<[1], [0], [0], [1], [0, 0, 1, 1], [], []>} : vector<32x8xbf16>, vector<8x8xbf16>, vector<32x8xf32> -> vector<32x8xf32>
    %165 = arith.truncf %164 : vector<32x8xf32> to vector<32x8xbf16>
    %c2_154 = arith.constant 2 : index
    %c0_155 = arith.constant 0 : index
    %c0_156 = arith.constant 0 : index
    %166 = vector.load %arg14[%c2_154, %c0_155, %c0_156] : memref<3x32x32xbf16, #tpu.memory_space<vmem>>, vector<1x32x32xbf16>
    %167 = vector.shape_cast %166 : vector<1x32x32xbf16> to vector<32x32xbf16>
    %cst_157 = arith.constant dense<0.000000e+00> : vector<32x8xf32>
    %168 = tpu.matmul %167, %165, %cst_157 {dimension_numbers = #tpu.dot_dimension_numbers<[1], [0], [0], [1], [0, 0, 1, 1], [], []>} : vector<32x32xbf16>, vector<32x8xbf16>, vector<32x8xf32> -> vector<32x8xf32>
    %169 = arith.addf %161, %168 : vector<32x8xf32>
    %c0_158 = arith.constant 0 : index
    %c0_159 = arith.constant 0 : index
    %170 = vector.load %arg15[%c0_158, %c0_159] : memref<32x1xf32, #tpu.memory_space<vmem>>, vector<32x1xf32>
    %171 = vector.broadcast %170 : vector<32x1xf32> to vector<32x8xf32>
    %172 = arith.addf %169, %171 : vector<32x8xf32>
    %c0_160 = arith.constant 0 : index
    %c0_161 = arith.constant 0 : index
    %c0_162 = arith.constant 0 : index
    %c0_163 = arith.constant 0 : index
    %173 = vector.load %arg17[%c0_160, %c0_161, %c0_162, %c0_163] : memref<2x3x8x32xbf16, #tpu.memory_space<vmem>>, vector<1x3x8x32xbf16>
    %174 = vector.shape_cast %173 : vector<1x3x8x32xbf16> to vector<3x8x32xbf16>
    %cst_164 = arith.constant 0.000000e+00 : f32
    %175 = vector.broadcast %cst_164 : f32 to vector<32x8xf32>
    %176 = arith.maximumf %172, %175 : vector<32x8xf32>
    %177 = arith.truncf %176 : vector<32x8xf32> to vector<32x8xbf16>
    %c0_165 = arith.constant 0 : index
    %c0_166 = arith.constant 0 : index
    %c0_167 = arith.constant 0 : index
    %178 = vector.load %arg16[%c0_165, %c0_166, %c0_167] : memref<3x8x8xbf16, #tpu.memory_space<vmem>>, vector<1x8x8xbf16>
    %179 = vector.shape_cast %178 : vector<1x8x8xbf16> to vector<8x8xbf16>
    %cst_168 = arith.constant dense<0.000000e+00> : vector<32x8xf32>
    %180 = tpu.matmul %177, %179, %cst_168 {dimension_numbers = #tpu.dot_dimension_numbers<[1], [0], [0], [1], [0, 0, 1, 1], [], []>} : vector<32x8xbf16>, vector<8x8xbf16>, vector<32x8xf32> -> vector<32x8xf32>
    %181 = arith.truncf %180 : vector<32x8xf32> to vector<32x8xbf16>
    %182 = vector.extract_strided_slice %174 {offsets = [0, 0, 0], sizes = [1, 8, 32], strides = [1, 1, 1]} : vector<3x8x32xbf16> to vector<1x8x32xbf16>
    %183 = vector.shape_cast %182 : vector<1x8x32xbf16> to vector<8x32xbf16>
    %cst_169 = arith.constant dense<0.000000e+00> : vector<8x8xf32>
    %184 = tpu.matmul %183, %181, %cst_169 {dimension_numbers = #tpu.dot_dimension_numbers<[1], [0], [0], [1], [0, 0, 1, 1], [], []>} : vector<8x32xbf16>, vector<32x8xbf16>, vector<8x8xf32> -> vector<8x8xf32>
    %185 = vector.extract_strided_slice %174 {offsets = [1, 0, 0], sizes = [1, 8, 32], strides = [1, 1, 1]} : vector<3x8x32xbf16> to vector<1x8x32xbf16>
    %186 = vector.shape_cast %185 : vector<1x8x32xbf16> to vector<8x32xbf16>
    %cst_170 = arith.constant dense<0.000000e+00> : vector<8x8xf32>
    %187 = tpu.matmul %186, %177, %cst_170 {dimension_numbers = #tpu.dot_dimension_numbers<[1], [0], [0], [1], [0, 0, 1, 1], [], []>} : vector<8x32xbf16>, vector<32x8xbf16>, vector<8x8xf32> -> vector<8x8xf32>
    %188 = arith.addf %184, %187 : vector<8x8xf32>
    %c2_171 = arith.constant 2 : index
    %c0_172 = arith.constant 0 : index
    %c0_173 = arith.constant 0 : index
    %189 = vector.load %arg16[%c2_171, %c0_172, %c0_173] : memref<3x8x8xbf16, #tpu.memory_space<vmem>>, vector<1x8x8xbf16>
    %190 = vector.shape_cast %189 : vector<1x8x8xbf16> to vector<8x8xbf16>
    %cst_174 = arith.constant dense<0.000000e+00> : vector<32x8xf32>
    %191 = tpu.matmul %177, %190, %cst_174 {dimension_numbers = #tpu.dot_dimension_numbers<[1], [0], [0], [1], [0, 0, 1, 1], [], []>} : vector<32x8xbf16>, vector<8x8xbf16>, vector<32x8xf32> -> vector<32x8xf32>
    %192 = arith.truncf %191 : vector<32x8xf32> to vector<32x8xbf16>
    %193 = vector.extract_strided_slice %174 {offsets = [2, 0, 0], sizes = [1, 8, 32], strides = [1, 1, 1]} : vector<3x8x32xbf16> to vector<1x8x32xbf16>
    %194 = vector.shape_cast %193 : vector<1x8x32xbf16> to vector<8x32xbf16>
    %cst_175 = arith.constant dense<0.000000e+00> : vector<8x8xf32>
    %195 = tpu.matmul %194, %192, %cst_175 {dimension_numbers = #tpu.dot_dimension_numbers<[1], [0], [0], [1], [0, 0, 1, 1], [], []>} : vector<8x32xbf16>, vector<32x8xbf16>, vector<8x8xf32> -> vector<8x8xf32>
    %196 = arith.addf %188, %195 : vector<8x8xf32>
    %cst_176 = arith.constant 0.000000e+00 : f32
    %197 = vector.broadcast %cst_176 : f32 to vector<8x8xf32>
    %198 = arith.maximumf %196, %197 : vector<8x8xf32>
    %199 = arith.truncf %198 : vector<8x8xf32> to vector<8x8xbf16>
    %c0_177 = arith.constant 0 : index
    %c0_178 = arith.constant 0 : index
    %c0_179 = arith.constant 0 : index
    %200 = vector.load %arg18[%c0_177, %c0_178, %c0_179] : memref<2x32x8xbf16, #tpu.memory_space<vmem>>, vector<1x32x8xbf16>
    %201 = vector.shape_cast %200 : vector<1x32x8xbf16> to vector<32x8xbf16>
    %cst_180 = arith.constant dense<0.000000e+00> : vector<32x8xf32>
    %202 = tpu.matmul %201, %199, %cst_180 {dimension_numbers = #tpu.dot_dimension_numbers<[1], [0], [0], [1], [0, 0, 1, 1], [], []>} : vector<32x8xbf16>, vector<8x8xbf16>, vector<32x8xf32> -> vector<32x8xf32>
    %203 = arith.addf %172, %202 : vector<32x8xf32>
    %c1_181 = arith.constant 1 : index
    %c0_182 = arith.constant 0 : index
    %c0_183 = arith.constant 0 : index
    %c0_184 = arith.constant 0 : index
    %204 = vector.load %arg17[%c1_181, %c0_182, %c0_183, %c0_184] : memref<2x3x8x32xbf16, #tpu.memory_space<vmem>>, vector<1x3x8x32xbf16>
    %205 = vector.shape_cast %204 : vector<1x3x8x32xbf16> to vector<3x8x32xbf16>
    %cst_185 = arith.constant 0.000000e+00 : f32
    %206 = vector.broadcast %cst_185 : f32 to vector<32x8xf32>
    %207 = arith.maximumf %203, %206 : vector<32x8xf32>
    %208 = arith.truncf %207 : vector<32x8xf32> to vector<32x8xbf16>
    %c0_186 = arith.constant 0 : index
    %c0_187 = arith.constant 0 : index
    %c0_188 = arith.constant 0 : index
    %209 = vector.load %arg16[%c0_186, %c0_187, %c0_188] : memref<3x8x8xbf16, #tpu.memory_space<vmem>>, vector<1x8x8xbf16>
    %210 = vector.shape_cast %209 : vector<1x8x8xbf16> to vector<8x8xbf16>
    %cst_189 = arith.constant dense<0.000000e+00> : vector<32x8xf32>
    %211 = tpu.matmul %208, %210, %cst_189 {dimension_numbers = #tpu.dot_dimension_numbers<[1], [0], [0], [1], [0, 0, 1, 1], [], []>} : vector<32x8xbf16>, vector<8x8xbf16>, vector<32x8xf32> -> vector<32x8xf32>
    %212 = arith.truncf %211 : vector<32x8xf32> to vector<32x8xbf16>
    %213 = vector.extract_strided_slice %205 {offsets = [0, 0, 0], sizes = [1, 8, 32], strides = [1, 1, 1]} : vector<3x8x32xbf16> to vector<1x8x32xbf16>
    %214 = vector.shape_cast %213 : vector<1x8x32xbf16> to vector<8x32xbf16>
    %cst_190 = arith.constant dense<0.000000e+00> : vector<8x8xf32>
    %215 = tpu.matmul %214, %212, %cst_190 {dimension_numbers = #tpu.dot_dimension_numbers<[1], [0], [0], [1], [0, 0, 1, 1], [], []>} : vector<8x32xbf16>, vector<32x8xbf16>, vector<8x8xf32> -> vector<8x8xf32>
    %216 = vector.extract_strided_slice %205 {offsets = [1, 0, 0], sizes = [1, 8, 32], strides = [1, 1, 1]} : vector<3x8x32xbf16> to vector<1x8x32xbf16>
    %217 = vector.shape_cast %216 : vector<1x8x32xbf16> to vector<8x32xbf16>
    %cst_191 = arith.constant dense<0.000000e+00> : vector<8x8xf32>
    %218 = tpu.matmul %217, %208, %cst_191 {dimension_numbers = #tpu.dot_dimension_numbers<[1], [0], [0], [1], [0, 0, 1, 1], [], []>} : vector<8x32xbf16>, vector<32x8xbf16>, vector<8x8xf32> -> vector<8x8xf32>
    %219 = arith.addf %215, %218 : vector<8x8xf32>
    %c2_192 = arith.constant 2 : index
    %c0_193 = arith.constant 0 : index
    %c0_194 = arith.constant 0 : index
    %220 = vector.load %arg16[%c2_192, %c0_193, %c0_194] : memref<3x8x8xbf16, #tpu.memory_space<vmem>>, vector<1x8x8xbf16>
    %221 = vector.shape_cast %220 : vector<1x8x8xbf16> to vector<8x8xbf16>
    %cst_195 = arith.constant dense<0.000000e+00> : vector<32x8xf32>
    %222 = tpu.matmul %208, %221, %cst_195 {dimension_numbers = #tpu.dot_dimension_numbers<[1], [0], [0], [1], [0, 0, 1, 1], [], []>} : vector<32x8xbf16>, vector<8x8xbf16>, vector<32x8xf32> -> vector<32x8xf32>
    %223 = arith.truncf %222 : vector<32x8xf32> to vector<32x8xbf16>
    %224 = vector.extract_strided_slice %205 {offsets = [2, 0, 0], sizes = [1, 8, 32], strides = [1, 1, 1]} : vector<3x8x32xbf16> to vector<1x8x32xbf16>
    %225 = vector.shape_cast %224 : vector<1x8x32xbf16> to vector<8x32xbf16>
    %cst_196 = arith.constant dense<0.000000e+00> : vector<8x8xf32>
    %226 = tpu.matmul %225, %223, %cst_196 {dimension_numbers = #tpu.dot_dimension_numbers<[1], [0], [0], [1], [0, 0, 1, 1], [], []>} : vector<8x32xbf16>, vector<32x8xbf16>, vector<8x8xf32> -> vector<8x8xf32>
    %227 = arith.addf %219, %226 : vector<8x8xf32>
    %cst_197 = arith.constant 0.000000e+00 : f32
    %228 = vector.broadcast %cst_197 : f32 to vector<8x8xf32>
    %229 = arith.maximumf %227, %228 : vector<8x8xf32>
    %230 = arith.truncf %229 : vector<8x8xf32> to vector<8x8xbf16>
    %c1_198 = arith.constant 1 : index
    %c0_199 = arith.constant 0 : index
    %c0_200 = arith.constant 0 : index
    %231 = vector.load %arg18[%c1_198, %c0_199, %c0_200] : memref<2x32x8xbf16, #tpu.memory_space<vmem>>, vector<1x32x8xbf16>
    %232 = vector.shape_cast %231 : vector<1x32x8xbf16> to vector<32x8xbf16>
    %cst_201 = arith.constant dense<0.000000e+00> : vector<32x8xf32>
    %233 = tpu.matmul %232, %230, %cst_201 {dimension_numbers = #tpu.dot_dimension_numbers<[1], [0], [0], [1], [0, 0, 1, 1], [], []>} : vector<32x8xbf16>, vector<8x8xbf16>, vector<32x8xf32> -> vector<32x8xf32>
    %234 = arith.addf %203, %233 : vector<32x8xf32>
    %cst_202 = arith.constant 0.000000e+00 : f32
    %235 = vector.broadcast %cst_202 : f32 to vector<32x8xf32>
    %236 = arith.maximumf %234, %235 : vector<32x8xf32>
    %c0_203 = arith.constant 0 : index
    %c0_204 = arith.constant 0 : index
    %c0_205 = arith.constant 0 : index
    %237 = vector.load %arg19[%c0_203, %c0_204, %c0_205] : memref<1x32x8xf32, #tpu.memory_space<vmem>>, vector<1x32x8xf32>
    %238 = vector.shape_cast %237 : vector<1x32x8xf32> to vector<32x8xf32>
    %239 = vector.shape_cast %236 : vector<32x8xf32> to vector<1x32x8xf32>
    tpu.vector_store %arg19[%c0_203, %c0_204, %c0_205], %239 {strides = array<i32>} : memref<1x32x8xf32, #tpu.memory_space<vmem>>, vector<1x32x8xf32>,
    return
  }
  func.func @transform_0(%arg0: i32) -> (i32, i32, i32) {
    %c0_i32 = arith.constant 0 : i32
    %c0_i32_0 = arith.constant 0 : i32
    %c0_i32_1 = arith.constant 0 : i32
    return %arg0, %c0_i32, %c0_i32_0 : i32, i32, i32
  }
  func.func @transform_1(%arg0: i32) -> (i32, i32, i32) {
    %c0_i32 = arith.constant 0 : i32
    %c0_i32_0 = arith.constant 0 : i32
    %c0_i32_1 = arith.constant 0 : i32
    %c0_i32_2 = arith.constant 0 : i32
    return %c0_i32, %c0_i32_0, %c0_i32_1 : i32, i32, i32
  }
  func.func @transform_2(%arg0: i32) -> (i32, i32) {
    %c0_i32 = arith.constant 0 : i32
    %c0_i32_0 = arith.constant 0 : i32
    %c0_i32_1 = arith.constant 0 : i32
    return %c0_i32, %c0_i32_0 : i32, i32
  }
  func.func @transform_3(%arg0: i32) -> (i32, i32, i32) {
    %c0_i32 = arith.constant 0 : i32
    %c0_i32_0 = arith.constant 0 : i32
    %c0_i32_1 = arith.constant 0 : i32
    %c0_i32_2 = arith.constant 0 : i32
    return %c0_i32, %c0_i32_0, %c0_i32_1 : i32, i32, i32
  }
  func.func @transform_4(%arg0: i32) -> (i32, i32, i32) {
    %c0_i32 = arith.constant 0 : i32
    %c0_i32_0 = arith.constant 0 : i32
    %c0_i32_1 = arith.constant 0 : i32
    %c0_i32_2 = arith.constant 0 : i32
    return %c0_i32, %c0_i32_0, %c0_i32_1 : i32, i32, i32
  }
  func.func @transform_5(%arg0: i32) -> (i32, i32) {
    %c0_i32 = arith.constant 0 : i32
    %c0_i32_0 = arith.constant 0 : i32
    %c0_i32_1 = arith.constant 0 : i32
    return %c0_i32, %c0_i32_0 : i32, i32
  }
  func.func @transform_6(%arg0: i32) -> (i32, i32, i32) {
    %c0_i32 = arith.constant 0 : i32
    %c0_i32_0 = arith.constant 0 : i32
    %c0_i32_1 = arith.constant 0 : i32
    %c0_i32_2 = arith.constant 0 : i32
    return %c0_i32, %c0_i32_0, %c0_i32_1 : i32, i32, i32
  }
  func.func @transform_7(%arg0: i32) -> (i32, i32, i32) {
    %c0_i32 = arith.constant 0 : i32
    %c0_i32_0 = arith.constant 0 : i32
    %c0_i32_1 = arith.constant 0 : i32
    %c0_i32_2 = arith.constant 0 : i32
    return %c0_i32, %c0_i32_0, %c0_i32_1 : i32, i32, i32
  }
  func.func @transform_8(%arg0: i32) -> (i32, i32) {
    %c0_i32 = arith.constant 0 : i32
    %c0_i32_0 = arith.constant 0 : i32
    %c0_i32_1 = arith.constant 0 : i32
    return %c0_i32, %c0_i32_0 : i32, i32
  }
  func.func @transform_9(%arg0: i32) -> (i32, i32, i32) {
    %c0_i32 = arith.constant 0 : i32
    %c0_i32_0 = arith.constant 0 : i32
    %c0_i32_1 = arith.constant 0 : i32
    %c0_i32_2 = arith.constant 0 : i32
    return %c0_i32, %c0_i32_0, %c0_i32_1 : i32, i32, i32
  }
  func.func @transform_10(%arg0: i32) -> (i32, i32, i32) {
    %c0_i32 = arith.constant 0 : i32
    %c0_i32_0 = arith.constant 0 : i32
    %c0_i32_1 = arith.constant 0 : i32
    %c0_i32_2 = arith.constant 0 : i32
    return %c0_i32, %c0_i32_0, %c0_i32_1 : i32, i32, i32
  }
  func.func @transform_11(%arg0: i32) -> (i32, i32) {
    %c0_i32 = arith.constant 0 : i32
    %c0_i32_0 = arith.constant 0 : i32
    %c0_i32_1 = arith.constant 0 : i32
    return %c0_i32, %c0_i32_0 : i32, i32
  }
  func.func @transform_12(%arg0: i32) -> (i32, i32, i32) {
    %c0_i32 = arith.constant 0 : i32
    %c0_i32_0 = arith.constant 0 : i32
    %c0_i32_1 = arith.constant 0 : i32
    %c0_i32_2 = arith.constant 0 : i32
    return %c0_i32, %c0_i32_0, %c0_i32_1 : i32, i32, i32
  }
  func.func @transform_13(%arg0: i32) -> (i32, i32, i32) {
    %c0_i32 = arith.constant 0 : i32
    %c0_i32_0 = arith.constant 0 : i32
    %c0_i32_1 = arith.constant 0 : i32
    %c0_i32_2 = arith.constant 0 : i32
    return %c0_i32, %c0_i32_0, %c0_i32_1 : i32, i32, i32
  }
  func.func @transform_14(%arg0: i32) -> (i32, i32) {
    %c0_i32 = arith.constant 0 : i32
    %c0_i32_0 = arith.constant 0 : i32
    %c0_i32_1 = arith.constant 0 : i32
    return %c0_i32, %c0_i32_0 : i32, i32
  }
  func.func @transform_15(%arg0: i32) -> (i32, i32, i32) {
    %c0_i32 = arith.constant 0 : i32
    %c0_i32_0 = arith.constant 0 : i32
    %c0_i32_1 = arith.constant 0 : i32
    %c0_i32_2 = arith.constant 0 : i32
    return %c0_i32, %c0_i32_0, %c0_i32_1 : i32, i32, i32
  }
  func.func @transform_16(%arg0: i32) -> (i32, i32, i32, i32) {
    %c0_i32 = arith.constant 0 : i32
    %c0_i32_0 = arith.constant 0 : i32
    %c0_i32_1 = arith.constant 0 : i32
    %c0_i32_2 = arith.constant 0 : i32
    %c0_i32_3 = arith.constant 0 : i32
    return %c0_i32, %c0_i32_0, %c0_i32_1, %c0_i32_2 : i32, i32, i32, i32
  }
  func.func @transform_17(%arg0: i32) -> (i32, i32, i32) {
    %c0_i32 = arith.constant 0 : i32
    %c0_i32_0 = arith.constant 0 : i32
    %c0_i32_1 = arith.constant 0 : i32
    %c0_i32_2 = arith.constant 0 : i32
    return %c0_i32, %c0_i32_0, %c0_i32_1 : i32, i32, i32
  }
  func.func @transform_18(%arg0: i32) -> (i32, i32, i32) {
    %c0_i32 = arith.constant 0 : i32
    %c0_i32_0 = arith.constant 0 : i32
    %c0_i32_1 = arith.constant 0 : i32
    return %arg0, %c0_i32, %c0_i32_0 : i32, i32, i32
  }
}

</mosaic_0001>

<llo_original>
// kernel: tpu_custom_call.1
$region0: #{tpu_custom_call.1}
  #allocation0 [shape = 'u32[]', space=smem, size = 0x4, offset = 0x4, fixed_abs, tag = 'smem constant byte address 0x4 - core index']
  #allocation1 [shape = 'u32[144,128]{1,0:T(1,128)}', space=vmem, size = 0x12000, scoped, tag = 'internal scratch']
  %s0 = inlined_call_operand.vmem [shape: f32[1,4,128], index: 0, kind: input, shape index: {}]
  %s1 = inlined_call_operand.vmem [shape: bf16[4,16,4], index: 1, kind: input, shape index: {}]
  %s2 = inlined_call_operand.vmem [shape: f32[16,1], index: 2, kind: input, shape index: {}]
  %s3 = inlined_call_operand.vmem [shape: bf16[4,128,64], index: 3, kind: input, shape index: {}]
  %s4 = inlined_call_operand.vmem [shape: bf16[4,32,16], index: 4, kind: input, shape index: {}]
  %s5 = inlined_call_operand.vmem [shape: f32[32,1], index: 5, kind: input, shape index: {}]
  %s6 = inlined_call_operand.vmem [shape: bf16[4,64,32], index: 6, kind: input, shape index: {}]
  %s7 = inlined_call_operand.vmem [shape: bf16[4,32,32], index: 7, kind: input, shape index: {}]
  %s8 = inlined_call_operand.vmem [shape: f32[32,1], index: 8, kind: input, shape index: {}]
  %s9 = inlined_call_operand.vmem [shape: bf16[4,32,16], index: 9, kind: input, shape index: {}]
  %s10 = inlined_call_operand.vmem [shape: bf16[4,32,32], index: 10, kind: input, shape index: {}]
  %s11 = inlined_call_operand.vmem [shape: f32[32,1], index: 11, kind: input, shape index: {}]
  %s12 = inlined_call_operand.vmem [shape: bf16[4,16,8], index: 12, kind: input, shape index: {}]
  %s13 = inlined_call_operand.vmem [shape: bf16[3,32,32], index: 13, kind: input, shape index: {}]
  %s14 = inlined_call_operand.vmem [shape: f32[32,1], index: 14, kind: input, shape index: {}]
  %s15 = inlined_call_operand.vmem [shape: bf16[3,8,8], index: 15, kind: input, shape index: {}]
  %s16 = inlined_call_operand.vmem [shape: bf16[2,3,8,32], index: 16, kind: input, shape index: {}]
  %s17 = inlined_call_operand.vmem [shape: bf16[2,32,8], index: 17, kind: input, shape index: {}]
  %s18 = inlined_call_operand.vmem [shape: f32[1,32,8], index: 18, kind: output, shape index: {}]
  %s19 = sld [smem:[#allocation0]]
  $region82: #{tpu_custom_call.1} parent=0
    _
  %s21 = ssub.s32 1, %s19
  %s22 = scalar_select 0, %s21, %s19
  // Predicated region
  $region2: #{tpu_custom_call.1} parent=0 // pred_check
    _
  $region3: #{tpu_custom_call.1} parent=0 // pred_check_branch
    %24 = sbr.rel (0) target = $region5
  $region4: #{tpu_custom_call.1} parent=0 // pred_region
    _
  $region5: #{tpu_custom_call.1} parent=0 // pred_fallthru
    _
  // Predicated region
  $region6: #{tpu_custom_call.1} parent=0 // pred_check
    _
  $region7: #{tpu_custom_call.1} parent=0 // pred_check_branch
    %26 = sbr.rel (0) target = $region9
  $region8: #{tpu_custom_call.1} parent=0 // pred_region
    _
  $region9: #{tpu_custom_call.1} parent=0 // pred_fallthru
    _
  // Predicated region
  $region10: #{tpu_custom_call.1} parent=0 // pred_check
    _
  $region11: #{tpu_custom_call.1} parent=0 // pred_check_branch
    %28 = sbr.rel (0) target = $region13
  $region12: #{tpu_custom_call.1} parent=0 // pred_region
    _
  $region13: #{tpu_custom_call.1} parent=0 // pred_fallthru
    _
  // Predicated region
  $region14: #{tpu_custom_call.1} parent=0 // pred_check
    _
  $region15: #{tpu_custom_call.1} parent=0 // pred_check_branch
    %30 = sbr.rel (0) target = $region17
  $region16: #{tpu_custom_call.1} parent=0 // pred_region
    _
  $region17: #{tpu_custom_call.1} parent=0 // pred_fallthru
    _
  // Predicated region
  $region18: #{tpu_custom_call.1} parent=0 // pred_check
    _
  $region19: #{tpu_custom_call.1} parent=0 // pred_check_branch
    %32 = sbr.rel (0) target = $region21
  $region20: #{tpu_custom_call.1} parent=0 // pred_region
    _
  $region21: #{tpu_custom_call.1} parent=0 // pred_fallthru
    _
  // Predicated region
  $region22: #{tpu_custom_call.1} parent=0 // pred_check
    _
  $region23: #{tpu_custom_call.1} parent=0 // pred_check_branch
    %34 = sbr.rel (0) target = $region25
  $region24: #{tpu_custom_call.1} parent=0 // pred_region
    _
  $region25: #{tpu_custom_call.1} parent=0 // pred_fallthru
    _
  // Predicated region
  $region26: #{tpu_custom_call.1} parent=0 // pred_check
    _
  $region27: #{tpu_custom_call.1} parent=0 // pred_check_branch
    %36 = sbr.rel (0) target = $region29
  $region28: #{tpu_custom_call.1} parent=0 // pred_region
    _
  $region29: #{tpu_custom_call.1} parent=0 // pred_fallthru
    _
  // Predicated region
  $region30: #{tpu_custom_call.1} parent=0 // pred_check
    _
  $region31: #{tpu_custom_call.1} parent=0 // pred_check_branch
    %38 = sbr.rel (0) target = $region33
  $region32: #{tpu_custom_call.1} parent=0 // pred_region
    _
  $region33: #{tpu_custom_call.1} parent=0 // pred_fallthru
    _
  // Predicated region
  $region34: #{tpu_custom_call.1} parent=0 // pred_check
    _
  $region35: #{tpu_custom_call.1} parent=0 // pred_check_branch
    %40 = sbr.rel (0) target = $region37
  $region36: #{tpu_custom_call.1} parent=0 // pred_region
    _
  $region37: #{tpu_custom_call.1} parent=0 // pred_fallthru
    _
  // Predicated region
  $region38: #{tpu_custom_call.1} parent=0 // pred_check
    _
  $region39: #{tpu_custom_call.1} parent=0 // pred_check_branch
    %42 = sbr.rel (0) target = $region41
  $region40: #{tpu_custom_call.1} parent=0 // pred_region
    _
  $region41: #{tpu_custom_call.1} parent=0 // pred_fallthru
    _
  // Predicated region
  $region42: #{tpu_custom_call.1} parent=0 // pred_check
    _
  $region43: #{tpu_custom_call.1} parent=0 // pred_check_branch
    %44 = sbr.rel (0) target = $region45
  $region44: #{tpu_custom_call.1} parent=0 // pred_region
    _
  $region45: #{tpu_custom_call.1} parent=0 // pred_fallthru
    _
  // Predicated region
  $region46: #{tpu_custom_call.1} parent=0 // pred_check
    _
  $region47: #{tpu_custom_call.1} parent=0 // pred_check_branch
    %46 = sbr.rel (0) target = $region49
  $region48: #{tpu_custom_call.1} parent=0 // pred_region
    _
  $region49: #{tpu_custom_call.1} parent=0 // pred_fallthru
    _
  // Predicated region
  $region50: #{tpu_custom_call.1} parent=0 // pred_check
    _
  $region51: #{tpu_custom_call.1} parent=0 // pred_check_branch
    %48 = sbr.rel (0) target = $region53
  $region52: #{tpu_custom_call.1} parent=0 // pred_region
    _
  $region53: #{tpu_custom_call.1} parent=0 // pred_fallthru
    _
  // Predicated region
  $region54: #{tpu_custom_call.1} parent=0 // pred_check
    _
  $region55: #{tpu_custom_call.1} parent=0 // pred_check_branch
    %50 = sbr.rel (0) target = $region57
  $region56: #{tpu_custom_call.1} parent=0 // pred_region
    _
  $region57: #{tpu_custom_call.1} parent=0 // pred_fallthru
    _
  // Predicated region
  $region58: #{tpu_custom_call.1} parent=0 // pred_check
    _
  $region59: #{tpu_custom_call.1} parent=0 // pred_check_branch
    %52 = sbr.rel (0) target = $region61
  $region60: #{tpu_custom_call.1} parent=0 // pred_region
    _
  $region61: #{tpu_custom_call.1} parent=0 // pred_fallthru
    _
  // Predicated region
  $region62: #{tpu_custom_call.1} parent=0 // pred_check
    _
  $region63: #{tpu_custom_call.1} parent=0 // pred_check_branch
    %54 = sbr.rel (0) target = $region65
  $region64: #{tpu_custom_call.1} parent=0 // pred_region
    _
  $region65: #{tpu_custom_call.1} parent=0 // pred_fallthru
    _
  // Predicated region
  $region66: #{tpu_custom_call.1} parent=0 // pred_check
    _
  $region67: #{tpu_custom_call.1} parent=0 // pred_check_branch
    %56 = sbr.rel (0) target = $region69
  $region68: #{tpu_custom_call.1} parent=0 // pred_region
    _
  $region69: #{tpu_custom_call.1} parent=0 // pred_fallthru
    _
  // Predicated region
  $region70: #{tpu_custom_call.1} parent=0 // pred_check
    _
  $region71: #{tpu_custom_call.1} parent=0 // pred_check_branch
    %58 = sbr.rel (0) target = $region73
  $region72: #{tpu_custom_call.1} parent=0 // pred_region
    _
  $region73: #{tpu_custom_call.1} parent=0 // pred_fallthru
    _
  %v60 = vld [vmem:[%s0] sm:$0xf]
  %v61 = vpack.c.bf16 %v60, %v60
  %v62 = vld [vmem:[%s3] sm:$0xf]
  %v63 = vld [vmem:[%s3 + $0x4] sm:$0xf]
  %v64 = vld [vmem:[%s3 + $0x8] sm:$0xf]
  %v65 = vld [vmem:[%s3 + $0xc] sm:$0xf]
  %v66 = vld [vmem:[%s3 + $0x10] sm:$0xf]
  %v67 = vld [vmem:[%s3 + $0x14] sm:$0xf]
  %v68 = vld [vmem:[%s3 + $0x18] sm:$0xf]
  %v69 = vld [vmem:[%s3 + $0x1c] sm:$0xf]
  %v70 = vld [vmem:[%s3 + $0x20] sm:$0xf]
  %v71 = vld [vmem:[%s3 + $0x24] sm:$0xf]
  %v72 = vld [vmem:[%s3 + $0x28] sm:$0xf]
  %v73 = vld [vmem:[%s3 + $0x2c] sm:$0xf]
  %v74 = vld [vmem:[%s3 + $0x30] sm:$0xf]
  %v75 = vld [vmem:[%s3 + $0x34] sm:$0xf]
  %v76 = vld [vmem:[%s3 + $0x38] sm:$0xf]
  %v77 = vld [vmem:[%s3 + $0x3c] sm:$0xf]
  %v94 = vunpack.c.l.b16 %v62
  %v95 = vunpack.c.l.b16 %v63
  %v96 = vunpack.c.l.b16 %v64
  %v97 = vunpack.c.l.b16 %v65
  %v98 = vunpack.c.l.b16 %v66
  %v99 = vunpack.c.l.b16 %v67
  %v100 = vunpack.c.l.b16 %v68
  %v101 = vunpack.c.l.b16 %v69
  %v102 = vunpack.c.l.b16 %v70
  %v103 = vunpack.c.l.b16 %v71
  %v104 = vunpack.c.l.b16 %v72
  %v105 = vunpack.c.l.b16 %v73
  %v106 = vunpack.c.l.b16 %v74
  %v107 = vunpack.c.l.b16 %v75
  %v108 = vunpack.c.l.b16 %v76
  %v109 = vunpack.c.l.b16 %v77
  %v110 = vpack.c.b16 %v95, %v94
  %v111 = vpack.c.b16 %v97, %v96
  %v112 = vpack.c.b16 %v99, %v98
  %v113 = vpack.c.b16 %v101, %v100
  %v114 = vpack.c.b16 %v103, %v102
  %v115 = vpack.c.b16 %v105, %v104
  %v116 = vpack.c.b16 %v107, %v106
  %v117 = vpack.c.b16 %v109, %v108
  %126 = vmatprep.subr.bf16.mxu0 0
  %127 = vmatpush1.bf16.msra.mxu0 %v117
  %128 = vmatprep.subr.bf16.mxu0 0
  %129 = vmatpush1.bf16.msra.mxu0 %v116
  %130 = vmatprep.subr.bf16.mxu0 0
  %131 = vmatpush1.bf16.msra.mxu0 %v115
  %132 = vmatprep.subr.bf16.mxu0 0
  %133 = vmatpush1.bf16.msra.mxu0 %v114
  %134 = vmatprep.subr.bf16.mxu0 0
  %135 = vmatpush1.bf16.msra.mxu0 %v113
  %136 = vmatprep.subr.bf16.mxu0 0
  %137 = vmatpush1.bf16.msra.mxu0 %v112
  %138 = vmatprep.subr.bf16.mxu0 0
  %139 = vmatpush1.bf16.msra.mxu0 %v111
  %140 = vmatprep.subr.bf16.mxu0 0
  %141 = vmatpush1.bf16.msra.mxu0 %v110
  %142 = vmatprep.subr.bf16.mxu0 0
  %143 = vmatpush2.bf16.msra.mxu0 0
  %144 = vmatprep.subr.bf16.mxu0 0
  %145 = vmatpush2.bf16.msra.mxu0 0
  %146 = vmatprep.subr.bf16.mxu0 0
  %147 = vmatpush2.bf16.msra.mxu0 0
  %148 = vmatprep.subr.bf16.mxu0 0
  %149 = vmatpush2.bf16.msra.mxu0 0
  %150 = vmatprep.subr.bf16.mxu0 0
  %151 = vmatpush2.bf16.msra.mxu0 0
  %152 = vmatprep.subr.bf16.mxu0 0
  %153 = vmatpush2.bf16.msra.mxu0 0
  %154 = vmatprep.subr.bf16.mxu0 0
  %155 = vmatpush2.bf16.msra.mxu0 0
  %156 = vmatprep.subr.bf16.mxu0 0
  %157 = vmatpush2.bf16.msra.mxu0 0
  %158 = vmatprep.mubr.bf16.mxu0 0
  %159 = vmatmul.mubr.bf16.gmra.mxu0 %v61
  %v160 = vpop.f32.mrf.mxu0
  %v161 = vadd.f32 0.0, %v160
  %v162 = vpop.f32.mrf.mxu0
  %v163 = vpop.f32.mrf.mxu0
  %v164 = vpop.f32.mrf.mxu0
  %165 = vdwg.mxu0
  %v166 = vpack.c.bf16 %v161, %v161
  %v167 = vld [vmem:[%s1] sm:$0xf]
  %v168 = vld [vmem:[%s1 + $0x4] sm:$0xf]
  %s169 = scalar_lea.vmem %s3, 64
  %v170 = vld [vmem:[%s169] sm:$0xf]
  %v171 = vld [vmem:[%s169 + $0x4] sm:$0xf]
  %v172 = vld [vmem:[%s169 + $0x8] sm:$0xf]
  %v173 = vld [vmem:[%s169 + $0xc] sm:$0xf]
  %v174 = vld [vmem:[%s169 + $0x10] sm:$0xf]
  %v175 = vld [vmem:[%s169 + $0x14] sm:$0xf]
  %v176 = vld [vmem:[%s169 + $0x18] sm:$0xf]
  %v177 = vld [vmem:[%s169 + $0x1c] sm:$0xf]
  %v178 = vld [vmem:[%s169 + $0x20] sm:$0xf]
  %v179 = vld [vmem:[%s169 + $0x24] sm:$0xf]
  %v180 = vld [vmem:[%s169 + $0x28] sm:$0xf]
  %v181 = vld [vmem:[%s169 + $0x2c] sm:$0xf]
  %v182 = vld [vmem:[%s169 + $0x30] sm:$0xf]
  %v183 = vld [vmem:[%s169 + $0x34] sm:$0xf]
  %v184 = vld [vmem:[%s169 + $0x38] sm:$0xf]
  %v185 = vld [vmem:[%s169 + $0x3c] sm:$0xf]
  %v202 = vunpack.c.l.b16 %v170
  %v203 = vunpack.c.l.b16 %v171
  %v204 = vunpack.c.l.b16 %v172
  %v205 = vunpack.c.l.b16 %v173
  %v206 = vunpack.c.l.b16 %v174
  %v207 = vunpack.c.l.b16 %v175
  %v208 = vunpack.c.l.b16 %v176
  %v209 = vunpack.c.l.b16 %v177
  %v210 = vunpack.c.l.b16 %v178
  %v211 = vunpack.c.l.b16 %v179
  %v212 = vunpack.c.l.b16 %v180
  %v213 = vunpack.c.l.b16 %v181
  %v214 = vunpack.c.l.b16 %v182
  %v215 = vunpack.c.l.b16 %v183
  %v216 = vunpack.c.l.b16 %v184
  %v217 = vunpack.c.l.b16 %v185
  %v218 = vpack.c.b16 %v203, %v202
  %v219 = vpack.c.b16 %v205, %v204
  %v220 = vpack.c.b16 %v207, %v206
  %v221 = vpack.c.b16 %v209, %v208
  %v222 = vpack.c.b16 %v211, %v210
  %v223 = vpack.c.b16 %v213, %v212
  %v224 = vpack.c.b16 %v215, %v214
  %v225 = vpack.c.b16 %v217, %v216
  %234 = vmatprep.subr.bf16.mxu0 0
  %235 = vmatpush1.bf16.msra.mxu0 %v225
  %236 = vmatprep.subr.bf16.mxu0 0
  %237 = vmatpush1.bf16.msra.mxu0 %v224
  %238 = vmatprep.subr.bf16.mxu0 0
  %239 = vmatpush1.bf16.msra.mxu0 %v223
  %240 = vmatprep.subr.bf16.mxu0 0
  %241 = vmatpush1.bf16.msra.mxu0 %v222
  %242 = vmatprep.subr.bf16.mxu0 0
  %243 = vmatpush1.bf16.msra.mxu0 %v221
  %244 = vmatprep.subr.bf16.mxu0 0
  %245 = vmatpush1.bf16.msra.mxu0 %v220
  %246 = vmatprep.subr.bf16.mxu0 0
  %247 = vmatpush1.bf16.msra.mxu0 %v219
  %248 = vmatprep.subr.bf16.mxu0 0
  %249 = vmatpush1.bf16.msra.mxu0 %v218
  %250 = vmatprep.subr.bf16.mxu0 0
  %251 = vmatpush2.bf16.msra.mxu0 0
  %252 = vmatprep.subr.bf16.mxu0 0
  %253 = vmatpush2.bf16.msra.mxu0 0
  %254 = vmatprep.subr.bf16.mxu0 0
  %255 = vmatpush2.bf16.msra.mxu0 0
  %256 = vmatprep.subr.bf16.mxu0 0
  %257 = vmatpush2.bf16.msra.mxu0 0
  %258 = vmatprep.subr.bf16.mxu0 0
  %259 = vmatpush2.bf16.msra.mxu0 0
  %260 = vmatprep.subr.bf16.mxu0 0
  %261 = vmatpush2.bf16.msra.mxu0 0
  %262 = vmatprep.subr.bf16.mxu0 0
  %263 = vmatpush2.bf16.msra.mxu0 0
  %264 = vmatprep.subr.bf16.mxu0 0
  %265 = vmatpush2.bf16.msra.mxu0 0
  %266 = vmatprep.mubr.bf16.mxu0 0
  %267 = vmatmul.mubr.bf16.gmra.mxu0 %v61
  %v268 = vpop.f32.mrf.mxu0
  %v269 = vadd.f32 0.0, %v268
  %v270 = vpop.f32.mrf.mxu0
  %v271 = vpop.f32.mrf.mxu0
  %v272 = vpop.f32.mrf.mxu0
  %273 = vdwg.mxu0
  %v274 = vpack.c.bf16 %v269, %v269
  %s275 = scalar_lea.vmem %s1, 8
  %v276 = vld [vmem:[%s275] sm:$0xf]
  %v277 = vld [vmem:[%s275 + $0x4] sm:$0xf]
  %v280 = vunpack.c.l.b16 %v276
  %v281 = vunpack.c.l.b16 %v277
  %v282 = vpack.c.b16 %v281, %v280
  %vm283 = vcmask 31744
  %v285 = vsel %vm283, %v282, 0
  %vm287 = vcmask 1041408
  %v289 = vsel %vm287, %v274, 0
  %291 = vmatprep.subr.bf16.mxu0 0
  %292 = vmatpush1.bf16.msra.mxu0 0
  %293 = vmatprep.subr.bf16.mxu0 0
  %294 = vmatpush1.bf16.msra.mxu0 0
  %295 = vmatprep.subr.bf16.mxu0 0
  %296 = vmatpush1.bf16.msra.mxu0 0
  %297 = vmatprep.subr.bf16.mxu0 0
  %298 = vmatpush1.bf16.msra.mxu0 0
  %299 = vmatprep.subr.bf16.mxu0 0
  %300 = vmatpush1.bf16.msra.mxu0 0
  %301 = vmatprep.subr.bf16.mxu0 0
  %302 = vmatpush1.bf16.msra.mxu0 0
  %303 = vmatprep.subr.bf16.mxu0 0
  %304 = vmatpush1.bf16.msra.mxu0 0
  %305 = vmatprep.subr.bf16.mxu0 0
  %306 = vmatpush1.bf16.msra.mxu0 %v289
  %307 = vmatprep.subr.bf16.mxu0 0
  %308 = vmatpush2.bf16.msra.mxu0 0
  %309 = vmatprep.subr.bf16.mxu0 0
  %310 = vmatpush2.bf16.msra.mxu0 0
  %311 = vmatprep.subr.bf16.mxu0 0
  %312 = vmatpush2.bf16.msra.mxu0 0
  %313 = vmatprep.subr.bf16.mxu0 0
  %314 = vmatpush2.bf16.msra.mxu0 0
  %315 = vmatprep.subr.bf16.mxu0 0
  %316 = vmatpush2.bf16.msra.mxu0 0
  %317 = vmatprep.subr.bf16.mxu0 0
  %318 = vmatpush2.bf16.msra.mxu0 0
  %319 = vmatprep.subr.bf16.mxu0 0
  %320 = vmatpush2.bf16.msra.mxu0 0
  %321 = vmatprep.subr.bf16.mxu0 0
  %322 = vmatpush2.bf16.msra.mxu0 0
  %323 = vmatprep.mubr.bf16.mxu0 0
  %324 = vmatmul.mubr.bf16.gmra.mxu0 %v285
  %v325 = vpop.f32.mrf.mxu0
  %v326 = vadd.f32 0.0, %v325
  %v327 = vpop.f32.mrf.mxu0
  %v328 = vpop.f32.mrf.mxu0
  %v329 = vadd.f32 0.0, %v328
  %v330 = vpop.f32.mrf.mxu0
  %331 = vdwg.mxu0
  %v334 = vunpack.c.l.b16 %v167
  %v335 = vunpack.c.l.b16 %v168
  %v336 = vpack.c.b16 %v335, %v334
  %v338 = vsel %vm283, %v336, 0
  %v341 = vsel %vm287, %v166, 0
  %343 = vmatprep.subr.bf16.mxu0 0
  %344 = vmatpush1.bf16.msra.mxu0 0
  %345 = vmatprep.subr.bf16.mxu0 0
  %346 = vmatpush1.bf16.msra.mxu0 0
  %347 = vmatprep.subr.bf16.mxu0 0
  %348 = vmatpush1.bf16.msra.mxu0 0
  %349 = vmatprep.subr.bf16.mxu0 0
  %350 = vmatpush1.bf16.msra.mxu0 0
  %351 = vmatprep.subr.bf16.mxu0 0
  %352 = vmatpush1.bf16.msra.mxu0 0
  %353 = vmatprep.subr.bf16.mxu0 0
  %354 = vmatpush1.bf16.msra.mxu0 0
  %355 = vmatprep.subr.bf16.mxu0 0
  %356 = vmatpush1.bf16.msra.mxu0 0
  %357 = vmatprep.subr.bf16.mxu0 0
  %358 = vmatpush1.bf16.msra.mxu0 %v341
  %359 = vmatprep.subr.bf16.mxu0 0
  %360 = vmatpush2.bf16.msra.mxu0 0
  %361 = vmatprep.subr.bf16.mxu0 0
  %362 = vmatpush2.bf16.msra.mxu0 0
  %363 = vmatprep.subr.bf16.mxu0 0
  %364 = vmatpush2.bf16.msra.mxu0 0
  %365 = vmatprep.subr.bf16.mxu0 0
  %366 = vmatpush2.bf16.msra.mxu0 0
  %367 = vmatprep.subr.bf16.mxu0 0
  %368 = vmatpush2.bf16.msra.mxu0 0
  %369 = vmatprep.subr.bf16.mxu0 0
  %370 = vmatpush2.bf16.msra.mxu0 0
  %371 = vmatprep.subr.bf16.mxu0 0
  %372 = vmatpush2.bf16.msra.mxu0 0
  %373 = vmatprep.subr.bf16.mxu0 0
  %374 = vmatpush2.bf16.msra.mxu0 0
  %375 = vmatprep.mubr.bf16.mxu0 0
  %376 = vmatmul.mubr.bf16.gmra.mxu0 %v338
  %v377 = vpop.f32.mrf.mxu0
  %v378 = vadd.f32 %v326, %v377
  %v379 = vpop.f32.mrf.mxu0
  %v380 = vpop.f32.mrf.mxu0
  %v381 = vadd.f32 %v329, %v380
  %v382 = vpop.f32.mrf.mxu0
  %383 = vdwg.mxu0
  %s384 = scalar_lea.vmem %s3, 128
  %v385 = vld [vmem:[%s384] sm:$0xf]
  %v386 = vld [vmem:[%s384 + $0x4] sm:$0xf]
  %v387 = vld [vmem:[%s384 + $0x8] sm:$0xf]
  %v388 = vld [vmem:[%s384 + $0xc] sm:$0xf]
  %v389 = vld [vmem:[%s384 + $0x10] sm:$0xf]
  %v390 = vld [vmem:[%s384 + $0x14] sm:$0xf]
  %v391 = vld [vmem:[%s384 + $0x18] sm:$0xf]
  %v392 = vld [vmem:[%s384 + $0x1c] sm:$0xf]
  %v393 = vld [vmem:[%s384 + $0x20] sm:$0xf]
  %v394 = vld [vmem:[%s384 + $0x24] sm:$0xf]
  %v395 = vld [vmem:[%s384 + $0x28] sm:$0xf]
  %v396 = vld [vmem:[%s384 + $0x2c] sm:$0xf]
  %v397 = vld [vmem:[%s384 + $0x30] sm:$0xf]
  %v398 = vld [vmem:[%s384 + $0x34] sm:$0xf]
  %v399 = vld [vmem:[%s384 + $0x38] sm:$0xf]
  %v400 = vld [vmem:[%s384 + $0x3c] sm:$0xf]
  %v417 = vunpack.c.l.b16 %v385
  %v418 = vunpack.c.l.b16 %v386
  %v419 = vunpack.c.l.b16 %v387
  %v420 = vunpack.c.l.b16 %v388
  %v421 = vunpack.c.l.b16 %v389
  %v422 = vunpack.c.l.b16 %v390
  %v423 = vunpack.c.l.b16 %v391
  %v424 = vunpack.c.l.b16 %v392
  %v425 = vunpack.c.l.b16 %v393
  %v426 = vunpack.c.l.b16 %v394
  %v427 = vunpack.c.l.b16 %v395
  %v428 = vunpack.c.l.b16 %v396
  %v429 = vunpack.c.l.b16 %v397
  %v430 = vunpack.c.l.b16 %v398
  %v431 = vunpack.c.l.b16 %v399
  %v432 = vunpack.c.l.b16 %v400
  %v433 = vpack.c.b16 %v418, %v417
  %v434 = vpack.c.b16 %v420, %v419
  %v435 = vpack.c.b16 %v422, %v421
  %v436 = vpack.c.b16 %v424, %v423
  %v437 = vpack.c.b16 %v426, %v425
  %v438 = vpack.c.b16 %v428, %v427
  %v439 = vpack.c.b16 %v430, %v429
  %v440 = vpack.c.b16 %v432, %v431
  %449 = vmatprep.subr.bf16.mxu0 0
  %450 = vmatpush1.bf16.msra.mxu0 %v440
  %451 = vmatprep.subr.bf16.mxu0 0
  %452 = vmatpush1.bf16.msra.mxu0 %v439
  %453 = vmatprep.subr.bf16.mxu0 0
  %454 = vmatpush1.bf16.msra.mxu0 %v438
  %455 = vmatprep.subr.bf16.mxu0 0
  %456 = vmatpush1.bf16.msra.mxu0 %v437
  %457 = vmatprep.subr.bf16.mxu0 0
  %458 = vmatpush1.bf16.msra.mxu0 %v436
  %459 = vmatprep.subr.bf16.mxu0 0
  %460 = vmatpush1.bf16.msra.mxu0 %v435
  %461 = vmatprep.subr.bf16.mxu0 0
  %462 = vmatpush1.bf16.msra.mxu0 %v434
  %463 = vmatprep.subr.bf16.mxu0 0
  %464 = vmatpush1.bf16.msra.mxu0 %v433
  %465 = vmatprep.subr.bf16.mxu0 0
  %466 = vmatpush2.bf16.msra.mxu0 0
  %467 = vmatprep.subr.bf16.mxu0 0
  %468 = vmatpush2.bf16.msra.mxu0 0
  %469 = vmatprep.subr.bf16.mxu0 0
  %470 = vmatpush2.bf16.msra.mxu0 0
  %471 = vmatprep.subr.bf16.mxu0 0
  %472 = vmatpush2.bf16.msra.mxu0 0
  %473 = vmatprep.subr.bf16.mxu0 0
  %474 = vmatpush2.bf16.msra.mxu0 0
  %475 = vmatprep.subr.bf16.mxu0 0
  %476 = vmatpush2.bf16.msra.mxu0 0
  %477 = vmatprep.subr.bf16.mxu0 0
  %478 = vmatpush2.bf16.msra.mxu0 0
  %479 = vmatprep.subr.bf16.mxu0 0
  %480 = vmatpush2.bf16.msra.mxu0 0
  %481 = vmatprep.mubr.bf16.mxu0 0
  %482 = vmatmul.mubr.bf16.gmra.mxu0 %v61
  %v483 = vpop.f32.mrf.mxu0
  %v484 = vadd.f32 0.0, %v483
  %v485 = vpop.f32.mrf.mxu0
  %v486 = vpop.f32.mrf.mxu0
  %v487 = vpop.f32.mrf.mxu0
  %488 = vdwg.mxu0
  %v489 = vpack.c.bf16 %v484, %v484
  %s490 = scalar_lea.vmem %s1, 16
  %v491 = vld [vmem:[%s490] sm:$0xf]
  %v492 = vld [vmem:[%s490 + $0x4] sm:$0xf]
  %v495 = vunpack.c.l.b16 %v491
  %v496 = vunpack.c.l.b16 %v492
  %v497 = vpack.c.b16 %v496, %v495
  %v499 = vsel %vm283, %v497, 0
  %v502 = vsel %vm287, %v489, 0
  %504 = vmatprep.subr.bf16.mxu0 0
  %505 = vmatpush1.bf16.msra.mxu0 0
  %506 = vmatprep.subr.bf16.mxu0 0
  %507 = vmatpush1.bf16.msra.mxu0 0
  %508 = vmatprep.subr.bf16.mxu0 0
  %509 = vmatpush1.bf16.msra.mxu0 0
  %510 = vmatprep.subr.bf16.mxu0 0
  %511 = vmatpush1.bf16.msra.mxu0 0
  %512 = vmatprep.subr.bf16.mxu0 0
  %513 = vmatpush1.bf16.msra.mxu0 0
  %514 = vmatprep.subr.bf16.mxu0 0
  %515 = vmatpush1.bf16.msra.mxu0 0
  %516 = vmatprep.subr.bf16.mxu0 0
  %517 = vmatpush1.bf16.msra.mxu0 0
  %518 = vmatprep.subr.bf16.mxu0 0
  %519 = vmatpush1.bf16.msra.mxu0 %v502
  %520 = vmatprep.subr.bf16.mxu0 0
  %521 = vmatpush2.bf16.msra.mxu0 0
  %522 = vmatprep.subr.bf16.mxu0 0
  %523 = vmatpush2.bf16.msra.mxu0 0
  %524 = vmatprep.subr.bf16.mxu0 0
  %525 = vmatpush2.bf16.msra.mxu0 0
  %526 = vmatprep.subr.bf16.mxu0 0
  %527 = vmatpush2.bf16.msra.mxu0 0
  %528 = vmatprep.subr.bf16.mxu0 0
  %529 = vmatpush2.bf16.msra.mxu0 0
  %530 = vmatprep.subr.bf16.mxu0 0
  %531 = vmatpush2.bf16.msra.mxu0 0
  %532 = vmatprep.subr.bf16.mxu0 0
  %533 = vmatpush2.bf16.msra.mxu0 0
  %534 = vmatprep.subr.bf16.mxu0 0
  %535 = vmatpush2.bf16.msra.mxu0 0
  %536 = vmatprep.mubr.bf16.mxu0 0
  %537 = vmatmul.mubr.bf16.gmra.mxu0 %v499
  %v538 = vpop.f32.mrf.mxu0
  %v539 = vadd.f32 0.0, %v538
  %v540 = vpop.f32.mrf.mxu0
  %v541 = vpop.f32.mrf.mxu0
  %v542 = vadd.f32 0.0, %v541
  %v543 = vpop.f32.mrf.mxu0
  %544 = vdwg.mxu0
  %v545 = vadd.f32 %v378, %v539
  %v546 = vadd.f32 %v381, %v542
  %s547 = scalar_lea.vmem %s3, 192
  %v548 = vld [vmem:[%s547] sm:$0xf]
  %v549 = vld [vmem:[%s547 + $0x4] sm:$0xf]
  %v550 = vld [vmem:[%s547 + $0x8] sm:$0xf]
  %v551 = vld [vmem:[%s547 + $0xc] sm:$0xf]
  %v552 = vld [vmem:[%s547 + $0x10] sm:$0xf]
  %v553 = vld [vmem:[%s547 + $0x14] sm:$0xf]
  %v554 = vld [vmem:[%s547 + $0x18] sm:$0xf]
  %v555 = vld [vmem:[%s547 + $0x1c] sm:$0xf]
  %v556 = vld [vmem:[%s547 + $0x20] sm:$0xf]
  %v557 = vld [vmem:[%s547 + $0x24] sm:$0xf]
  %v558 = vld [vmem:[%s547 + $0x28] sm:$0xf]
  %v559 = vld [vmem:[%s547 + $0x2c] sm:$0xf]
  %v560 = vld [vmem:[%s547 + $0x30] sm:$0xf]
  %v561 = vld [vmem:[%s547 + $0x34] sm:$0xf]
  %v562 = vld [vmem:[%s547 + $0x38] sm:$0xf]
  %v563 = vld [vmem:[%s547 + $0x3c] sm:$0xf]
  %v580 = vunpack.c.l.b16 %v548
  %v581 = vunpack.c.l.b16 %v549
  %v582 = vunpack.c.l.b16 %v550
  %v583 = vunpack.c.l.b16 %v551
  %v584 = vunpack.c.l.b16 %v552
  %v585 = vunpack.c.l.b16 %v553
  %v586 = vunpack.c.l.b16 %v554
  %v587 = vunpack.c.l.b16 %v555
  %v588 = vunpack.c.l.b16 %v556
  %v589 = vunpack.c.l.b16 %v557
  %v590 = vunpack.c.l.b16 %v558
  %v591 = vunpack.c.l.b16 %v559
  %v592 = vunpack.c.l.b16 %v560
  %v593 = vunpack.c.l.b16 %v561
  %v594 = vunpack.c.l.b16 %v562
  %v595 = vunpack.c.l.b16 %v563
  %v596 = vpack.c.b16 %v581, %v580
  %v597 = vpack.c.b16 %v583, %v582
  %v598 = vpack.c.b16 %v585, %v584
  %v599 = vpack.c.b16 %v587, %v586
  %v600 = vpack.c.b16 %v589, %v588
  %v601 = vpack.c.b16 %v591, %v590
  %v602 = vpack.c.b16 %v593, %v592
  %v603 = vpack.c.b16 %v595, %v594
  %612 = vmatprep.subr.bf16.mxu0 0
  %613 = vmatpush1.bf16.msra.mxu0 %v603
  %614 = vmatprep.subr.bf16.mxu0 0
  %615 = vmatpush1.bf16.msra.mxu0 %v602
  %616 = vmatprep.subr.bf16.mxu0 0
  %617 = vmatpush1.bf16.msra.mxu0 %v601
  %618 = vmatprep.subr.bf16.mxu0 0
  %619 = vmatpush1.bf16.msra.mxu0 %v600
  %620 = vmatprep.subr.bf16.mxu0 0
  %621 = vmatpush1.bf16.msra.mxu0 %v599
  %622 = vmatprep.subr.bf16.mxu0 0
  %623 = vmatpush1.bf16.msra.mxu0 %v598
  %624 = vmatprep.subr.bf16.mxu0 0
  %625 = vmatpush1.bf16.msra.mxu0 %v597
  %626 = vmatprep.subr.bf16.mxu0 0
  %627 = vmatpush1.bf16.msra.mxu0 %v596
  %628 = vmatprep.subr.bf16.mxu0 0
  %629 = vmatpush2.bf16.msra.mxu0 0
  %630 = vmatprep.subr.bf16.mxu0 0
  %631 = vmatpush2.bf16.msra.mxu0 0
  %632 = vmatprep.subr.bf16.mxu0 0
  %633 = vmatpush2.bf16.msra.mxu0 0
  %634 = vmatprep.subr.bf16.mxu0 0
  %635 = vmatpush2.bf16.msra.mxu0 0
  %636 = vmatprep.subr.bf16.mxu0 0
  %637 = vmatpush2.bf16.msra.mxu0 0
  %638 = vmatprep.subr.bf16.mxu0 0
  %639 = vmatpush2.bf16.msra.mxu0 0
  %640 = vmatprep.subr.bf16.mxu0 0
  %641 = vmatpush2.bf16.msra.mxu0 0
  %642 = vmatprep.subr.bf16.mxu0 0
  %643 = vmatpush2.bf16.msra.mxu0 0
  %644 = vmatprep.mubr.bf16.mxu0 0
  %645 = vmatmul.mubr.bf16.gmra.mxu0 %v61
  %v646 = vpop.f32.mrf.mxu0
  %v647 = vadd.f32 0.0, %v646
  %v648 = vpop.f32.mrf.mxu0
  %v649 = vpop.f32.mrf.mxu0
  %v650 = vpop.f32.mrf.mxu0
  %651 = vdwg.mxu0
  %v652 = vpack.c.bf16 %v647, %v647
  %s653 = scalar_lea.vmem %s1, 24
  %v654 = vld [vmem:[%s653] sm:$0xf]
  %v655 = vld [vmem:[%s653 + $0x4] sm:$0xf]
  %v658 = vunpack.c.l.b16 %v654
  %v659 = vunpack.c.l.b16 %v655
  %v660 = vpack.c.b16 %v659, %v658
  %v662 = vsel %vm283, %v660, 0
  %v665 = vsel %vm287, %v652, 0
  %667 = vmatprep.subr.bf16.mxu0 0
  %668 = vmatpush1.bf16.msra.mxu0 0
  %669 = vmatprep.subr.bf16.mxu0 0
  %670 = vmatpush1.bf16.msra.mxu0 0
  %671 = vmatprep.subr.bf16.mxu0 0
  %672 = vmatpush1.bf16.msra.mxu0 0
  %673 = vmatprep.subr.bf16.mxu0 0
  %674 = vmatpush1.bf16.msra.mxu0 0
  %675 = vmatprep.subr.bf16.mxu0 0
  %676 = vmatpush1.bf16.msra.mxu0 0
  %677 = vmatprep.subr.bf16.mxu0 0
  %678 = vmatpush1.bf16.msra.mxu0 0
  %679 = vmatprep.subr.bf16.mxu0 0
  %680 = vmatpush1.bf16.msra.mxu0 0
  %681 = vmatprep.subr.bf16.mxu0 0
  %682 = vmatpush1.bf16.msra.mxu0 %v665
  %683 = vmatprep.subr.bf16.mxu0 0
  %684 = vmatpush2.bf16.msra.mxu0 0
  %685 = vmatprep.subr.bf16.mxu0 0
  %686 = vmatpush2.bf16.msra.mxu0 0
  %687 = vmatprep.subr.bf16.mxu0 0
  %688 = vmatpush2.bf16.msra.mxu0 0
  %689 = vmatprep.subr.bf16.mxu0 0
  %690 = vmatpush2.bf16.msra.mxu0 0
  %691 = vmatprep.subr.bf16.mxu0 0
  %692 = vmatpush2.bf16.msra.mxu0 0
  %693 = vmatprep.subr.bf16.mxu0 0
  %694 = vmatpush2.bf16.msra.mxu0 0
  %695 = vmatprep.subr.bf16.mxu0 0
  %696 = vmatpush2.bf16.msra.mxu0 0
  %697 = vmatprep.subr.bf16.mxu0 0
  %698 = vmatpush2.bf16.msra.mxu0 0
  %699 = vmatprep.mubr.bf16.mxu0 0
  %700 = vmatmul.mubr.bf16.gmra.mxu0 %v662
  %v701 = vpop.f32.mrf.mxu0
  %v702 = vadd.f32 0.0, %v701
  %v703 = vpop.f32.mrf.mxu0
  %v704 = vpop.f32.mrf.mxu0
  %v705 = vadd.f32 0.0, %v704
  %v706 = vpop.f32.mrf.mxu0
  %707 = vdwg.mxu0
  %v708 = vadd.f32 %v545, %v702
  %v709 = vadd.f32 %v546, %v705
  %v710 = vld [vmem:[%s2] sm:$0xff]
  %v711 = vld [vmem:[%s2 + $0x8] sm:$0xff]
  %713 = vset.pattern.permute.xlu0 0
  %714 = vperm.xlu0 %713, %v710
  %v715 = vpop.permute.xlu0 %714
  %718 = vset.pattern.permute.xlu0 0
  %719 = vperm.xlu0 %718, %v711
  %v720 = vpop.permute.xlu0 %719
  %v722 = vadd.f32 %v708, %v715
  %v723 = vadd.f32 %v709, %v720
  %v724 = vmax.f32 %v722, 0.0
  %v725 = vmax.f32 %v723, 0.0
  %v726 = vpack.c.bf16 %v725, %v724
  %v727 = vld [vmem:[%s6] sm:$0xf]
  %v728 = vld [vmem:[%s6 + $0x4] sm:$0xf]
  %v729 = vld [vmem:[%s6 + $0x8] sm:$0xf]
  %v730 = vld [vmem:[%s6 + $0xc] sm:$0xf]
  %v731 = vld [vmem:[%s6 + $0x10] sm:$0xf]
  %v732 = vld [vmem:[%s6 + $0x14] sm:$0xf]
  %v733 = vld [vmem:[%s6 + $0x18] sm:$0xf]
  %v734 = vld [vmem:[%s6 + $0x1c] sm:$0xf]
  %v743 = vunpack.c.l.b16 %v727
  %v744 = vunpack.c.l.b16 %v728
  %v745 = vunpack.c.l.b16 %v729
  %v746 = vunpack.c.l.b16 %v730
  %v747 = vunpack.c.l.b16 %v731
  %v748 = vunpack.c.l.b16 %v732
  %v749 = vunpack.c.l.b16 %v733
  %v750 = vunpack.c.l.b16 %v734
  %v751 = vpack.c.b16 %v744, %v743
  %v752 = vpack.c.b16 %v746, %v745
  %v753 = vpack.c.b16 %v748, %v747
  %v754 = vpack.c.b16 %v750, %v749
  %vm759 = vcmask 523264
  %v761 = vsel %vm759, %v726, 0
  %763 = vmatprep.subr.bf16.mxu0 0
  %764 = vmatpush1.bf16.msra.mxu0 0
  %765 = vmatprep.subr.bf16.mxu0 0
  %766 = vmatpush1.bf16.msra.mxu0 0
  %767 = vmatprep.subr.bf16.mxu0 0
  %768 = vmatpush1.bf16.msra.mxu0 0
  %769 = vmatprep.subr.bf16.mxu0 0
  %770 = vmatpush1.bf16.msra.mxu0 0
  %771 = vmatprep.subr.bf16.mxu0 0
  %772 = vmatpush1.bf16.msra.mxu0 %v754
  %773 = vmatprep.subr.bf16.mxu0 0
  %774 = vmatpush1.bf16.msra.mxu0 %v753
  %775 = vmatprep.subr.bf16.mxu0 0
  %776 = vmatpush1.bf16.msra.mxu0 %v752
  %777 = vmatprep.subr.bf16.mxu0 0
  %778 = vmatpush1.bf16.msra.mxu0 %v751
  %779 = vmatprep.subr.bf16.mxu0 0
  %780 = vmatpush2.bf16.msra.mxu0 0
  %781 = vmatprep.subr.bf16.mxu0 0
  %782 = vmatpush2.bf16.msra.mxu0 0
  %783 = vmatprep.subr.bf16.mxu0 0
  %784 = vmatpush2.bf16.msra.mxu0 0
  %785 = vmatprep.subr.bf16.mxu0 0
  %786 = vmatpush2.bf16.msra.mxu0 0
  %787 = vmatprep.subr.bf16.mxu0 0
  %788 = vmatpush2.bf16.msra.mxu0 0
  %789 = vmatprep.subr.bf16.mxu0 0
  %790 = vmatpush2.bf16.msra.mxu0 0
  %791 = vmatprep.subr.bf16.mxu0 0
  %792 = vmatpush2.bf16.msra.mxu0 0
  %793 = vmatprep.subr.bf16.mxu0 0
  %794 = vmatpush2.bf16.msra.mxu0 0
  %795 = vmatprep.mubr.bf16.mxu0 0
  %796 = vmatmul.mubr.bf16.gmra.mxu0 %v761
  %v797 = vpop.f32.mrf.mxu0
  %v798 = vadd.f32 0.0, %v797
  %v799 = vpop.f32.mrf.mxu0
  %v800 = vpop.f32.mrf.mxu0
  %v801 = vadd.f32 0.0, %v800
  %v802 = vpop.f32.mrf.mxu0
  %803 = vdwg.mxu0
  %v804 = vpack.c.bf16 %v801, %v798
  %v805 = vld [vmem:[%s4] sm:$0xf]
  %v806 = vld [vmem:[%s4 + $0x4] sm:$0xf]
  %v807 = vld [vmem:[%s4 + $0x8] sm:$0xf]
  %v808 = vld [vmem:[%s4 + $0xc] sm:$0xf]
  %s809 = scalar_lea.vmem %s6, 32
  %v810 = vld [vmem:[%s809] sm:$0xf]
  %v811 = vld [vmem:[%s809 + $0x4] sm:$0xf]
  %v812 = vld [vmem:[%s809 + $0x8] sm:$0xf]
  %v813 = vld [vmem:[%s809 + $0xc] sm:$0xf]
  %v814 = vld [vmem:[%s809 + $0x10] sm:$0xf]
  %v815 = vld [vmem:[%s809 + $0x14] sm:$0xf]
  %v816 = vld [vmem:[%s809 + $0x18] sm:$0xf]
  %v817 = vld [vmem:[%s809 + $0x1c] sm:$0xf]
  %v826 = vunpack.c.l.b16 %v810
  %v827 = vunpack.c.l.b16 %v811
  %v828 = vunpack.c.l.b16 %v812
  %v829 = vunpack.c.l.b16 %v813
  %v830 = vunpack.c.l.b16 %v814
  %v831 = vunpack.c.l.b16 %v815
  %v832 = vunpack.c.l.b16 %v816
  %v833 = vunpack.c.l.b16 %v817
  %v834 = vpack.c.b16 %v827, %v826
  %v835 = vpack.c.b16 %v829, %v828
  %v836 = vpack.c.b16 %v831, %v830
  %v837 = vpack.c.b16 %v833, %v832
  %842 = vmatprep.subr.bf16.mxu0 0
  %843 = vmatpush1.bf16.msra.mxu0 0
  %844 = vmatprep.subr.bf16.mxu0 0
  %845 = vmatpush1.bf16.msra.mxu0 0
  %846 = vmatprep.subr.bf16.mxu0 0
  %847 = vmatpush1.bf16.msra.mxu0 0
  %848 = vmatprep.subr.bf16.mxu0 0
  %849 = vmatpush1.bf16.msra.mxu0 0
  %850 = vmatprep.subr.bf16.mxu0 0
  %851 = vmatpush1.bf16.msra.mxu0 %v837
  %852 = vmatprep.subr.bf16.mxu0 0
  %853 = vmatpush1.bf16.msra.mxu0 %v836
  %854 = vmatprep.subr.bf16.mxu0 0
  %855 = vmatpush1.bf16.msra.mxu0 %v835
  %856 = vmatprep.subr.bf16.mxu0 0
  %857 = vmatpush1.bf16.msra.mxu0 %v834
  %858 = vmatprep.subr.bf16.mxu0 0
  %859 = vmatpush2.bf16.msra.mxu0 0
  %860 = vmatprep.subr.bf16.mxu0 0
  %861 = vmatpush2.bf16.msra.mxu0 0
  %862 = vmatprep.subr.bf16.mxu0 0
  %863 = vmatpush2.bf16.msra.mxu0 0
  %864 = vmatprep.subr.bf16.mxu0 0
  %865 = vmatpush2.bf16.msra.mxu0 0
  %866 = vmatprep.subr.bf16.mxu0 0
  %867 = vmatpush2.bf16.msra.mxu0 0
  %868 = vmatprep.subr.bf16.mxu0 0
  %869 = vmatpush2.bf16.msra.mxu0 0
  %870 = vmatprep.subr.bf16.mxu0 0
  %871 = vmatpush2.bf16.msra.mxu0 0
  %872 = vmatprep.subr.bf16.mxu0 0
  %873 = vmatpush2.bf16.msra.mxu0 0
  %874 = vmatprep.mubr.bf16.mxu0 0
  %875 = vmatmul.mubr.bf16.gmra.mxu0 %v761
  %v876 = vpop.f32.mrf.mxu0
  %v877 = vadd.f32 0.0, %v876
  %v878 = vpop.f32.mrf.mxu0
  %v879 = vpop.f32.mrf.mxu0
  %v880 = vadd.f32 0.0, %v879
  %v881 = vpop.f32.mrf.mxu0
  %882 = vdwg.mxu0
  %v883 = vpack.c.bf16 %v880, %v877
  %s884 = scalar_lea.vmem %s4, 16
  %v885 = vld [vmem:[%s884] sm:$0xf]
  %v886 = vld [vmem:[%s884 + $0x4] sm:$0xf]
  %v887 = vld [vmem:[%s884 + $0x8] sm:$0xf]
  %v888 = vld [vmem:[%s884 + $0xc] sm:$0xf]
  %v893 = vunpack.c.l.b16 %v885
  %v894 = vunpack.c.l.b16 %v886
  %v895 = vunpack.c.l.b16 %v887
  %v896 = vunpack.c.l.b16 %v888
  %v897 = vpack.c.b16 %v894, %v893
  %v898 = vpack.c.b16 %v896, %v895
  %vm899 = vcmask 130048
  %v901 = vsel %vm899, %v897, 0
  %v904 = vsel %vm899, %v898, 0
  %906 = vmatprep.subr.bf16.mxu0 0
  %907 = vmatpush1.bf16.msra.mxu0 0
  %908 = vmatprep.subr.bf16.mxu0 0
  %909 = vmatpush1.bf16.msra.mxu0 0
  %910 = vmatprep.subr.bf16.mxu0 0
  %911 = vmatpush1.bf16.msra.mxu0 0
  %912 = vmatprep.subr.bf16.mxu0 0
  %913 = vmatpush1.bf16.msra.mxu0 0
  %914 = vmatprep.subr.bf16.mxu0 0
  %915 = vmatpush1.bf16.msra.mxu0 0
  %916 = vmatprep.subr.bf16.mxu0 0
  %917 = vmatpush1.bf16.msra.mxu0 0
  %918 = vmatprep.subr.bf16.mxu0 0
  %919 = vmatpush1.bf16.msra.mxu0 0
  %920 = vmatprep.subr.bf16.mxu0 0
  %921 = vmatpush1.bf16.msra.mxu0 %v883
  %922 = vmatprep.subr.bf16.mxu0 0
  %923 = vmatpush2.bf16.msra.mxu0 0
  %924 = vmatprep.subr.bf16.mxu0 0
  %925 = vmatpush2.bf16.msra.mxu0 0
  %926 = vmatprep.subr.bf16.mxu0 0
  %927 = vmatpush2.bf16.msra.mxu0 0
  %928 = vmatprep.subr.bf16.mxu0 0
  %929 = vmatpush2.bf16.msra.mxu0 0
  %930 = vmatprep.subr.bf16.mxu0 0
  %931 = vmatpush2.bf16.msra.mxu0 0
  %932 = vmatprep.subr.bf16.mxu0 0
  %933 = vmatpush2.bf16.msra.mxu0 0
  %934 = vmatprep.subr.bf16.mxu0 0
  %935 = vmatpush2.bf16.msra.mxu0 0
  %936 = vmatprep.subr.bf16.mxu0 0
  %937 = vmatpush2.bf16.msra.mxu0 0
  %938 = vmatprep.mubr.bf16.mxu0 0
  %939 = vmatmul.mubr.bf16.gmra.mxu0 %v901
  %v940 = vpop.f32.mrf.mxu0
  %v941 = vadd.f32 0.0, %v940
  %v942 = vpop.f32.mrf.mxu0
  %v943 = vpop.f32.mrf.mxu0
  %v944 = vadd.f32 0.0, %v943
  %v945 = vpop.f32.mrf.mxu0
  %946 = vmatprep.mubr.bf16.mxu0 0
  %947 = vmatmul.mubr.bf16.gmra.mxu0 %v904
  %v948 = vpop.f32.mrf.mxu0
  %v949 = vadd.f32 0.0, %v948
  %v950 = vpop.f32.mrf.mxu0
  %v951 = vpop.f32.mrf.mxu0
  %v952 = vadd.f32 0.0, %v951
  %v953 = vpop.f32.mrf.mxu0
  %954 = vdwg.mxu0
  %v959 = vunpack.c.l.b16 %v805
  %v960 = vunpack.c.l.b16 %v806
  %v961 = vunpack.c.l.b16 %v807
  %v962 = vunpack.c.l.b16 %v808
  %v963 = vpack.c.b16 %v960, %v959
  %v964 = vpack.c.b16 %v962, %v961
  %v966 = vsel %vm899, %v963, 0
  %v969 = vsel %vm899, %v964, 0
  %971 = vmatprep.subr.bf16.mxu0 0
  %972 = vmatpush1.bf16.msra.mxu0 0
  %973 = vmatprep.subr.bf16.mxu0 0
  %974 = vmatpush1.bf16.msra.mxu0 0
  %975 = vmatprep.subr.bf16.mxu0 0
  %976 = vmatpush1.bf16.msra.mxu0 0
  %977 = vmatprep.subr.bf16.mxu0 0
  %978 = vmatpush1.bf16.msra.mxu0 0
  %979 = vmatprep.subr.bf16.mxu0 0
  %980 = vmatpush1.bf16.msra.mxu0 0
  %981 = vmatprep.subr.bf16.mxu0 0
  %982 = vmatpush1.bf16.msra.mxu0 0
  %983 = vmatprep.subr.bf16.mxu0 0
  %984 = vmatpush1.bf16.msra.mxu0 0
  %985 = vmatprep.subr.bf16.mxu0 0
  %986 = vmatpush1.bf16.msra.mxu0 %v804
  %987 = vmatprep.subr.bf16.mxu0 0
  %988 = vmatpush2.bf16.msra.mxu0 0
  %989 = vmatprep.subr.bf16.mxu0 0
  %990 = vmatpush2.bf16.msra.mxu0 0
  %991 = vmatprep.subr.bf16.mxu0 0
  %992 = vmatpush2.bf16.msra.mxu0 0
  %993 = vmatprep.subr.bf16.mxu0 0
  %994 = vmatpush2.bf16.msra.mxu0 0
  %995 = vmatprep.subr.bf16.mxu0 0
  %996 = vmatpush2.bf16.msra.mxu0 0
  %997 = vmatprep.subr.bf16.mxu0 0
  %998 = vmatpush2.bf16.msra.mxu0 0
  %999 = vmatprep.subr.bf16.mxu0 0
  %1000 = vmatpush2.bf16.msra.mxu0 0
  %1001 = vmatprep.subr.bf16.mxu0 0
  %1002 = vmatpush2.bf16.msra.mxu0 0
  %1003 = vmatprep.mubr.bf16.mxu0 0
  %1004 = vmatmul.mubr.bf16.gmra.mxu0 %v966
  %v1005 = vpop.f32.mrf.mxu0
  %v1006 = vadd.f32 %v941, %v1005
  %v1007 = vpop.f32.mrf.mxu0
  %v1008 = vpop.f32.mrf.mxu0
  %v1009 = vadd.f32 %v944, %v1008
  %v1010 = vpop.f32.mrf.mxu0
  %1011 = vmatprep.mubr.bf16.mxu0 0
  %1012 = vmatmul.mubr.bf16.gmra.mxu0 %v969
  %v1013 = vpop.f32.mrf.mxu0
  %v1014 = vadd.f32 %v949, %v1013
  %v1015 = vpop.f32.mrf.mxu0
  %v1016 = vpop.f32.mrf.mxu0
  %v1017 = vadd.f32 %v952, %v1016
  %v1018 = vpop.f32.mrf.mxu0
  %1019 = vdwg.mxu0
  %s1020 = scalar_lea.vmem %s6, 64
  %v1021 = vld [vmem:[%s1020] sm:$0xf]
  %v1022 = vld [vmem:[%s1020 + $0x4] sm:$0xf]
  %v1023 = vld [vmem:[%s1020 + $0x8] sm:$0xf]
  %v1024 = vld [vmem:[%s1020 + $0xc] sm:$0xf]
  %v1025 = vld [vmem:[%s1020 + $0x10] sm:$0xf]
  %v1026 = vld [vmem:[%s1020 + $0x14] sm:$0xf]
  %v1027 = vld [vmem:[%s1020 + $0x18] sm:$0xf]
  %v1028 = vld [vmem:[%s1020 + $0x1c] sm:$0xf]
  %v1037 = vunpack.c.l.b16 %v1021
  %v1038 = vunpack.c.l.b16 %v1022
  %v1039 = vunpack.c.l.b16 %v1023
  %v1040 = vunpack.c.l.b16 %v1024
  %v1041 = vunpack.c.l.b16 %v1025
  %v1042 = vunpack.c.l.b16 %v1026
  %v1043 = vunpack.c.l.b16 %v1027
  %v1044 = vunpack.c.l.b16 %v1028
  %v1045 = vpack.c.b16 %v1038, %v1037
  %v1046 = vpack.c.b16 %v1040, %v1039
  %v1047 = vpack.c.b16 %v1042, %v1041
  %v1048 = vpack.c.b16 %v1044, %v1043
  %1053 = vmatprep.subr.bf16.mxu0 0
  %1054 = vmatpush1.bf16.msra.mxu0 0
  %1055 = vmatprep.subr.bf16.mxu0 0
  %1056 = vmatpush1.bf16.msra.mxu0 0
  %1057 = vmatprep.subr.bf16.mxu0 0
  %1058 = vmatpush1.bf16.msra.mxu0 0
  %1059 = vmatprep.subr.bf16.mxu0 0
  %1060 = vmatpush1.bf16.msra.mxu0 0
  %1061 = vmatprep.subr.bf16.mxu0 0
  %1062 = vmatpush1.bf16.msra.mxu0 %v1048
  %1063 = vmatprep.subr.bf16.mxu0 0
  %1064 = vmatpush1.bf16.msra.mxu0 %v1047
  %1065 = vmatprep.subr.bf16.mxu0 0
  %1066 = vmatpush1.bf16.msra.mxu0 %v1046
  %1067 = vmatprep.subr.bf16.mxu0 0
  %1068 = vmatpush1.bf16.msra.mxu0 %v1045
  %1069 = vmatprep.subr.bf16.mxu0 0
  %1070 = vmatpush2.bf16.msra.mxu0 0
  %1071 = vmatprep.subr.bf16.mxu0 0
  %1072 = vmatpush2.bf16.msra.mxu0 0
  %1073 = vmatprep.subr.bf16.mxu0 0
  %1074 = vmatpush2.bf16.msra.mxu0 0
  %1075 = vmatprep.subr.bf16.mxu0 0
  %1076 = vmatpush2.bf16.msra.mxu0 0
  %1077 = vmatprep.subr.bf16.mxu0 0
  %1078 = vmatpush2.bf16.msra.mxu0 0
  %1079 = vmatprep.subr.bf16.mxu0 0
  %1080 = vmatpush2.bf16.msra.mxu0 0
  %1081 = vmatprep.subr.bf16.mxu0 0
  %1082 = vmatpush2.bf16.msra.mxu0 0
  %1083 = vmatprep.subr.bf16.mxu0 0
  %1084 = vmatpush2.bf16.msra.mxu0 0
  %1085 = vmatprep.mubr.bf16.mxu0 0
  %1086 = vmatmul.mubr.bf16.gmra.mxu0 %v761
  %v1087 = vpop.f32.mrf.mxu0
  %v1088 = vadd.f32 0.0, %v1087
  %v1089 = vpop.f32.mrf.mxu0
  %v1090 = vpop.f32.mrf.mxu0
  %v1091 = vadd.f32 0.0, %v1090
  %v1092 = vpop.f32.mrf.mxu0
  %1093 = vdwg.mxu0
  %v1094 = vpack.c.bf16 %v1091, %v1088
  %s1095 = scalar_lea.vmem %s4, 32
  %v1096 = vld [vmem:[%s1095] sm:$0xf]
  %v1097 = vld [vmem:[%s1095 + $0x4] sm:$0xf]
  %v1098 = vld [vmem:[%s1095 + $0x8] sm:$0xf]
  %v1099 = vld [vmem:[%s1095 + $0xc] sm:$0xf]
  %v1104 = vunpack.c.l.b16 %v1096
  %v1105 = vunpack.c.l.b16 %v1097
  %v1106 = vunpack.c.l.b16 %v1098
  %v1107 = vunpack.c.l.b16 %v1099
  %v1108 = vpack.c.b16 %v1105, %v1104
  %v1109 = vpack.c.b16 %v1107, %v1106
  %v1111 = vsel %vm899, %v1108, 0
  %v1114 = vsel %vm899, %v1109, 0
  %1116 = vmatprep.subr.bf16.mxu0 0
  %1117 = vmatpush1.bf16.msra.mxu0 0
  %1118 = vmatprep.subr.bf16.mxu0 0
  %1119 = vmatpush1.bf16.msra.mxu0 0
  %1120 = vmatprep.subr.bf16.mxu0 0
  %1121 = vmatpush1.bf16.msra.mxu0 0
  %1122 = vmatprep.subr.bf16.mxu0 0
  %1123 = vmatpush1.bf16.msra.mxu0 0
  %1124 = vmatprep.subr.bf16.mxu0 0
  %1125 = vmatpush1.bf16.msra.mxu0 0
  %1126 = vmatprep.subr.bf16.mxu0 0
  %1127 = vmatpush1.bf16.msra.mxu0 0
  %1128 = vmatprep.subr.bf16.mxu0 0
  %1129 = vmatpush1.bf16.msra.mxu0 0
  %1130 = vmatprep.subr.bf16.mxu0 0
  %1131 = vmatpush1.bf16.msra.mxu0 %v1094
  %1132 = vmatprep.subr.bf16.mxu0 0
  %1133 = vmatpush2.bf16.msra.mxu0 0
  %1134 = vmatprep.subr.bf16.mxu0 0
  %1135 = vmatpush2.bf16.msra.mxu0 0
  %1136 = vmatprep.subr.bf16.mxu0 0
  %1137 = vmatpush2.bf16.msra.mxu0 0
  %1138 = vmatprep.subr.bf16.mxu0 0
  %1139 = vmatpush2.bf16.msra.mxu0 0
  %1140 = vmatprep.subr.bf16.mxu0 0
  %1141 = vmatpush2.bf16.msra.mxu0 0
  %1142 = vmatprep.subr.bf16.mxu0 0
  %1143 = vmatpush2.bf16.msra.mxu0 0
  %1144 = vmatprep.subr.bf16.mxu0 0
  %1145 = vmatpush2.bf16.msra.mxu0 0
  %1146 = vmatprep.subr.bf16.mxu0 0
  %1147 = vmatpush2.bf16.msra.mxu0 0
  %1148 = vmatprep.mubr.bf16.mxu0 0
  %1149 = vmatmul.mubr.bf16.gmra.mxu0 %v1111
  %v1150 = vpop.f32.mrf.mxu0
  %v1151 = vadd.f32 0.0, %v1150
  %v1152 = vpop.f32.mrf.mxu0
  %v1153 = vpop.f32.mrf.mxu0
  %v1154 = vadd.f32 0.0, %v1153
  %v1155 = vpop.f32.mrf.mxu0
  %1156 = vmatprep.mubr.bf16.mxu0 0
  %1157 = vmatmul.mubr.bf16.gmra.mxu0 %v1114
  %v1158 = vpop.f32.mrf.mxu0
  %v1159 = vadd.f32 0.0, %v1158
  %v1160 = vpop.f32.mrf.mxu0
  %v1161 = vpop.f32.mrf.mxu0
  %v1162 = vadd.f32 0.0, %v1161
  %v1163 = vpop.f32.mrf.mxu0
  %1164 = vdwg.mxu0
  %v1165 = vadd.f32 %v1006, %v1151
  %v1166 = vadd.f32 %v1009, %v1154
  %v1167 = vadd.f32 %v1014, %v1159
  %v1168 = vadd.f32 %v1017, %v1162
  %s1169 = scalar_lea.vmem %s6, 96
  %v1170 = vld [vmem:[%s1169] sm:$0xf]
  %v1171 = vld [vmem:[%s1169 + $0x4] sm:$0xf]
  %v1172 = vld [vmem:[%s1169 + $0x8] sm:$0xf]
  %v1173 = vld [vmem:[%s1169 + $0xc] sm:$0xf]
  %v1174 = vld [vmem:[%s1169 + $0x10] sm:$0xf]
  %v1175 = vld [vmem:[%s1169 + $0x14] sm:$0xf]
  %v1176 = vld [vmem:[%s1169 + $0x18] sm:$0xf]
  %v1177 = vld [vmem:[%s1169 + $0x1c] sm:$0xf]
  %v1186 = vunpack.c.l.b16 %v1170
  %v1187 = vunpack.c.l.b16 %v1171
  %v1188 = vunpack.c.l.b16 %v1172
  %v1189 = vunpack.c.l.b16 %v1173
  %v1190 = vunpack.c.l.b16 %v1174
  %v1191 = vunpack.c.l.b16 %v1175
  %v1192 = vunpack.c.l.b16 %v1176
  %v1193 = vunpack.c.l.b16 %v1177
  %v1194 = vpack.c.b16 %v1187, %v1186
  %v1195 = vpack.c.b16 %v1189, %v1188
  %v1196 = vpack.c.b16 %v1191, %v1190
  %v1197 = vpack.c.b16 %v1193, %v1192
  %1202 = vmatprep.subr.bf16.mxu0 0
  %1203 = vmatpush1.bf16.msra.mxu0 0
  %1204 = vmatprep.subr.bf16.mxu0 0
  %1205 = vmatpush1.bf16.msra.mxu0 0
  %1206 = vmatprep.subr.bf16.mxu0 0
  %1207 = vmatpush1.bf16.msra.mxu0 0
  %1208 = vmatprep.subr.bf16.mxu0 0
  %1209 = vmatpush1.bf16.msra.mxu0 0
  %1210 = vmatprep.subr.bf16.mxu0 0
  %1211 = vmatpush1.bf16.msra.mxu0 %v1197
  %1212 = vmatprep.subr.bf16.mxu0 0
  %1213 = vmatpush1.bf16.msra.mxu0 %v1196
  %1214 = vmatprep.subr.bf16.mxu0 0
  %1215 = vmatpush1.bf16.msra.mxu0 %v1195
  %1216 = vmatprep.subr.bf16.mxu0 0
  %1217 = vmatpush1.bf16.msra.mxu0 %v1194
  %1218 = vmatprep.subr.bf16.mxu0 0
  %1219 = vmatpush2.bf16.msra.mxu0 0
  %1220 = vmatprep.subr.bf16.mxu0 0
  %1221 = vmatpush2.bf16.msra.mxu0 0
  %1222 = vmatprep.subr.bf16.mxu0 0
  %1223 = vmatpush2.bf16.msra.mxu0 0
  %1224 = vmatprep.subr.bf16.mxu0 0
  %1225 = vmatpush2.bf16.msra.mxu0 0
  %1226 = vmatprep.subr.bf16.mxu0 0
  %1227 = vmatpush2.bf16.msra.mxu0 0
  %1228 = vmatprep.subr.bf16.mxu0 0
  %1229 = vmatpush2.bf16.msra.mxu0 0
  %1230 = vmatprep.subr.bf16.mxu0 0
  %1231 = vmatpush2.bf16.msra.mxu0 0
  %1232 = vmatprep.subr.bf16.mxu0 0
  %1233 = vmatpush2.bf16.msra.mxu0 0
  %1234 = vmatprep.mubr.bf16.mxu0 0
  %1235 = vmatmul.mubr.bf16.gmra.mxu0 %v761
  %v1236 = vpop.f32.mrf.mxu0
  %v1237 = vadd.f32 0.0, %v1236
  %v1238 = vpop.f32.mrf.mxu0
  %v1239 = vpop.f32.mrf.mxu0
  %v1240 = vadd.f32 0.0, %v1239
  %v1241 = vpop.f32.mrf.mxu0
  %1242 = vdwg.mxu0
  %v1243 = vpack.c.bf16 %v1240, %v1237
  %s1244 = scalar_lea.vmem %s4, 48
  %v1245 = vld [vmem:[%s1244] sm:$0xf]
  %v1246 = vld [vmem:[%s1244 + $0x4] sm:$0xf]
  %v1247 = vld [vmem:[%s1244 + $0x8] sm:$0xf]
  %v1248 = vld [vmem:[%s1244 + $0xc] sm:$0xf]
  %v1253 = vunpack.c.l.b16 %v1245
  %v1254 = vunpack.c.l.b16 %v1246
  %v1255 = vunpack.c.l.b16 %v1247
  %v1256 = vunpack.c.l.b16 %v1248
  %v1257 = vpack.c.b16 %v1254, %v1253
  %v1258 = vpack.c.b16 %v1256, %v1255
  %v1260 = vsel %vm899, %v1257, 0
  %v1263 = vsel %vm899, %v1258, 0
  %1265 = vmatprep.subr.bf16.mxu0 0
  %1266 = vmatpush1.bf16.msra.mxu0 0
  %1267 = vmatprep.subr.bf16.mxu0 0
  %1268 = vmatpush1.bf16.msra.mxu0 0
  %1269 = vmatprep.subr.bf16.mxu0 0
  %1270 = vmatpush1.bf16.msra.mxu0 0
  %1271 = vmatprep.subr.bf16.mxu0 0
  %1272 = vmatpush1.bf16.msra.mxu0 0
  %1273 = vmatprep.subr.bf16.mxu0 0
  %1274 = vmatpush1.bf16.msra.mxu0 0
  %1275 = vmatprep.subr.bf16.mxu0 0
  %1276 = vmatpush1.bf16.msra.mxu0 0
  %1277 = vmatprep.subr.bf16.mxu0 0
  %1278 = vmatpush1.bf16.msra.mxu0 0
  %1279 = vmatprep.subr.bf16.mxu0 0
  %1280 = vmatpush1.bf16.msra.mxu0 %v1243
  %1281 = vmatprep.subr.bf16.mxu0 0
  %1282 = vmatpush2.bf16.msra.mxu0 0
  %1283 = vmatprep.subr.bf16.mxu0 0
  %1284 = vmatpush2.bf16.msra.mxu0 0
  %1285 = vmatprep.subr.bf16.mxu0 0
  %1286 = vmatpush2.bf16.msra.mxu0 0
  %1287 = vmatprep.subr.bf16.mxu0 0
  %1288 = vmatpush2.bf16.msra.mxu0 0
  %1289 = vmatprep.subr.bf16.mxu0 0
  %1290 = vmatpush2.bf16.msra.mxu0 0
  %1291 = vmatprep.subr.bf16.mxu0 0
  %1292 = vmatpush2.bf16.msra.mxu0 0
  %1293 = vmatprep.subr.bf16.mxu0 0
  %1294 = vmatpush2.bf16.msra.mxu0 0
  %1295 = vmatprep.subr.bf16.mxu0 0
  %1296 = vmatpush2.bf16.msra.mxu0 0
  %1297 = vmatprep.mubr.bf16.mxu0 0
  %1298 = vmatmul.mubr.bf16.gmra.mxu0 %v1260
  %v1299 = vpop.f32.mrf.mxu0
  %v1300 = vadd.f32 0.0, %v1299
  %v1301 = vpop.f32.mrf.mxu0
  %v1302 = vpop.f32.mrf.mxu0
  %v1303 = vadd.f32 0.0, %v1302
  %v1304 = vpop.f32.mrf.mxu0
  %1305 = vmatprep.mubr.bf16.mxu0 0
  %1306 = vmatmul.mubr.bf16.gmra.mxu0 %v1263
  %v1307 = vpop.f32.mrf.mxu0
  %v1308 = vadd.f32 0.0, %v1307
  %v1309 = vpop.f32.mrf.mxu0
  %v1310 = vpop.f32.mrf.mxu0
  %v1311 = vadd.f32 0.0, %v1310
  %v1312 = vpop.f32.mrf.mxu0
  %1313 = vdwg.mxu0
  %v1314 = vadd.f32 %v1165, %v1300
  %v1315 = vadd.f32 %v1166, %v1303
  %v1316 = vadd.f32 %v1167, %v1308
  %v1317 = vadd.f32 %v1168, %v1311
  %v1318 = vld [vmem:[%s5] sm:$0xff]
  %v1319 = vld [vmem:[%s5 + $0x8] sm:$0xff]
  %v1320 = vld [vmem:[%s5 + $0x10] sm:$0xff]
  %v1321 = vld [vmem:[%s5 + $0x18] sm:$0xff]
  %1323 = vset.pattern.permute.xlu0 0
  %1324 = vperm.xlu0 %1323, %v1318
  %v1325 = vpop.permute.xlu0 %1324
  %1328 = vset.pattern.permute.xlu0 0
  %1329 = vperm.xlu0 %1328, %v1319
  %v1330 = vpop.permute.xlu0 %1329
  %1333 = vset.pattern.permute.xlu0 0
  %1334 = vperm.xlu0 %1333, %v1320
  %v1335 = vpop.permute.xlu0 %1334
  %1338 = vset.pattern.permute.xlu0 0
  %1339 = vperm.xlu0 %1338, %v1321
  %v1340 = vpop.permute.xlu0 %1339
  %v1342 = vadd.f32 %v1314, %v1325
  %v1343 = vadd.f32 %v1315, %v1330
  %v1344 = vadd.f32 %v1316, %v1335
  %v1345 = vadd.f32 %v1317, %v1340
  %v1346 = vmax.f32 %v1342, 0.0
  %v1347 = vmax.f32 %v1343, 0.0
  %v1348 = vmax.f32 %v1344, 0.0
  %v1349 = vmax.f32 %v1345, 0.0
  %v1350 = vpack.c.bf16 %v1347, %v1346
  %v1351 = vpack.c.bf16 %v1349, %v1348
  %v1352 = vld [vmem:[%s9] sm:$0xf]
  %v1353 = vld [vmem:[%s9 + $0x4] sm:$0xf]
  %v1354 = vld [vmem:[%s9 + $0x8] sm:$0xf]
  %v1355 = vld [vmem:[%s9 + $0xc] sm:$0xf]
  %v1360 = vunpack.c.l.b16 %v1352
  %v1361 = vunpack.c.l.b16 %v1353
  %v1362 = vunpack.c.l.b16 %v1354
  %v1363 = vunpack.c.l.b16 %v1355
  %v1364 = vpack.c.b16 %v1361, %v1360
  %v1365 = vpack.c.b16 %v1363, %v1362
  %vm1368 = vcmask 261120
  %v1370 = vsel %vm1368, %v1350, 0
  %v1373 = vsel %vm1368, %v1351, 0
  %1375 = vmatprep.subr.bf16.mxu0 0
  %1376 = vmatpush1.bf16.msra.mxu0 0
  %1377 = vmatprep.subr.bf16.mxu0 0
  %1378 = vmatpush1.bf16.msra.mxu0 0
  %1379 = vmatprep.subr.bf16.mxu0 0
  %1380 = vmatpush1.bf16.msra.mxu0 0
  %1381 = vmatprep.subr.bf16.mxu0 0
  %1382 = vmatpush1.bf16.msra.mxu0 0
  %1383 = vmatprep.subr.bf16.mxu0 0
  %1384 = vmatpush1.bf16.msra.mxu0 0
  %1385 = vmatprep.subr.bf16.mxu0 0
  %1386 = vmatpush1.bf16.msra.mxu0 0
  %1387 = vmatprep.subr.bf16.mxu0 0
  %1388 = vmatpush1.bf16.msra.mxu0 %v1365
  %1389 = vmatprep.subr.bf16.mxu0 0
  %1390 = vmatpush1.bf16.msra.mxu0 %v1364
  %1391 = vmatprep.subr.bf16.mxu0 0
  %1392 = vmatpush2.bf16.msra.mxu0 0
  %1393 = vmatprep.subr.bf16.mxu0 0
  %1394 = vmatpush2.bf16.msra.mxu0 0
  %1395 = vmatprep.subr.bf16.mxu0 0
  %1396 = vmatpush2.bf16.msra.mxu0 0
  %1397 = vmatprep.subr.bf16.mxu0 0
  %1398 = vmatpush2.bf16.msra.mxu0 0
  %1399 = vmatprep.subr.bf16.mxu0 0
  %1400 = vmatpush2.bf16.msra.mxu0 0
  %1401 = vmatprep.subr.bf16.mxu0 0
  %1402 = vmatpush2.bf16.msra.mxu0 0
  %1403 = vmatprep.subr.bf16.mxu0 0
  %1404 = vmatpush2.bf16.msra.mxu0 0
  %1405 = vmatprep.subr.bf16.mxu0 0
  %1406 = vmatpush2.bf16.msra.mxu0 0
  %1407 = vmatprep.mubr.bf16.mxu0 0
  %1408 = vmatmul.mubr.bf16.gmra.mxu0 %v1370
  %v1409 = vpop.f32.mrf.mxu0
  %v1410 = vadd.f32 0.0, %v1409
  %v1411 = vpop.f32.mrf.mxu0
  %v1412 = vpop.f32.mrf.mxu0
  %v1413 = vadd.f32 0.0, %v1412
  %v1414 = vpop.f32.mrf.mxu0
  %1415 = vmatprep.mubr.bf16.mxu0 0
  %1416 = vmatmul.mubr.bf16.gmra.mxu0 %v1373
  %v1417 = vpop.f32.mrf.mxu0
  %v1418 = vadd.f32 0.0, %v1417
  %v1419 = vpop.f32.mrf.mxu0
  %v1420 = vpop.f32.mrf.mxu0
  %v1421 = vadd.f32 0.0, %v1420
  %v1422 = vpop.f32.mrf.mxu0
  %1423 = vdwg.mxu0
  %v1424 = vpack.c.bf16 %v1413, %v1410
  %v1425 = vpack.c.bf16 %v1421, %v1418
  %v1426 = vld [vmem:[%s7] sm:$0xf]
  %v1427 = vld [vmem:[%s7 + $0x4] sm:$0xf]
  %v1428 = vld [vmem:[%s7 + $0x8] sm:$0xf]
  %v1429 = vld [vmem:[%s7 + $0xc] sm:$0xf]
  %s1430 = scalar_lea.vmem %s9, 16
  %v1431 = vld [vmem:[%s1430] sm:$0xf]
  %v1432 = vld [vmem:[%s1430 + $0x4] sm:$0xf]
  %v1433 = vld [vmem:[%s1430 + $0x8] sm:$0xf]
  %v1434 = vld [vmem:[%s1430 + $0xc] sm:$0xf]
  %v1439 = vunpack.c.l.b16 %v1431
  %v1440 = vunpack.c.l.b16 %v1432
  %v1441 = vunpack.c.l.b16 %v1433
  %v1442 = vunpack.c.l.b16 %v1434
  %v1443 = vpack.c.b16 %v1440, %v1439
  %v1444 = vpack.c.b16 %v1442, %v1441
  %1447 = vmatprep.subr.bf16.mxu0 0
  %1448 = vmatpush1.bf16.msra.mxu0 0
  %1449 = vmatprep.subr.bf16.mxu0 0
  %1450 = vmatpush1.bf16.msra.mxu0 0
  %1451 = vmatprep.subr.bf16.mxu0 0
  %1452 = vmatpush1.bf16.msra.mxu0 0
  %1453 = vmatprep.subr.bf16.mxu0 0
  %1454 = vmatpush1.bf16.msra.mxu0 0
  %1455 = vmatprep.subr.bf16.mxu0 0
  %1456 = vmatpush1.bf16.msra.mxu0 0
  %1457 = vmatprep.subr.bf16.mxu0 0
  %1458 = vmatpush1.bf16.msra.mxu0 0
  %1459 = vmatprep.subr.bf16.mxu0 0
  %1460 = vmatpush1.bf16.msra.mxu0 %v1444
  %1461 = vmatprep.subr.bf16.mxu0 0
  %1462 = vmatpush1.bf16.msra.mxu0 %v1443
  %1463 = vmatprep.subr.bf16.mxu0 0
  %1464 = vmatpush2.bf16.msra.mxu0 0
  %1465 = vmatprep.subr.bf16.mxu0 0
  %1466 = vmatpush2.bf16.msra.mxu0 0
  %1467 = vmatprep.subr.bf16.mxu0 0
  %1468 = vmatpush2.bf16.msra.mxu0 0
  %1469 = vmatprep.subr.bf16.mxu0 0
  %1470 = vmatpush2.bf16.msra.mxu0 0
  %1471 = vmatprep.subr.bf16.mxu0 0
  %1472 = vmatpush2.bf16.msra.mxu0 0
  %1473 = vmatprep.subr.bf16.mxu0 0
  %1474 = vmatpush2.bf16.msra.mxu0 0
  %1475 = vmatprep.subr.bf16.mxu0 0
  %1476 = vmatpush2.bf16.msra.mxu0 0
  %1477 = vmatprep.subr.bf16.mxu0 0
  %1478 = vmatpush2.bf16.msra.mxu0 0
  %1479 = vmatprep.mubr.bf16.mxu0 0
  %1480 = vmatmul.mubr.bf16.gmra.mxu0 %v1370
  %v1481 = vpop.f32.mrf.mxu0
  %v1482 = vadd.f32 0.0, %v1481
  %v1483 = vpop.f32.mrf.mxu0
  %v1484 = vpop.f32.mrf.mxu0
  %v1485 = vadd.f32 0.0, %v1484
  %v1486 = vpop.f32.mrf.mxu0
  %1487 = vmatprep.mubr.bf16.mxu0 0
  %1488 = vmatmul.mubr.bf16.gmra.mxu0 %v1373
  %v1489 = vpop.f32.mrf.mxu0
  %v1490 = vadd.f32 0.0, %v1489
  %v1491 = vpop.f32.mrf.mxu0
  %v1492 = vpop.f32.mrf.mxu0
  %v1493 = vadd.f32 0.0, %v1492
  %v1494 = vpop.f32.mrf.mxu0
  %1495 = vdwg.mxu0
  %v1496 = vpack.c.bf16 %v1485, %v1482
  %v1497 = vpack.c.bf16 %v1493, %v1490
  %s1498 = scalar_lea.vmem %s7, 16
  %v1499 = vld [vmem:[%s1498] sm:$0xf]
  %v1500 = vld [vmem:[%s1498 + $0x4] sm:$0xf]
  %v1501 = vld [vmem:[%s1498 + $0x8] sm:$0xf]
  %v1502 = vld [vmem:[%s1498 + $0xc] sm:$0xf]
  %v1507 = vunpack.c.l.b16 %v1499
  %v1508 = vunpack.c.l.b16 %v1500
  %v1509 = vunpack.c.l.b16 %v1501
  %v1510 = vunpack.c.l.b16 %v1502
  %v1511 = vpack.c.b16 %v1508, %v1507
  %v1512 = vpack.c.b16 %v1510, %v1509
  %v1514 = vsel %vm1368, %v1511, 0
  %v1517 = vsel %vm1368, %v1512, 0
  %1519 = vmatprep.subr.bf16.mxu0 0
  %1520 = vmatpush1.bf16.msra.mxu0 0
  %1521 = vmatprep.subr.bf16.mxu0 0
  %1522 = vmatpush1.bf16.msra.mxu0 0
  %1523 = vmatprep.subr.bf16.mxu0 0
  %1524 = vmatpush1.bf16.msra.mxu0 0
  %1525 = vmatprep.subr.bf16.mxu0 0
  %1526 = vmatpush1.bf16.msra.mxu0 0
  %1527 = vmatprep.subr.bf16.mxu0 0
  %1528 = vmatpush1.bf16.msra.mxu0 0
  %1529 = vmatprep.subr.bf16.mxu0 0
  %1530 = vmatpush1.bf16.msra.mxu0 0
  %1531 = vmatprep.subr.bf16.mxu0 0
  %1532 = vmatpush1.bf16.msra.mxu0 %v1497
  %1533 = vmatprep.subr.bf16.mxu0 0
  %1534 = vmatpush1.bf16.msra.mxu0 %v1496
  %1535 = vmatprep.subr.bf16.mxu0 0
  %1536 = vmatpush2.bf16.msra.mxu0 0
  %1537 = vmatprep.subr.bf16.mxu0 0
  %1538 = vmatpush2.bf16.msra.mxu0 0
  %1539 = vmatprep.subr.bf16.mxu0 0
  %1540 = vmatpush2.bf16.msra.mxu0 0
  %1541 = vmatprep.subr.bf16.mxu0 0
  %1542 = vmatpush2.bf16.msra.mxu0 0
  %1543 = vmatprep.subr.bf16.mxu0 0
  %1544 = vmatpush2.bf16.msra.mxu0 0
  %1545 = vmatprep.subr.bf16.mxu0 0
  %1546 = vmatpush2.bf16.msra.mxu0 0
  %1547 = vmatprep.subr.bf16.mxu0 0
  %1548 = vmatpush2.bf16.msra.mxu0 0
  %1549 = vmatprep.subr.bf16.mxu0 0
  %1550 = vmatpush2.bf16.msra.mxu0 0
  %1551 = vmatprep.mubr.bf16.mxu0 0
  %1552 = vmatmul.mubr.bf16.gmra.mxu0 %v1514
  %v1553 = vpop.f32.mrf.mxu0
  %v1554 = vadd.f32 0.0, %v1553
  %v1555 = vpop.f32.mrf.mxu0
  %v1556 = vpop.f32.mrf.mxu0
  %v1557 = vadd.f32 0.0, %v1556
  %v1558 = vpop.f32.mrf.mxu0
  %1559 = vmatprep.mubr.bf16.mxu0 0
  %1560 = vmatmul.mubr.bf16.gmra.mxu0 %v1517
  %v1561 = vpop.f32.mrf.mxu0
  %v1562 = vadd.f32 0.0, %v1561
  %v1563 = vpop.f32.mrf.mxu0
  %v1564 = vpop.f32.mrf.mxu0
  %v1565 = vadd.f32 0.0, %v1564
  %v1566 = vpop.f32.mrf.mxu0
  %1567 = vdwg.mxu0
  %v1572 = vunpack.c.l.b16 %v1426
  %v1573 = vunpack.c.l.b16 %v1427
  %v1574 = vunpack.c.l.b16 %v1428
  %v1575 = vunpack.c.l.b16 %v1429
  %v1576 = vpack.c.b16 %v1573, %v1572
  %v1577 = vpack.c.b16 %v1575, %v1574
  %v1579 = vsel %vm1368, %v1576, 0
  %v1582 = vsel %vm1368, %v1577, 0
  %1584 = vmatprep.subr.bf16.mxu0 0
  %1585 = vmatpush1.bf16.msra.mxu0 0
  %1586 = vmatprep.subr.bf16.mxu0 0
  %1587 = vmatpush1.bf16.msra.mxu0 0
  %1588 = vmatprep.subr.bf16.mxu0 0
  %1589 = vmatpush1.bf16.msra.mxu0 0
  %1590 = vmatprep.subr.bf16.mxu0 0
  %1591 = vmatpush1.bf16.msra.mxu0 0
  %1592 = vmatprep.subr.bf16.mxu0 0
  %1593 = vmatpush1.bf16.msra.mxu0 0
  %1594 = vmatprep.subr.bf16.mxu0 0
  %1595 = vmatpush1.bf16.msra.mxu0 0
  %1596 = vmatprep.subr.bf16.mxu0 0
  %1597 = vmatpush1.bf16.msra.mxu0 %v1425
  %1598 = vmatprep.subr.bf16.mxu0 0
  %1599 = vmatpush1.bf16.msra.mxu0 %v1424
  %1600 = vmatprep.subr.bf16.mxu0 0
  %1601 = vmatpush2.bf16.msra.mxu0 0
  %1602 = vmatprep.subr.bf16.mxu0 0
  %1603 = vmatpush2.bf16.msra.mxu0 0
  %1604 = vmatprep.subr.bf16.mxu0 0
  %1605 = vmatpush2.bf16.msra.mxu0 0
  %1606 = vmatprep.subr.bf16.mxu0 0
  %1607 = vmatpush2.bf16.msra.mxu0 0
  %1608 = vmatprep.subr.bf16.mxu0 0
  %1609 = vmatpush2.bf16.msra.mxu0 0
  %1610 = vmatprep.subr.bf16.mxu0 0
  %1611 = vmatpush2.bf16.msra.mxu0 0
  %1612 = vmatprep.subr.bf16.mxu0 0
  %1613 = vmatpush2.bf16.msra.mxu0 0
  %1614 = vmatprep.subr.bf16.mxu0 0
  %1615 = vmatpush2.bf16.msra.mxu0 0
  %1616 = vmatprep.mubr.bf16.mxu0 0
  %1617 = vmatmul.mubr.bf16.gmra.mxu0 %v1579
  %v1618 = vpop.f32.mrf.mxu0
  %v1619 = vadd.f32 %v1554, %v1618
  %v1620 = vpop.f32.mrf.mxu0
  %v1621 = vpop.f32.mrf.mxu0
  %v1622 = vadd.f32 %v1557, %v1621
  %v1623 = vpop.f32.mrf.mxu0
  %1624 = vmatprep.mubr.bf16.mxu0 0
  %1625 = vmatmul.mubr.bf16.gmra.mxu0 %v1582
  %v1626 = vpop.f32.mrf.mxu0
  %v1627 = vadd.f32 %v1562, %v1626
  %v1628 = vpop.f32.mrf.mxu0
  %v1629 = vpop.f32.mrf.mxu0
  %v1630 = vadd.f32 %v1565, %v1629
  %v1631 = vpop.f32.mrf.mxu0
  %1632 = vdwg.mxu0
  %s1633 = scalar_lea.vmem %s9, 32
  %v1634 = vld [vmem:[%s1633] sm:$0xf]
  %v1635 = vld [vmem:[%s1633 + $0x4] sm:$0xf]
  %v1636 = vld [vmem:[%s1633 + $0x8] sm:$0xf]
  %v1637 = vld [vmem:[%s1633 + $0xc] sm:$0xf]
  %v1642 = vunpack.c.l.b16 %v1634
  %v1643 = vunpack.c.l.b16 %v1635
  %v1644 = vunpack.c.l.b16 %v1636
  %v1645 = vunpack.c.l.b16 %v1637
  %v1646 = vpack.c.b16 %v1643, %v1642
  %v1647 = vpack.c.b16 %v1645, %v1644
  %1650 = vmatprep.subr.bf16.mxu0 0
  %1651 = vmatpush1.bf16.msra.mxu0 0
  %1652 = vmatprep.subr.bf16.mxu0 0
  %1653 = vmatpush1.bf16.msra.mxu0 0
  %1654 = vmatprep.subr.bf16.mxu0 0
  %1655 = vmatpush1.bf16.msra.mxu0 0
  %1656 = vmatprep.subr.bf16.mxu0 0
  %1657 = vmatpush1.bf16.msra.mxu0 0
  %1658 = vmatprep.subr.bf16.mxu0 0
  %1659 = vmatpush1.bf16.msra.mxu0 0
  %1660 = vmatprep.subr.bf16.mxu0 0
  %1661 = vmatpush1.bf16.msra.mxu0 0
  %1662 = vmatprep.subr.bf16.mxu0 0
  %1663 = vmatpush1.bf16.msra.mxu0 %v1647
  %1664 = vmatprep.subr.bf16.mxu0 0
  %1665 = vmatpush1.bf16.msra.mxu0 %v1646
  %1666 = vmatprep.subr.bf16.mxu0 0
  %1667 = vmatpush2.bf16.msra.mxu0 0
  %1668 = vmatprep.subr.bf16.mxu0 0
  %1669 = vmatpush2.bf16.msra.mxu0 0
  %1670 = vmatprep.subr.bf16.mxu0 0
  %1671 = vmatpush2.bf16.msra.mxu0 0
  %1672 = vmatprep.subr.bf16.mxu0 0
  %1673 = vmatpush2.bf16.msra.mxu0 0
  %1674 = vmatprep.subr.bf16.mxu0 0
  %1675 = vmatpush2.bf16.msra.mxu0 0
  %1676 = vmatprep.subr.bf16.mxu0 0
  %1677 = vmatpush2.bf16.msra.mxu0 0
  %1678 = vmatprep.subr.bf16.mxu0 0
  %1679 = vmatpush2.bf16.msra.mxu0 0
  %1680 = vmatprep.subr.bf16.mxu0 0
  %1681 = vmatpush2.bf16.msra.mxu0 0
  %1682 = vmatprep.mubr.bf16.mxu0 0
  %1683 = vmatmul.mubr.bf16.gmra.mxu0 %v1370
  %v1684 = vpop.f32.mrf.mxu0
  %v1685 = vadd.f32 0.0, %v1684
  %v1686 = vpop.f32.mrf.mxu0
  %v1687 = vpop.f32.mrf.mxu0
  %v1688 = vadd.f32 0.0, %v1687
  %v1689 = vpop.f32.mrf.mxu0
  %1690 = vmatprep.mubr.bf16.mxu0 0
  %1691 = vmatmul.mubr.bf16.gmra.mxu0 %v1373
  %v1692 = vpop.f32.mrf.mxu0
  %v1693 = vadd.f32 0.0, %v1692
  %v1694 = vpop.f32.mrf.mxu0
  %v1695 = vpop.f32.mrf.mxu0
  %v1696 = vadd.f32 0.0, %v1695
  %v1697 = vpop.f32.mrf.mxu0
  %1698 = vdwg.mxu0
  %v1699 = vpack.c.bf16 %v1688, %v1685
  %v1700 = vpack.c.bf16 %v1696, %v1693
  %s1701 = scalar_lea.vmem %s7, 32
  %v1702 = vld [vmem:[%s1701] sm:$0xf]
  %v1703 = vld [vmem:[%s1701 + $0x4] sm:$0xf]
  %v1704 = vld [vmem:[%s1701 + $0x8] sm:$0xf]
  %v1705 = vld [vmem:[%s1701 + $0xc] sm:$0xf]
  %v1710 = vunpack.c.l.b16 %v1702
  %v1711 = vunpack.c.l.b16 %v1703
  %v1712 = vunpack.c.l.b16 %v1704
  %v1713 = vunpack.c.l.b16 %v1705
  %v1714 = vpack.c.b16 %v1711, %v1710
  %v1715 = vpack.c.b16 %v1713, %v1712
  %v1717 = vsel %vm1368, %v1714, 0
  %v1720 = vsel %vm1368, %v1715, 0
  %1722 = vmatprep.subr.bf16.mxu0 0
  %1723 = vmatpush1.bf16.msra.mxu0 0
  %1724 = vmatprep.subr.bf16.mxu0 0
  %1725 = vmatpush1.bf16.msra.mxu0 0
  %1726 = vmatprep.subr.bf16.mxu0 0
  %1727 = vmatpush1.bf16.msra.mxu0 0
  %1728 = vmatprep.subr.bf16.mxu0 0
  %1729 = vmatpush1.bf16.msra.mxu0 0
  %1730 = vmatprep.subr.bf16.mxu0 0
  %1731 = vmatpush1.bf16.msra.mxu0 0
  %1732 = vmatprep.subr.bf16.mxu0 0
  %1733 = vmatpush1.bf16.msra.mxu0 0
  %1734 = vmatprep.subr.bf16.mxu0 0
  %1735 = vmatpush1.bf16.msra.mxu0 %v1700
  %1736 = vmatprep.subr.bf16.mxu0 0
  %1737 = vmatpush1.bf16.msra.mxu0 %v1699
  %1738 = vmatprep.subr.bf16.mxu0 0
  %1739 = vmatpush2.bf16.msra.mxu0 0
  %1740 = vmatprep.subr.bf16.mxu0 0
  %1741 = vmatpush2.bf16.msra.mxu0 0
  %1742 = vmatprep.subr.bf16.mxu0 0
  %1743 = vmatpush2.bf16.msra.mxu0 0
  %1744 = vmatprep.subr.bf16.mxu0 0
  %1745 = vmatpush2.bf16.msra.mxu0 0
  %1746 = vmatprep.subr.bf16.mxu0 0
  %1747 = vmatpush2.bf16.msra.mxu0 0
  %1748 = vmatprep.subr.bf16.mxu0 0
  %1749 = vmatpush2.bf16.msra.mxu0 0
  %1750 = vmatprep.subr.bf16.mxu0 0
  %1751 = vmatpush2.bf16.msra.mxu0 0
  %1752 = vmatprep.subr.bf16.mxu0 0
  %1753 = vmatpush2.bf16.msra.mxu0 0
  %1754 = vmatprep.mubr.bf16.mxu0 0
  %1755 = vmatmul.mubr.bf16.gmra.mxu0 %v1717
  %v1756 = vpop.f32.mrf.mxu0
  %v1757 = vadd.f32 0.0, %v1756
  %v1758 = vpop.f32.mrf.mxu0
  %v1759 = vpop.f32.mrf.mxu0
  %v1760 = vadd.f32 0.0, %v1759
  %v1761 = vpop.f32.mrf.mxu0
  %1762 = vmatprep.mubr.bf16.mxu0 0
  %1763 = vmatmul.mubr.bf16.gmra.mxu0 %v1720
  %v1764 = vpop.f32.mrf.mxu0
  %v1765 = vadd.f32 0.0, %v1764
  %v1766 = vpop.f32.mrf.mxu0
  %v1767 = vpop.f32.mrf.mxu0
  %v1768 = vadd.f32 0.0, %v1767
  %v1769 = vpop.f32.mrf.mxu0
  %1770 = vdwg.mxu0
  %v1771 = vadd.f32 %v1619, %v1757
  %v1772 = vadd.f32 %v1622, %v1760
  %v1773 = vadd.f32 %v1627, %v1765
  %v1774 = vadd.f32 %v1630, %v1768
  %s1775 = scalar_lea.vmem %s9, 48
  %v1776 = vld [vmem:[%s1775] sm:$0xf]
  %v1777 = vld [vmem:[%s1775 + $0x4] sm:$0xf]
  %v1778 = vld [vmem:[%s1775 + $0x8] sm:$0xf]
  %v1779 = vld [vmem:[%s1775 + $0xc] sm:$0xf]
  %v1784 = vunpack.c.l.b16 %v1776
  %v1785 = vunpack.c.l.b16 %v1777
  %v1786 = vunpack.c.l.b16 %v1778
  %v1787 = vunpack.c.l.b16 %v1779
  %v1788 = vpack.c.b16 %v1785, %v1784
  %v1789 = vpack.c.b16 %v1787, %v1786
  %1792 = vmatprep.subr.bf16.mxu0 0
  %1793 = vmatpush1.bf16.msra.mxu0 0
  %1794 = vmatprep.subr.bf16.mxu0 0
  %1795 = vmatpush1.bf16.msra.mxu0 0
  %1796 = vmatprep.subr.bf16.mxu0 0
  %1797 = vmatpush1.bf16.msra.mxu0 0
  %1798 = vmatprep.subr.bf16.mxu0 0
  %1799 = vmatpush1.bf16.msra.mxu0 0
  %1800 = vmatprep.subr.bf16.mxu0 0
  %1801 = vmatpush1.bf16.msra.mxu0 0
  %1802 = vmatprep.subr.bf16.mxu0 0
  %1803 = vmatpush1.bf16.msra.mxu0 0
  %1804 = vmatprep.subr.bf16.mxu0 0
  %1805 = vmatpush1.bf16.msra.mxu0 %v1789
  %1806 = vmatprep.subr.bf16.mxu0 0
  %1807 = vmatpush1.bf16.msra.mxu0 %v1788
  %1808 = vmatprep.subr.bf16.mxu0 0
  %1809 = vmatpush2.bf16.msra.mxu0 0
  %1810 = vmatprep.subr.bf16.mxu0 0
  %1811 = vmatpush2.bf16.msra.mxu0 0
  %1812 = vmatprep.subr.bf16.mxu0 0
  %1813 = vmatpush2.bf16.msra.mxu0 0
  %1814 = vmatprep.subr.bf16.mxu0 0
  %1815 = vmatpush2.bf16.msra.mxu0 0
  %1816 = vmatprep.subr.bf16.mxu0 0
  %1817 = vmatpush2.bf16.msra.mxu0 0
  %1818 = vmatprep.subr.bf16.mxu0 0
  %1819 = vmatpush2.bf16.msra.mxu0 0
  %1820 = vmatprep.subr.bf16.mxu0 0
  %1821 = vmatpush2.bf16.msra.mxu0 0
  %1822 = vmatprep.subr.bf16.mxu0 0
  %1823 = vmatpush2.bf16.msra.mxu0 0
  %1824 = vmatprep.mubr.bf16.mxu0 0
  %1825 = vmatmul.mubr.bf16.gmra.mxu0 %v1370
  %v1826 = vpop.f32.mrf.mxu0
  %v1827 = vadd.f32 0.0, %v1826
  %v1828 = vpop.f32.mrf.mxu0
  %v1829 = vpop.f32.mrf.mxu0
  %v1830 = vadd.f32 0.0, %v1829
  %v1831 = vpop.f32.mrf.mxu0
  %1832 = vmatprep.mubr.bf16.mxu0 0
  %1833 = vmatmul.mubr.bf16.gmra.mxu0 %v1373
  %v1834 = vpop.f32.mrf.mxu0
  %v1835 = vadd.f32 0.0, %v1834
  %v1836 = vpop.f32.mrf.mxu0
  %v1837 = vpop.f32.mrf.mxu0
  %v1838 = vadd.f32 0.0, %v1837
  %v1839 = vpop.f32.mrf.mxu0
  %1840 = vdwg.mxu0
  %v1841 = vpack.c.bf16 %v1830, %v1827
  %v1842 = vpack.c.bf16 %v1838, %v1835
  %s1843 = scalar_lea.vmem %s7, 48
  %v1844 = vld [vmem:[%s1843] sm:$0xf]
  %v1845 = vld [vmem:[%s1843 + $0x4] sm:$0xf]
  %v1846 = vld [vmem:[%s1843 + $0x8] sm:$0xf]
  %v1847 = vld [vmem:[%s1843 + $0xc] sm:$0xf]
  %v1852 = vunpack.c.l.b16 %v1844
  %v1853 = vunpack.c.l.b16 %v1845
  %v1854 = vunpack.c.l.b16 %v1846
  %v1855 = vunpack.c.l.b16 %v1847
  %v1856 = vpack.c.b16 %v1853, %v1852
  %v1857 = vpack.c.b16 %v1855, %v1854
  %v1859 = vsel %vm1368, %v1856, 0
  %v1862 = vsel %vm1368, %v1857, 0
  %1864 = vmatprep.subr.bf16.mxu0 0
  %1865 = vmatpush1.bf16.msra.mxu0 0
  %1866 = vmatprep.subr.bf16.mxu0 0
  %1867 = vmatpush1.bf16.msra.mxu0 0
  %1868 = vmatprep.subr.bf16.mxu0 0
  %1869 = vmatpush1.bf16.msra.mxu0 0
  %1870 = vmatprep.subr.bf16.mxu0 0
  %1871 = vmatpush1.bf16.msra.mxu0 0
  %1872 = vmatprep.subr.bf16.mxu0 0
  %1873 = vmatpush1.bf16.msra.mxu0 0
  %1874 = vmatprep.subr.bf16.mxu0 0
  %1875 = vmatpush1.bf16.msra.mxu0 0
  %1876 = vmatprep.subr.bf16.mxu0 0
  %1877 = vmatpush1.bf16.msra.mxu0 %v1842
  %1878 = vmatprep.subr.bf16.mxu0 0
  %1879 = vmatpush1.bf16.msra.mxu0 %v1841
  %1880 = vmatprep.subr.bf16.mxu0 0
  %1881 = vmatpush2.bf16.msra.mxu0 0
  %1882 = vmatprep.subr.bf16.mxu0 0
  %1883 = vmatpush2.bf16.msra.mxu0 0
  %1884 = vmatprep.subr.bf16.mxu0 0
  %1885 = vmatpush2.bf16.msra.mxu0 0
  %1886 = vmatprep.subr.bf16.mxu0 0
  %1887 = vmatpush2.bf16.msra.mxu0 0
  %1888 = vmatprep.subr.bf16.mxu0 0
  %1889 = vmatpush2.bf16.msra.mxu0 0
  %1890 = vmatprep.subr.bf16.mxu0 0
  %1891 = vmatpush2.bf16.msra.mxu0 0
  %1892 = vmatprep.subr.bf16.mxu0 0
  %1893 = vmatpush2.bf16.msra.mxu0 0
  %1894 = vmatprep.subr.bf16.mxu0 0
  %1895 = vmatpush2.bf16.msra.mxu0 0
  %1896 = vmatprep.mubr.bf16.mxu0 0
  %1897 = vmatmul.mubr.bf16.gmra.mxu0 %v1859
  %v1898 = vpop.f32.mrf.mxu0
  %v1899 = vadd.f32 0.0, %v1898
  %v1900 = vpop.f32.mrf.mxu0
  %v1901 = vpop.f32.mrf.mxu0
  %v1902 = vadd.f32 0.0, %v1901
  %v1903 = vpop.f32.mrf.mxu0
  %1904 = vmatprep.mubr.bf16.mxu0 0
  %1905 = vmatmul.mubr.bf16.gmra.mxu0 %v1862
  %v1906 = vpop.f32.mrf.mxu0
  %v1907 = vadd.f32 0.0, %v1906
  %v1908 = vpop.f32.mrf.mxu0
  %v1909 = vpop.f32.mrf.mxu0
  %v1910 = vadd.f32 0.0, %v1909
  %v1911 = vpop.f32.mrf.mxu0
  %1912 = vdwg.mxu0
  %v1913 = vadd.f32 %v1771, %v1899
  %v1914 = vadd.f32 %v1772, %v1902
  %v1915 = vadd.f32 %v1773, %v1907
  %v1916 = vadd.f32 %v1774, %v1910
  %v1917 = vld [vmem:[%s8] sm:$0xff]
  %v1918 = vld [vmem:[%s8 + $0x8] sm:$0xff]
  %v1919 = vld [vmem:[%s8 + $0x10] sm:$0xff]
  %v1920 = vld [vmem:[%s8 + $0x18] sm:$0xff]
  %1922 = vset.pattern.permute.xlu0 0
  %1923 = vperm.xlu0 %1922, %v1917
  %v1924 = vpop.permute.xlu0 %1923
  %1927 = vset.pattern.permute.xlu0 0
  %1928 = vperm.xlu0 %1927, %v1918
  %v1929 = vpop.permute.xlu0 %1928
  %1932 = vset.pattern.permute.xlu0 0
  %1933 = vperm.xlu0 %1932, %v1919
  %v1934 = vpop.permute.xlu0 %1933
  %1937 = vset.pattern.permute.xlu0 0
  %1938 = vperm.xlu0 %1937, %v1920
  %v1939 = vpop.permute.xlu0 %1938
  %v1941 = vadd.f32 %v1913, %v1924
  %v1942 = vadd.f32 %v1914, %v1929
  %v1943 = vadd.f32 %v1915, %v1934
  %v1944 = vadd.f32 %v1916, %v1939
  %v1945 = vmax.f32 %v1941, 0.0
  %v1946 = vmax.f32 %v1942, 0.0
  %v1947 = vmax.f32 %v1943, 0.0
  %v1948 = vmax.f32 %v1944, 0.0
  %v1949 = vpack.c.bf16 %v1946, %v1945
  %v1950 = vpack.c.bf16 %v1948, %v1947
  %v1951 = vld [vmem:[%s12] sm:$0xf]
  %v1952 = vld [vmem:[%s12 + $0x4] sm:$0xf]
  %v1955 = vunpack.c.l.b16 %v1951
  %v1956 = vunpack.c.l.b16 %v1952
  %v1957 = vpack.c.b16 %v1956, %v1955
  %v1960 = vsel %vm899, %v1949, 0
  %v1963 = vsel %vm899, %v1950, 0
  %1965 = vmatprep.subr.bf16.mxu0 0
  %1966 = vmatpush1.bf16.msra.mxu0 0
  %1967 = vmatprep.subr.bf16.mxu0 0
  %1968 = vmatpush1.bf16.msra.mxu0 0
  %1969 = vmatprep.subr.bf16.mxu0 0
  %1970 = vmatpush1.bf16.msra.mxu0 0
  %1971 = vmatprep.subr.bf16.mxu0 0
  %1972 = vmatpush1.bf16.msra.mxu0 0
  %1973 = vmatprep.subr.bf16.mxu0 0
  %1974 = vmatpush1.bf16.msra.mxu0 0
  %1975 = vmatprep.subr.bf16.mxu0 0
  %1976 = vmatpush1.bf16.msra.mxu0 0
  %1977 = vmatprep.subr.bf16.mxu0 0
  %1978 = vmatpush1.bf16.msra.mxu0 0
  %1979 = vmatprep.subr.bf16.mxu0 0
  %1980 = vmatpush1.bf16.msra.mxu0 %v1957
  %1981 = vmatprep.subr.bf16.mxu0 0
  %1982 = vmatpush2.bf16.msra.mxu0 0
  %1983 = vmatprep.subr.bf16.mxu0 0
  %1984 = vmatpush2.bf16.msra.mxu0 0
  %1985 = vmatprep.subr.bf16.mxu0 0
  %1986 = vmatpush2.bf16.msra.mxu0 0
  %1987 = vmatprep.subr.bf16.mxu0 0
  %1988 = vmatpush2.bf16.msra.mxu0 0
  %1989 = vmatprep.subr.bf16.mxu0 0
  %1990 = vmatpush2.bf16.msra.mxu0 0
  %1991 = vmatprep.subr.bf16.mxu0 0
  %1992 = vmatpush2.bf16.msra.mxu0 0
  %1993 = vmatprep.subr.bf16.mxu0 0
  %1994 = vmatpush2.bf16.msra.mxu0 0
  %1995 = vmatprep.subr.bf16.mxu0 0
  %1996 = vmatpush2.bf16.msra.mxu0 0
  %1997 = vmatprep.mubr.bf16.mxu0 0
  %1998 = vmatmul.mubr.bf16.gmra.mxu0 %v1960
  %v1999 = vpop.f32.mrf.mxu0
  %v2000 = vadd.f32 0.0, %v1999
  %v2001 = vpop.f32.mrf.mxu0
  %v2002 = vpop.f32.mrf.mxu0
  %v2003 = vadd.f32 0.0, %v2002
  %v2004 = vpop.f32.mrf.mxu0
  %2005 = vmatprep.mubr.bf16.mxu0 0
  %2006 = vmatmul.mubr.bf16.gmra.mxu0 %v1963
  %v2007 = vpop.f32.mrf.mxu0
  %v2008 = vadd.f32 0.0, %v2007
  %v2009 = vpop.f32.mrf.mxu0
  %v2010 = vpop.f32.mrf.mxu0
  %v2011 = vadd.f32 0.0, %v2010
  %v2012 = vpop.f32.mrf.mxu0
  %2013 = vdwg.mxu0
  %v2014 = vpack.c.bf16 %v2003, %v2000
  %v2015 = vpack.c.bf16 %v2011, %v2008
  %v2016 = vld [vmem:[%s10] sm:$0xf]
  %v2017 = vld [vmem:[%s10 + $0x4] sm:$0xf]
  %v2018 = vld [vmem:[%s10 + $0x8] sm:$0xf]
  %v2019 = vld [vmem:[%s10 + $0xc] sm:$0xf]
  %s2020 = scalar_lea.vmem %s12, 8
  %v2021 = vld [vmem:[%s2020] sm:$0xf]
  %v2022 = vld [vmem:[%s2020 + $0x4] sm:$0xf]
  %v2025 = vunpack.c.l.b16 %v2021
  %v2026 = vunpack.c.l.b16 %v2022
  %v2027 = vpack.c.b16 %v2026, %v2025
  %2029 = vmatprep.subr.bf16.mxu0 0
  %2030 = vmatpush1.bf16.msra.mxu0 0
  %2031 = vmatprep.subr.bf16.mxu0 0
  %2032 = vmatpush1.bf16.msra.mxu0 0
  %2033 = vmatprep.subr.bf16.mxu0 0
  %2034 = vmatpush1.bf16.msra.mxu0 0
  %2035 = vmatprep.subr.bf16.mxu0 0
  %2036 = vmatpush1.bf16.msra.mxu0 0
  %2037 = vmatprep.subr.bf16.mxu0 0
  %2038 = vmatpush1.bf16.msra.mxu0 0
  %2039 = vmatprep.subr.bf16.mxu0 0
  %2040 = vmatpush1.bf16.msra.mxu0 0
  %2041 = vmatprep.subr.bf16.mxu0 0
  %2042 = vmatpush1.bf16.msra.mxu0 0
  %2043 = vmatprep.subr.bf16.mxu0 0
  %2044 = vmatpush1.bf16.msra.mxu0 %v2027
  %2045 = vmatprep.subr.bf16.mxu0 0
  %2046 = vmatpush2.bf16.msra.mxu0 0
  %2047 = vmatprep.subr.bf16.mxu0 0
  %2048 = vmatpush2.bf16.msra.mxu0 0
  %2049 = vmatprep.subr.bf16.mxu0 0
  %2050 = vmatpush2.bf16.msra.mxu0 0
  %2051 = vmatprep.subr.bf16.mxu0 0
  %2052 = vmatpush2.bf16.msra.mxu0 0
  %2053 = vmatprep.subr.bf16.mxu0 0
  %2054 = vmatpush2.bf16.msra.mxu0 0
  %2055 = vmatprep.subr.bf16.mxu0 0
  %2056 = vmatpush2.bf16.msra.mxu0 0
  %2057 = vmatprep.subr.bf16.mxu0 0
  %2058 = vmatpush2.bf16.msra.mxu0 0
  %2059 = vmatprep.subr.bf16.mxu0 0
  %2060 = vmatpush2.bf16.msra.mxu0 0
  %2061 = vmatprep.mubr.bf16.mxu0 0
  %2062 = vmatmul.mubr.bf16.gmra.mxu0 %v1960
  %v2063 = vpop.f32.mrf.mxu0
  %v2064 = vadd.f32 0.0, %v2063
  %v2065 = vpop.f32.mrf.mxu0
  %v2066 = vpop.f32.mrf.mxu0
  %v2067 = vadd.f32 0.0, %v2066
  %v2068 = vpop.f32.mrf.mxu0
  %2069 = vmatprep.mubr.bf16.mxu0 0
  %2070 = vmatmul.mubr.bf16.gmra.mxu0 %v1963
  %v2071 = vpop.f32.mrf.mxu0
  %v2072 = vadd.f32 0.0, %v2071
  %v2073 = vpop.f32.mrf.mxu0
  %v2074 = vpop.f32.mrf.mxu0
  %v2075 = vadd.f32 0.0, %v2074
  %v2076 = vpop.f32.mrf.mxu0
  %2077 = vdwg.mxu0
  %v2078 = vpack.c.bf16 %v2067, %v2064
  %v2079 = vpack.c.bf16 %v2075, %v2072
  %s2080 = scalar_lea.vmem %s10, 16
  %v2081 = vld [vmem:[%s2080] sm:$0xf]
  %v2082 = vld [vmem:[%s2080 + $0x4] sm:$0xf]
  %v2083 = vld [vmem:[%s2080 + $0x8] sm:$0xf]
  %v2084 = vld [vmem:[%s2080 + $0xc] sm:$0xf]
  %v2089 = vunpack.c.l.b16 %v2081
  %v2090 = vunpack.c.l.b16 %v2082
  %v2091 = vunpack.c.l.b16 %v2083
  %v2092 = vunpack.c.l.b16 %v2084
  %v2093 = vpack.c.b16 %v2090, %v2089
  %v2094 = vpack.c.b16 %v2092, %v2091
  %v2096 = vsel %vm1368, %v2093, 0
  %v2099 = vsel %vm1368, %v2094, 0
  %2101 = vmatprep.subr.bf16.mxu0 0
  %2102 = vmatpush1.bf16.msra.mxu0 0
  %2103 = vmatprep.subr.bf16.mxu0 0
  %2104 = vmatpush1.bf16.msra.mxu0 0
  %2105 = vmatprep.subr.bf16.mxu0 0
  %2106 = vmatpush1.bf16.msra.mxu0 0
  %2107 = vmatprep.subr.bf16.mxu0 0
  %2108 = vmatpush1.bf16.msra.mxu0 0
  %2109 = vmatprep.subr.bf16.mxu0 0
  %2110 = vmatpush1.bf16.msra.mxu0 0
  %2111 = vmatprep.subr.bf16.mxu0 0
  %2112 = vmatpush1.bf16.msra.mxu0 0
  %2113 = vmatprep.subr.bf16.mxu0 0
  %2114 = vmatpush1.bf16.msra.mxu0 %v2079
  %2115 = vmatprep.subr.bf16.mxu0 0
  %2116 = vmatpush1.bf16.msra.mxu0 %v2078
  %2117 = vmatprep.subr.bf16.mxu0 0
  %2118 = vmatpush2.bf16.msra.mxu0 0
  %2119 = vmatprep.subr.bf16.mxu0 0
  %2120 = vmatpush2.bf16.msra.mxu0 0
  %2121 = vmatprep.subr.bf16.mxu0 0
  %2122 = vmatpush2.bf16.msra.mxu0 0
  %2123 = vmatprep.subr.bf16.mxu0 0
  %2124 = vmatpush2.bf16.msra.mxu0 0
  %2125 = vmatprep.subr.bf16.mxu0 0
  %2126 = vmatpush2.bf16.msra.mxu0 0
  %2127 = vmatprep.subr.bf16.mxu0 0
  %2128 = vmatpush2.bf16.msra.mxu0 0
  %2129 = vmatprep.subr.bf16.mxu0 0
  %2130 = vmatpush2.bf16.msra.mxu0 0
  %2131 = vmatprep.subr.bf16.mxu0 0
  %2132 = vmatpush2.bf16.msra.mxu0 0
  %2133 = vmatprep.mubr.bf16.mxu0 0
  %2134 = vmatmul.mubr.bf16.gmra.mxu0 %v2096
  %v2135 = vpop.f32.mrf.mxu0
  %v2136 = vadd.f32 0.0, %v2135
  %v2137 = vpop.f32.mrf.mxu0
  %v2138 = vpop.f32.mrf.mxu0
  %v2139 = vadd.f32 0.0, %v2138
  %v2140 = vpop.f32.mrf.mxu0
  %2141 = vmatprep.mubr.bf16.mxu0 0
  %2142 = vmatmul.mubr.bf16.gmra.mxu0 %v2099
  %v2143 = vpop.f32.mrf.mxu0
  %v2144 = vadd.f32 0.0, %v2143
  %v2145 = vpop.f32.mrf.mxu0
  %v2146 = vpop.f32.mrf.mxu0
  %v2147 = vadd.f32 0.0, %v2146
  %v2148 = vpop.f32.mrf.mxu0
  %2149 = vdwg.mxu0
  %v2154 = vunpack.c.l.b16 %v2016
  %v2155 = vunpack.c.l.b16 %v2017
  %v2156 = vunpack.c.l.b16 %v2018
  %v2157 = vunpack.c.l.b16 %v2019
  %v2158 = vpack.c.b16 %v2155, %v2154
  %v2159 = vpack.c.b16 %v2157, %v2156
  %v2161 = vsel %vm1368, %v2158, 0
  %v2164 = vsel %vm1368, %v2159, 0
  %2166 = vmatprep.subr.bf16.mxu0 0
  %2167 = vmatpush1.bf16.msra.mxu0 0
  %2168 = vmatprep.subr.bf16.mxu0 0
  %2169 = vmatpush1.bf16.msra.mxu0 0
  %2170 = vmatprep.subr.bf16.mxu0 0
  %2171 = vmatpush1.bf16.msra.mxu0 0
  %2172 = vmatprep.subr.bf16.mxu0 0
  %2173 = vmatpush1.bf16.msra.mxu0 0
  %2174 = vmatprep.subr.bf16.mxu0 0
  %2175 = vmatpush1.bf16.msra.mxu0 0
  %2176 = vmatprep.subr.bf16.mxu0 0
  %2177 = vmatpush1.bf16.msra.mxu0 0
  %2178 = vmatprep.subr.bf16.mxu0 0
  %2179 = vmatpush1.bf16.msra.mxu0 %v2015
  %2180 = vmatprep.subr.bf16.mxu0 0
  %2181 = vmatpush1.bf16.msra.mxu0 %v2014
  %2182 = vmatprep.subr.bf16.mxu0 0
  %2183 = vmatpush2.bf16.msra.mxu0 0
  %2184 = vmatprep.subr.bf16.mxu0 0
  %2185 = vmatpush2.bf16.msra.mxu0 0
  %2186 = vmatprep.subr.bf16.mxu0 0
  %2187 = vmatpush2.bf16.msra.mxu0 0
  %2188 = vmatprep.subr.bf16.mxu0 0
  %2189 = vmatpush2.bf16.msra.mxu0 0
  %2190 = vmatprep.subr.bf16.mxu0 0
  %2191 = vmatpush2.bf16.msra.mxu0 0
  %2192 = vmatprep.subr.bf16.mxu0 0
  %2193 = vmatpush2.bf16.msra.mxu0 0
  %2194 = vmatprep.subr.bf16.mxu0 0
  %2195 = vmatpush2.bf16.msra.mxu0 0
  %2196 = vmatprep.subr.bf16.mxu0 0
  %2197 = vmatpush2.bf16.msra.mxu0 0
  %2198 = vmatprep.mubr.bf16.mxu0 0
  %2199 = vmatmul.mubr.bf16.gmra.mxu0 %v2161
  %v2200 = vpop.f32.mrf.mxu0
  %v2201 = vadd.f32 %v2136, %v2200
  %v2202 = vpop.f32.mrf.mxu0
  %v2203 = vpop.f32.mrf.mxu0
  %v2204 = vadd.f32 %v2139, %v2203
  %v2205 = vpop.f32.mrf.mxu0
  %2206 = vmatprep.mubr.bf16.mxu0 0
  %2207 = vmatmul.mubr.bf16.gmra.mxu0 %v2164
  %v2208 = vpop.f32.mrf.mxu0
  %v2209 = vadd.f32 %v2144, %v2208
  %v2210 = vpop.f32.mrf.mxu0
  %v2211 = vpop.f32.mrf.mxu0
  %v2212 = vadd.f32 %v2147, %v2211
  %v2213 = vpop.f32.mrf.mxu0
  %2214 = vdwg.mxu0
  %s2215 = scalar_lea.vmem %s12, 16
  %v2216 = vld [vmem:[%s2215] sm:$0xf]
  %v2217 = vld [vmem:[%s2215 + $0x4] sm:$0xf]
  %v2220 = vunpack.c.l.b16 %v2216
  %v2221 = vunpack.c.l.b16 %v2217
  %v2222 = vpack.c.b16 %v2221, %v2220
  %2224 = vmatprep.subr.bf16.mxu0 0
  %2225 = vmatpush1.bf16.msra.mxu0 0
  %2226 = vmatprep.subr.bf16.mxu0 0
  %2227 = vmatpush1.bf16.msra.mxu0 0
  %2228 = vmatprep.subr.bf16.mxu0 0
  %2229 = vmatpush1.bf16.msra.mxu0 0
  %2230 = vmatprep.subr.bf16.mxu0 0
  %2231 = vmatpush1.bf16.msra.mxu0 0
  %2232 = vmatprep.subr.bf16.mxu0 0
  %2233 = vmatpush1.bf16.msra.mxu0 0
  %2234 = vmatprep.subr.bf16.mxu0 0
  %2235 = vmatpush1.bf16.msra.mxu0 0
  %2236 = vmatprep.subr.bf16.mxu0 0
  %2237 = vmatpush1.bf16.msra.mxu0 0
  %2238 = vmatprep.subr.bf16.mxu0 0
  %2239 = vmatpush1.bf16.msra.mxu0 %v2222
  %2240 = vmatprep.subr.bf16.mxu0 0
  %2241 = vmatpush2.bf16.msra.mxu0 0
  %2242 = vmatprep.subr.bf16.mxu0 0
  %2243 = vmatpush2.bf16.msra.mxu0 0
  %2244 = vmatprep.subr.bf16.mxu0 0
  %2245 = vmatpush2.bf16.msra.mxu0 0
  %2246 = vmatprep.subr.bf16.mxu0 0
  %2247 = vmatpush2.bf16.msra.mxu0 0
  %2248 = vmatprep.subr.bf16.mxu0 0
  %2249 = vmatpush2.bf16.msra.mxu0 0
  %2250 = vmatprep.subr.bf16.mxu0 0
  %2251 = vmatpush2.bf16.msra.mxu0 0
  %2252 = vmatprep.subr.bf16.mxu0 0
  %2253 = vmatpush2.bf16.msra.mxu0 0
  %2254 = vmatprep.subr.bf16.mxu0 0
  %2255 = vmatpush2.bf16.msra.mxu0 0
  %2256 = vmatprep.mubr.bf16.mxu0 0
  %2257 = vmatmul.mubr.bf16.gmra.mxu0 %v1960
  %v2258 = vpop.f32.mrf.mxu0
  %v2259 = vadd.f32 0.0, %v2258
  %v2260 = vpop.f32.mrf.mxu0
  %v2261 = vpop.f32.mrf.mxu0
  %v2262 = vadd.f32 0.0, %v2261
  %v2263 = vpop.f32.mrf.mxu0
  %2264 = vmatprep.mubr.bf16.mxu0 0
  %2265 = vmatmul.mubr.bf16.gmra.mxu0 %v1963
  %v2266 = vpop.f32.mrf.mxu0
  %v2267 = vadd.f32 0.0, %v2266
  %v2268 = vpop.f32.mrf.mxu0
  %v2269 = vpop.f32.mrf.mxu0
  %v2270 = vadd.f32 0.0, %v2269
  %v2271 = vpop.f32.mrf.mxu0
  %2272 = vdwg.mxu0
  %v2273 = vpack.c.bf16 %v2262, %v2259
  %v2274 = vpack.c.bf16 %v2270, %v2267
  %s2275 = scalar_lea.vmem %s10, 32
  %v2276 = vld [vmem:[%s2275] sm:$0xf]
  %v2277 = vld [vmem:[%s2275 + $0x4] sm:$0xf]
  %v2278 = vld [vmem:[%s2275 + $0x8] sm:$0xf]
  %v2279 = vld [vmem:[%s2275 + $0xc] sm:$0xf]
  %v2284 = vunpack.c.l.b16 %v2276
  %v2285 = vunpack.c.l.b16 %v2277
  %v2286 = vunpack.c.l.b16 %v2278
  %v2287 = vunpack.c.l.b16 %v2279
  %v2288 = vpack.c.b16 %v2285, %v2284
  %v2289 = vpack.c.b16 %v2287, %v2286
  %v2291 = vsel %vm1368, %v2288, 0
  %v2294 = vsel %vm1368, %v2289, 0
  %2296 = vmatprep.subr.bf16.mxu0 0
  %2297 = vmatpush1.bf16.msra.mxu0 0
  %2298 = vmatprep.subr.bf16.mxu0 0
  %2299 = vmatpush1.bf16.msra.mxu0 0
  %2300 = vmatprep.subr.bf16.mxu0 0
  %2301 = vmatpush1.bf16.msra.mxu0 0
  %2302 = vmatprep.subr.bf16.mxu0 0
  %2303 = vmatpush1.bf16.msra.mxu0 0
  %2304 = vmatprep.subr.bf16.mxu0 0
  %2305 = vmatpush1.bf16.msra.mxu0 0
  %2306 = vmatprep.subr.bf16.mxu0 0
  %2307 = vmatpush1.bf16.msra.mxu0 0
  %2308 = vmatprep.subr.bf16.mxu0 0
  %2309 = vmatpush1.bf16.msra.mxu0 %v2274
  %2310 = vmatprep.subr.bf16.mxu0 0
  %2311 = vmatpush1.bf16.msra.mxu0 %v2273
  %2312 = vmatprep.subr.bf16.mxu0 0
  %2313 = vmatpush2.bf16.msra.mxu0 0
  %2314 = vmatprep.subr.bf16.mxu0 0
  %2315 = vmatpush2.bf16.msra.mxu0 0
  %2316 = vmatprep.subr.bf16.mxu0 0
  %2317 = vmatpush2.bf16.msra.mxu0 0
  %2318 = vmatprep.subr.bf16.mxu0 0
  %2319 = vmatpush2.bf16.msra.mxu0 0
  %2320 = vmatprep.subr.bf16.mxu0 0
  %2321 = vmatpush2.bf16.msra.mxu0 0
  %2322 = vmatprep.subr.bf16.mxu0 0
  %2323 = vmatpush2.bf16.msra.mxu0 0
  %2324 = vmatprep.subr.bf16.mxu0 0
  %2325 = vmatpush2.bf16.msra.mxu0 0
  %2326 = vmatprep.subr.bf16.mxu0 0
  %2327 = vmatpush2.bf16.msra.mxu0 0
  %2328 = vmatprep.mubr.bf16.mxu0 0
  %2329 = vmatmul.mubr.bf16.gmra.mxu0 %v2291
  %v2330 = vpop.f32.mrf.mxu0
  %v2331 = vadd.f32 0.0, %v2330
  %v2332 = vpop.f32.mrf.mxu0
  %v2333 = vpop.f32.mrf.mxu0
  %v2334 = vadd.f32 0.0, %v2333
  %v2335 = vpop.f32.mrf.mxu0
  %2336 = vmatprep.mubr.bf16.mxu0 0
  %2337 = vmatmul.mubr.bf16.gmra.mxu0 %v2294
  %v2338 = vpop.f32.mrf.mxu0
  %v2339 = vadd.f32 0.0, %v2338
  %v2340 = vpop.f32.mrf.mxu0
  %v2341 = vpop.f32.mrf.mxu0
  %v2342 = vadd.f32 0.0, %v2341
  %v2343 = vpop.f32.mrf.mxu0
  %2344 = vdwg.mxu0
  %v2345 = vadd.f32 %v2201, %v2331
  %v2346 = vadd.f32 %v2204, %v2334
  %v2347 = vadd.f32 %v2209, %v2339
  %v2348 = vadd.f32 %v2212, %v2342
  %s2349 = scalar_lea.vmem %s12, 24
  %v2350 = vld [vmem:[%s2349] sm:$0xf]
  %v2351 = vld [vmem:[%s2349 + $0x4] sm:$0xf]
  %v2354 = vunpack.c.l.b16 %v2350
  %v2355 = vunpack.c.l.b16 %v2351
  %v2356 = vpack.c.b16 %v2355, %v2354
  %2358 = vmatprep.subr.bf16.mxu0 0
  %2359 = vmatpush1.bf16.msra.mxu0 0
  %2360 = vmatprep.subr.bf16.mxu0 0
  %2361 = vmatpush1.bf16.msra.mxu0 0
  %2362 = vmatprep.subr.bf16.mxu0 0
  %2363 = vmatpush1.bf16.msra.mxu0 0
  %2364 = vmatprep.subr.bf16.mxu0 0
  %2365 = vmatpush1.bf16.msra.mxu0 0
  %2366 = vmatprep.subr.bf16.mxu0 0
  %2367 = vmatpush1.bf16.msra.mxu0 0
  %2368 = vmatprep.subr.bf16.mxu0 0
  %2369 = vmatpush1.bf16.msra.mxu0 0
  %2370 = vmatprep.subr.bf16.mxu0 0
  %2371 = vmatpush1.bf16.msra.mxu0 0
  %2372 = vmatprep.subr.bf16.mxu0 0
  %2373 = vmatpush1.bf16.msra.mxu0 %v2356
  %2374 = vmatprep.subr.bf16.mxu0 0
  %2375 = vmatpush2.bf16.msra.mxu0 0
  %2376 = vmatprep.subr.bf16.mxu0 0
  %2377 = vmatpush2.bf16.msra.mxu0 0
  %2378 = vmatprep.subr.bf16.mxu0 0
  %2379 = vmatpush2.bf16.msra.mxu0 0
  %2380 = vmatprep.subr.bf16.mxu0 0
  %2381 = vmatpush2.bf16.msra.mxu0 0
  %2382 = vmatprep.subr.bf16.mxu0 0
  %2383 = vmatpush2.bf16.msra.mxu0 0
  %2384 = vmatprep.subr.bf16.mxu0 0
  %2385 = vmatpush2.bf16.msra.mxu0 0
  %2386 = vmatprep.subr.bf16.mxu0 0
  %2387 = vmatpush2.bf16.msra.mxu0 0
  %2388 = vmatprep.subr.bf16.mxu0 0
  %2389 = vmatpush2.bf16.msra.mxu0 0
  %2390 = vmatprep.mubr.bf16.mxu0 0
  %2391 = vmatmul.mubr.bf16.gmra.mxu0 %v1960
  %v2392 = vpop.f32.mrf.mxu0
  %v2393 = vadd.f32 0.0, %v2392
  %v2394 = vpop.f32.mrf.mxu0
  %v2395 = vpop.f32.mrf.mxu0
  %v2396 = vadd.f32 0.0, %v2395
  %v2397 = vpop.f32.mrf.mxu0
  %2398 = vmatprep.mubr.bf16.mxu0 0
  %2399 = vmatmul.mubr.bf16.gmra.mxu0 %v1963
  %v2400 = vpop.f32.mrf.mxu0
  %v2401 = vadd.f32 0.0, %v2400
  %v2402 = vpop.f32.mrf.mxu0
  %v2403 = vpop.f32.mrf.mxu0
  %v2404 = vadd.f32 0.0, %v2403
  %v2405 = vpop.f32.mrf.mxu0
  %2406 = vdwg.mxu0
  %v2407 = vpack.c.bf16 %v2396, %v2393
  %v2408 = vpack.c.bf16 %v2404, %v2401
  %s2409 = scalar_lea.vmem %s10, 48
  %v2410 = vld [vmem:[%s2409] sm:$0xf]
  %v2411 = vld [vmem:[%s2409 + $0x4] sm:$0xf]
  %v2412 = vld [vmem:[%s2409 + $0x8] sm:$0xf]
  %v2413 = vld [vmem:[%s2409 + $0xc] sm:$0xf]
  %v2418 = vunpack.c.l.b16 %v2410
  %v2419 = vunpack.c.l.b16 %v2411
  %v2420 = vunpack.c.l.b16 %v2412
  %v2421 = vunpack.c.l.b16 %v2413
  %v2422 = vpack.c.b16 %v2419, %v2418
  %v2423 = vpack.c.b16 %v2421, %v2420
  %v2425 = vsel %vm1368, %v2422, 0
  %v2428 = vsel %vm1368, %v2423, 0
  %2430 = vmatprep.subr.bf16.mxu0 0
  %2431 = vmatpush1.bf16.msra.mxu0 0
  %2432 = vmatprep.subr.bf16.mxu0 0
  %2433 = vmatpush1.bf16.msra.mxu0 0
  %2434 = vmatprep.subr.bf16.mxu0 0
  %2435 = vmatpush1.bf16.msra.mxu0 0
  %2436 = vmatprep.subr.bf16.mxu0 0
  %2437 = vmatpush1.bf16.msra.mxu0 0
  %2438 = vmatprep.subr.bf16.mxu0 0
  %2439 = vmatpush1.bf16.msra.mxu0 0
  %2440 = vmatprep.subr.bf16.mxu0 0
  %2441 = vmatpush1.bf16.msra.mxu0 0
  %2442 = vmatprep.subr.bf16.mxu0 0
  %2443 = vmatpush1.bf16.msra.mxu0 %v2408
  %2444 = vmatprep.subr.bf16.mxu0 0
  %2445 = vmatpush1.bf16.msra.mxu0 %v2407
  %2446 = vmatprep.subr.bf16.mxu0 0
  %2447 = vmatpush2.bf16.msra.mxu0 0
  %2448 = vmatprep.subr.bf16.mxu0 0
  %2449 = vmatpush2.bf16.msra.mxu0 0
  %2450 = vmatprep.subr.bf16.mxu0 0
  %2451 = vmatpush2.bf16.msra.mxu0 0
  %2452 = vmatprep.subr.bf16.mxu0 0
  %2453 = vmatpush2.bf16.msra.mxu0 0
  %2454 = vmatprep.subr.bf16.mxu0 0
  %2455 = vmatpush2.bf16.msra.mxu0 0
  %2456 = vmatprep.subr.bf16.mxu0 0
  %2457 = vmatpush2.bf16.msra.mxu0 0
  %2458 = vmatprep.subr.bf16.mxu0 0
  %2459 = vmatpush2.bf16.msra.mxu0 0
  %2460 = vmatprep.subr.bf16.mxu0 0
  %2461 = vmatpush2.bf16.msra.mxu0 0
  %2462 = vmatprep.mubr.bf16.mxu0 0
  %2463 = vmatmul.mubr.bf16.gmra.mxu0 %v2425
  %v2464 = vpop.f32.mrf.mxu0
  %v2465 = vadd.f32 0.0, %v2464
  %v2466 = vpop.f32.mrf.mxu0
  %v2467 = vpop.f32.mrf.mxu0
  %v2468 = vadd.f32 0.0, %v2467
  %v2469 = vpop.f32.mrf.mxu0
  %2470 = vmatprep.mubr.bf16.mxu0 0
  %2471 = vmatmul.mubr.bf16.gmra.mxu0 %v2428
  %v2472 = vpop.f32.mrf.mxu0
  %v2473 = vadd.f32 0.0, %v2472
  %v2474 = vpop.f32.mrf.mxu0
  %v2475 = vpop.f32.mrf.mxu0
  %v2476 = vadd.f32 0.0, %v2475
  %v2477 = vpop.f32.mrf.mxu0
  %2478 = vdwg.mxu0
  %v2479 = vadd.f32 %v2345, %v2465
  %v2480 = vadd.f32 %v2346, %v2468
  %v2481 = vadd.f32 %v2347, %v2473
  %v2482 = vadd.f32 %v2348, %v2476
  %v2483 = vld [vmem:[%s11] sm:$0xff]
  %v2484 = vld [vmem:[%s11 + $0x8] sm:$0xff]
  %v2485 = vld [vmem:[%s11 + $0x10] sm:$0xff]
  %v2486 = vld [vmem:[%s11 + $0x18] sm:$0xff]
  %2488 = vset.pattern.permute.xlu0 0
  %2489 = vperm.xlu0 %2488, %v2483
  %v2490 = vpop.permute.xlu0 %2489
  %2493 = vset.pattern.permute.xlu0 0
  %2494 = vperm.xlu0 %2493, %v2484
  %v2495 = vpop.permute.xlu0 %2494
  %2498 = vset.pattern.permute.xlu0 0
  %2499 = vperm.xlu0 %2498, %v2485
  %v2500 = vpop.permute.xlu0 %2499
  %2503 = vset.pattern.permute.xlu0 0
  %2504 = vperm.xlu0 %2503, %v2486
  %v2505 = vpop.permute.xlu0 %2504
  %v2507 = vadd.f32 %v2479, %v2490
  %v2508 = vadd.f32 %v2480, %v2495
  %v2509 = vadd.f32 %v2481, %v2500
  %v2510 = vadd.f32 %v2482, %v2505
  %v2511 = vmax.f32 %v2507, 0.0
  %v2512 = vmax.f32 %v2508, 0.0
  %v2513 = vmax.f32 %v2509, 0.0
  %v2514 = vmax.f32 %v2510, 0.0
  %v2515 = vpack.c.bf16 %v2512, %v2511
  %v2516 = vpack.c.bf16 %v2514, %v2513
  %v2517 = vld [vmem:[%s15] sm:$0xf]
  %vm2518 = vcmask 64512
  %v2520 = vsel %vm2518, %v2515, 0
  %v2523 = vsel %vm2518, %v2516, 0
  %vm2525 = vcmask 1043456
  %v2527 = vsel %vm2525, %v2517, 0
  %2529 = vmatprep.subr.bf16.mxu0 0
  %2530 = vmatpush1.bf16.msra.mxu0 0
  %2531 = vmatprep.subr.bf16.mxu0 0
  %2532 = vmatpush1.bf16.msra.mxu0 0
  %2533 = vmatprep.subr.bf16.mxu0 0
  %2534 = vmatpush1.bf16.msra.mxu0 0
  %2535 = vmatprep.subr.bf16.mxu0 0
  %2536 = vmatpush1.bf16.msra.mxu0 0
  %2537 = vmatprep.subr.bf16.mxu0 0
  %2538 = vmatpush1.bf16.msra.mxu0 0
  %2539 = vmatprep.subr.bf16.mxu0 0
  %2540 = vmatpush1.bf16.msra.mxu0 0
  %2541 = vmatprep.subr.bf16.mxu0 0
  %2542 = vmatpush1.bf16.msra.mxu0 0
  %2543 = vmatprep.subr.bf16.mxu0 0
  %2544 = vmatpush1.bf16.msra.mxu0 %v2527
  %2545 = vmatprep.subr.bf16.mxu0 0
  %2546 = vmatpush2.bf16.msra.mxu0 0
  %2547 = vmatprep.subr.bf16.mxu0 0
  %2548 = vmatpush2.bf16.msra.mxu0 0
  %2549 = vmatprep.subr.bf16.mxu0 0
  %2550 = vmatpush2.bf16.msra.mxu0 0
  %2551 = vmatprep.subr.bf16.mxu0 0
  %2552 = vmatpush2.bf16.msra.mxu0 0
  %2553 = vmatprep.subr.bf16.mxu0 0
  %2554 = vmatpush2.bf16.msra.mxu0 0
  %2555 = vmatprep.subr.bf16.mxu0 0
  %2556 = vmatpush2.bf16.msra.mxu0 0
  %2557 = vmatprep.subr.bf16.mxu0 0
  %2558 = vmatpush2.bf16.msra.mxu0 0
  %2559 = vmatprep.subr.bf16.mxu0 0
  %2560 = vmatpush2.bf16.msra.mxu0 0
  %2561 = vmatprep.mubr.bf16.mxu0 0
  %2562 = vmatmul.mubr.bf16.gmra.mxu0 %v2520
  %v2563 = vpop.f32.mrf.mxu0
  %v2564 = vadd.f32 0.0, %v2563
  %v2565 = vpop.f32.mrf.mxu0
  %v2566 = vpop.f32.mrf.mxu0
  %v2567 = vadd.f32 0.0, %v2566
  %v2568 = vpop.f32.mrf.mxu0
  %2569 = vmatprep.mubr.bf16.mxu0 0
  %2570 = vmatmul.mubr.bf16.gmra.mxu0 %v2523
  %v2571 = vpop.f32.mrf.mxu0
  %v2572 = vadd.f32 0.0, %v2571
  %v2573 = vpop.f32.mrf.mxu0
  %v2574 = vpop.f32.mrf.mxu0
  %v2575 = vadd.f32 0.0, %v2574
  %v2576 = vpop.f32.mrf.mxu0
  %2577 = vdwg.mxu0
  %v2578 = vpack.c.bf16 %v2567, %v2564
  %v2579 = vpack.c.bf16 %v2575, %v2572
  %v2580 = vld [vmem:[%s13] sm:$0xf]
  %v2581 = vld [vmem:[%s13 + $0x4] sm:$0xf]
  %v2582 = vld [vmem:[%s13 + $0x8] sm:$0xf]
  %v2583 = vld [vmem:[%s13 + $0xc] sm:$0xf]
  %s2584 = scalar_lea.vmem %s13, 16
  %v2585 = vld [vmem:[%s2584] sm:$0xf]
  %v2586 = vld [vmem:[%s2584 + $0x4] sm:$0xf]
  %v2587 = vld [vmem:[%s2584 + $0x8] sm:$0xf]
  %v2588 = vld [vmem:[%s2584 + $0xc] sm:$0xf]
  %v2593 = vunpack.c.l.b16 %v2585
  %v2594 = vunpack.c.l.b16 %v2586
  %v2595 = vunpack.c.l.b16 %v2587
  %v2596 = vunpack.c.l.b16 %v2588
  %v2597 = vpack.c.b16 %v2594, %v2593
  %v2598 = vpack.c.b16 %v2596, %v2595
  %v2600 = vsel %vm1368, %v2597, 0
  %v2603 = vsel %vm1368, %v2598, 0
  %2605 = vmatprep.subr.bf16.mxu0 0
  %2606 = vmatpush1.bf16.msra.mxu0 0
  %2607 = vmatprep.subr.bf16.mxu0 0
  %2608 = vmatpush1.bf16.msra.mxu0 0
  %2609 = vmatprep.subr.bf16.mxu0 0
  %2610 = vmatpush1.bf16.msra.mxu0 0
  %2611 = vmatprep.subr.bf16.mxu0 0
  %2612 = vmatpush1.bf16.msra.mxu0 0
  %2613 = vmatprep.subr.bf16.mxu0 0
  %2614 = vmatpush1.bf16.msra.mxu0 0
  %2615 = vmatprep.subr.bf16.mxu0 0
  %2616 = vmatpush1.bf16.msra.mxu0 0
  %2617 = vmatprep.subr.bf16.mxu0 0
  %2618 = vmatpush1.bf16.msra.mxu0 %v2516
  %2619 = vmatprep.subr.bf16.mxu0 0
  %2620 = vmatpush1.bf16.msra.mxu0 %v2515
  %2621 = vmatprep.subr.bf16.mxu0 0
  %2622 = vmatpush2.bf16.msra.mxu0 0
  %2623 = vmatprep.subr.bf16.mxu0 0
  %2624 = vmatpush2.bf16.msra.mxu0 0
  %2625 = vmatprep.subr.bf16.mxu0 0
  %2626 = vmatpush2.bf16.msra.mxu0 0
  %2627 = vmatprep.subr.bf16.mxu0 0
  %2628 = vmatpush2.bf16.msra.mxu0 0
  %2629 = vmatprep.subr.bf16.mxu0 0
  %2630 = vmatpush2.bf16.msra.mxu0 0
  %2631 = vmatprep.subr.bf16.mxu0 0
  %2632 = vmatpush2.bf16.msra.mxu0 0
  %2633 = vmatprep.subr.bf16.mxu0 0
  %2634 = vmatpush2.bf16.msra.mxu0 0
  %2635 = vmatprep.subr.bf16.mxu0 0
  %2636 = vmatpush2.bf16.msra.mxu0 0
  %2637 = vmatprep.mubr.bf16.mxu0 0
  %2638 = vmatmul.mubr.bf16.gmra.mxu0 %v2600
  %v2639 = vpop.f32.mrf.mxu0
  %v2640 = vadd.f32 0.0, %v2639
  %v2641 = vpop.f32.mrf.mxu0
  %v2642 = vpop.f32.mrf.mxu0
  %v2643 = vadd.f32 0.0, %v2642
  %v2644 = vpop.f32.mrf.mxu0
  %2645 = vmatprep.mubr.bf16.mxu0 0
  %2646 = vmatmul.mubr.bf16.gmra.mxu0 %v2603
  %v2647 = vpop.f32.mrf.mxu0
  %v2648 = vadd.f32 0.0, %v2647
  %v2649 = vpop.f32.mrf.mxu0
  %v2650 = vpop.f32.mrf.mxu0
  %v2651 = vadd.f32 0.0, %v2650
  %v2652 = vpop.f32.mrf.mxu0
  %2653 = vdwg.mxu0
  %v2658 = vunpack.c.l.b16 %v2580
  %v2659 = vunpack.c.l.b16 %v2581
  %v2660 = vunpack.c.l.b16 %v2582
  %v2661 = vunpack.c.l.b16 %v2583
  %v2662 = vpack.c.b16 %v2659, %v2658
  %v2663 = vpack.c.b16 %v2661, %v2660
  %v2665 = vsel %vm1368, %v2662, 0
  %v2668 = vsel %vm1368, %v2663, 0
  %2670 = vmatprep.subr.bf16.mxu0 0
  %2671 = vmatpush1.bf16.msra.mxu0 0
  %2672 = vmatprep.subr.bf16.mxu0 0
  %2673 = vmatpush1.bf16.msra.mxu0 0
  %2674 = vmatprep.subr.bf16.mxu0 0
  %2675 = vmatpush1.bf16.msra.mxu0 0
  %2676 = vmatprep.subr.bf16.mxu0 0
  %2677 = vmatpush1.bf16.msra.mxu0 0
  %2678 = vmatprep.subr.bf16.mxu0 0
  %2679 = vmatpush1.bf16.msra.mxu0 0
  %2680 = vmatprep.subr.bf16.mxu0 0
  %2681 = vmatpush1.bf16.msra.mxu0 0
  %2682 = vmatprep.subr.bf16.mxu0 0
  %2683 = vmatpush1.bf16.msra.mxu0 %v2579
  %2684 = vmatprep.subr.bf16.mxu0 0
  %2685 = vmatpush1.bf16.msra.mxu0 %v2578
  %2686 = vmatprep.subr.bf16.mxu0 0
  %2687 = vmatpush2.bf16.msra.mxu0 0
  %2688 = vmatprep.subr.bf16.mxu0 0
  %2689 = vmatpush2.bf16.msra.mxu0 0
  %2690 = vmatprep.subr.bf16.mxu0 0
  %2691 = vmatpush2.bf16.msra.mxu0 0
  %2692 = vmatprep.subr.bf16.mxu0 0
  %2693 = vmatpush2.bf16.msra.mxu0 0
  %2694 = vmatprep.subr.bf16.mxu0 0
  %2695 = vmatpush2.bf16.msra.mxu0 0
  %2696 = vmatprep.subr.bf16.mxu0 0
  %2697 = vmatpush2.bf16.msra.mxu0 0
  %2698 = vmatprep.subr.bf16.mxu0 0
  %2699 = vmatpush2.bf16.msra.mxu0 0
  %2700 = vmatprep.subr.bf16.mxu0 0
  %2701 = vmatpush2.bf16.msra.mxu0 0
  %2702 = vmatprep.mubr.bf16.mxu0 0
  %2703 = vmatmul.mubr.bf16.gmra.mxu0 %v2665
  %v2704 = vpop.f32.mrf.mxu0
  %v2705 = vadd.f32 %v2640, %v2704
  %v2706 = vpop.f32.mrf.mxu0
  %v2707 = vpop.f32.mrf.mxu0
  %v2708 = vadd.f32 %v2643, %v2707
  %v2709 = vpop.f32.mrf.mxu0
  %2710 = vmatprep.mubr.bf16.mxu0 0
  %2711 = vmatmul.mubr.bf16.gmra.mxu0 %v2668
  %v2712 = vpop.f32.mrf.mxu0
  %v2713 = vadd.f32 %v2648, %v2712
  %v2714 = vpop.f32.mrf.mxu0
  %v2715 = vpop.f32.mrf.mxu0
  %v2716 = vadd.f32 %v2651, %v2715
  %v2717 = vpop.f32.mrf.mxu0
  %2718 = vdwg.mxu0
  %s2719 = scalar_lea.vmem %s15, 8
  %v2720 = vld [vmem:[%s2719] sm:$0xf]
  %v2722 = vsel %vm2525, %v2720, 0
  %2724 = vmatprep.subr.bf16.mxu0 0
  %2725 = vmatpush1.bf16.msra.mxu0 0
  %2726 = vmatprep.subr.bf16.mxu0 0
  %2727 = vmatpush1.bf16.msra.mxu0 0
  %2728 = vmatprep.subr.bf16.mxu0 0
  %2729 = vmatpush1.bf16.msra.mxu0 0
  %2730 = vmatprep.subr.bf16.mxu0 0
  %2731 = vmatpush1.bf16.msra.mxu0 0
  %2732 = vmatprep.subr.bf16.mxu0 0
  %2733 = vmatpush1.bf16.msra.mxu0 0
  %2734 = vmatprep.subr.bf16.mxu0 0
  %2735 = vmatpush1.bf16.msra.mxu0 0
  %2736 = vmatprep.subr.bf16.mxu0 0
  %2737 = vmatpush1.bf16.msra.mxu0 0
  %2738 = vmatprep.subr.bf16.mxu0 0
  %2739 = vmatpush1.bf16.msra.mxu0 %v2722
  %2740 = vmatprep.subr.bf16.mxu0 0
  %2741 = vmatpush2.bf16.msra.mxu0 0
  %2742 = vmatprep.subr.bf16.mxu0 0
  %2743 = vmatpush2.bf16.msra.mxu0 0
  %2744 = vmatprep.subr.bf16.mxu0 0
  %2745 = vmatpush2.bf16.msra.mxu0 0
  %2746 = vmatprep.subr.bf16.mxu0 0
  %2747 = vmatpush2.bf16.msra.mxu0 0
  %2748 = vmatprep.subr.bf16.mxu0 0
  %2749 = vmatpush2.bf16.msra.mxu0 0
  %2750 = vmatprep.subr.bf16.mxu0 0
  %2751 = vmatpush2.bf16.msra.mxu0 0
  %2752 = vmatprep.subr.bf16.mxu0 0
  %2753 = vmatpush2.bf16.msra.mxu0 0
  %2754 = vmatprep.subr.bf16.mxu0 0
  %2755 = vmatpush2.bf16.msra.mxu0 0
  %2756 = vmatprep.mubr.bf16.mxu0 0
  %2757 = vmatmul.mubr.bf16.gmra.mxu0 %v2520
  %v2758 = vpop.f32.mrf.mxu0
  %v2759 = vadd.f32 0.0, %v2758
  %v2760 = vpop.f32.mrf.mxu0
  %v2761 = vpop.f32.mrf.mxu0
  %v2762 = vadd.f32 0.0, %v2761
  %v2763 = vpop.f32.mrf.mxu0
  %2764 = vmatprep.mubr.bf16.mxu0 0
  %2765 = vmatmul.mubr.bf16.gmra.mxu0 %v2523
  %v2766 = vpop.f32.mrf.mxu0
  %v2767 = vadd.f32 0.0, %v2766
  %v2768 = vpop.f32.mrf.mxu0
  %v2769 = vpop.f32.mrf.mxu0
  %v2770 = vadd.f32 0.0, %v2769
  %v2771 = vpop.f32.mrf.mxu0
  %2772 = vdwg.mxu0
  %v2773 = vpack.c.bf16 %v2762, %v2759
  %v2774 = vpack.c.bf16 %v2770, %v2767
  %s2775 = scalar_lea.vmem %s13, 32
  %v2776 = vld [vmem:[%s2775] sm:$0xf]
  %v2777 = vld [vmem:[%s2775 + $0x4] sm:$0xf]
  %v2778 = vld [vmem:[%s2775 + $0x8] sm:$0xf]
  %v2779 = vld [vmem:[%s2775 + $0xc] sm:$0xf]
  %v2784 = vunpack.c.l.b16 %v2776
  %v2785 = vunpack.c.l.b16 %v2777
  %v2786 = vunpack.c.l.b16 %v2778
  %v2787 = vunpack.c.l.b16 %v2779
  %v2788 = vpack.c.b16 %v2785, %v2784
  %v2789 = vpack.c.b16 %v2787, %v2786
  %v2791 = vsel %vm1368, %v2788, 0
  %v2794 = vsel %vm1368, %v2789, 0
  %2796 = vmatprep.subr.bf16.mxu0 0
  %2797 = vmatpush1.bf16.msra.mxu0 0
  %2798 = vmatprep.subr.bf16.mxu0 0
  %2799 = vmatpush1.bf16.msra.mxu0 0
  %2800 = vmatprep.subr.bf16.mxu0 0
  %2801 = vmatpush1.bf16.msra.mxu0 0
  %2802 = vmatprep.subr.bf16.mxu0 0
  %2803 = vmatpush1.bf16.msra.mxu0 0
  %2804 = vmatprep.subr.bf16.mxu0 0
  %2805 = vmatpush1.bf16.msra.mxu0 0
  %2806 = vmatprep.subr.bf16.mxu0 0
  %2807 = vmatpush1.bf16.msra.mxu0 0
  %2808 = vmatprep.subr.bf16.mxu0 0
  %2809 = vmatpush1.bf16.msra.mxu0 %v2774
  %2810 = vmatprep.subr.bf16.mxu0 0
  %2811 = vmatpush1.bf16.msra.mxu0 %v2773
  %2812 = vmatprep.subr.bf16.mxu0 0
  %2813 = vmatpush2.bf16.msra.mxu0 0
  %2814 = vmatprep.subr.bf16.mxu0 0
  %2815 = vmatpush2.bf16.msra.mxu0 0
  %2816 = vmatprep.subr.bf16.mxu0 0
  %2817 = vmatpush2.bf16.msra.mxu0 0
  %2818 = vmatprep.subr.bf16.mxu0 0
  %2819 = vmatpush2.bf16.msra.mxu0 0
  %2820 = vmatprep.subr.bf16.mxu0 0
  %2821 = vmatpush2.bf16.msra.mxu0 0
  %2822 = vmatprep.subr.bf16.mxu0 0
  %2823 = vmatpush2.bf16.msra.mxu0 0
  %2824 = vmatprep.subr.bf16.mxu0 0
  %2825 = vmatpush2.bf16.msra.mxu0 0
  %2826 = vmatprep.subr.bf16.mxu0 0
  %2827 = vmatpush2.bf16.msra.mxu0 0
  %2828 = vmatprep.mubr.bf16.mxu0 0
  %2829 = vmatmul.mubr.bf16.gmra.mxu0 %v2791
  %v2830 = vpop.f32.mrf.mxu0
  %v2831 = vadd.f32 0.0, %v2830
  %v2832 = vpop.f32.mrf.mxu0
  %v2833 = vpop.f32.mrf.mxu0
  %v2834 = vadd.f32 0.0, %v2833
  %v2835 = vpop.f32.mrf.mxu0
  %2836 = vmatprep.mubr.bf16.mxu0 0
  %2837 = vmatmul.mubr.bf16.gmra.mxu0 %v2794
  %v2838 = vpop.f32.mrf.mxu0
  %v2839 = vadd.f32 0.0, %v2838
  %v2840 = vpop.f32.mrf.mxu0
  %v2841 = vpop.f32.mrf.mxu0
  %v2842 = vadd.f32 0.0, %v2841
  %v2843 = vpop.f32.mrf.mxu0
  %2844 = vdwg.mxu0
  %v2845 = vadd.f32 %v2705, %v2831
  %v2846 = vadd.f32 %v2708, %v2834
  %v2847 = vadd.f32 %v2713, %v2839
  %v2848 = vadd.f32 %v2716, %v2842
  %v2849 = vld [vmem:[%s14] sm:$0xff]
  %v2850 = vld [vmem:[%s14 + $0x8] sm:$0xff]
  %v2851 = vld [vmem:[%s14 + $0x10] sm:$0xff]
  %v2852 = vld [vmem:[%s14 + $0x18] sm:$0xff]
  %2854 = vset.pattern.permute.xlu0 0
  %2855 = vperm.xlu0 %2854, %v2849
  %v2856 = vpop.permute.xlu0 %2855
  %2859 = vset.pattern.permute.xlu0 0
  %2860 = vperm.xlu0 %2859, %v2850
  %v2861 = vpop.permute.xlu0 %2860
  %2864 = vset.pattern.permute.xlu0 0
  %2865 = vperm.xlu0 %2864, %v2851
  %v2866 = vpop.permute.xlu0 %2865
  %2869 = vset.pattern.permute.xlu0 0
  %2870 = vperm.xlu0 %2869, %v2852
  %v2871 = vpop.permute.xlu0 %2870
  %v2873 = vadd.f32 %v2845, %v2856
  %v2874 = vadd.f32 %v2846, %v2861
  %v2875 = vadd.f32 %v2847, %v2866
  %v2876 = vadd.f32 %v2848, %v2871
  %v2877 = vld [vmem:[%s16] sm:$0xf]
  %v2878 = vld [vmem:[%s16 + $0x4] sm:$0xf]
  %v2879 = vld [vmem:[%s16 + $0x8] sm:$0xf]
  %v2880 = vmax.f32 %v2873, 0.0
  %v2881 = vmax.f32 %v2874, 0.0
  %v2882 = vmax.f32 %v2875, 0.0
  %v2883 = vmax.f32 %v2876, 0.0
  %v2884 = vpack.c.bf16 %v2881, %v2880
  %v2885 = vpack.c.bf16 %v2883, %v2882
  %v2887 = vsel %vm2518, %v2884, 0
  %v2890 = vsel %vm2518, %v2885, 0
  %2892 = vmatprep.subr.bf16.mxu0 0
  %2893 = vmatpush1.bf16.msra.mxu0 0
  %2894 = vmatprep.subr.bf16.mxu0 0
  %2895 = vmatpush1.bf16.msra.mxu0 0
  %2896 = vmatprep.subr.bf16.mxu0 0
  %2897 = vmatpush1.bf16.msra.mxu0 0
  %2898 = vmatprep.subr.bf16.mxu0 0
  %2899 = vmatpush1.bf16.msra.mxu0 0
  %2900 = vmatprep.subr.bf16.mxu0 0
  %2901 = vmatpush1.bf16.msra.mxu0 0
  %2902 = vmatprep.subr.bf16.mxu0 0
  %2903 = vmatpush1.bf16.msra.mxu0 0
  %2904 = vmatprep.subr.bf16.mxu0 0
  %2905 = vmatpush1.bf16.msra.mxu0 0
  %2906 = vmatprep.subr.bf16.mxu0 0
  %2907 = vmatpush1.bf16.msra.mxu0 %v2527
  %2908 = vmatprep.subr.bf16.mxu0 0
  %2909 = vmatpush2.bf16.msra.mxu0 0
  %2910 = vmatprep.subr.bf16.mxu0 0
  %2911 = vmatpush2.bf16.msra.mxu0 0
  %2912 = vmatprep.subr.bf16.mxu0 0
  %2913 = vmatpush2.bf16.msra.mxu0 0
  %2914 = vmatprep.subr.bf16.mxu0 0
  %2915 = vmatpush2.bf16.msra.mxu0 0
  %2916 = vmatprep.subr.bf16.mxu0 0
  %2917 = vmatpush2.bf16.msra.mxu0 0
  %2918 = vmatprep.subr.bf16.mxu0 0
  %2919 = vmatpush2.bf16.msra.mxu0 0
  %2920 = vmatprep.subr.bf16.mxu0 0
  %2921 = vmatpush2.bf16.msra.mxu0 0
  %2922 = vmatprep.subr.bf16.mxu0 0
  %2923 = vmatpush2.bf16.msra.mxu0 0
  %2924 = vmatprep.mubr.bf16.mxu0 0
  %2925 = vmatmul.mubr.bf16.gmra.mxu0 %v2887
  %v2926 = vpop.f32.mrf.mxu0
  %v2927 = vadd.f32 0.0, %v2926
  %v2928 = vpop.f32.mrf.mxu0
  %v2929 = vpop.f32.mrf.mxu0
  %v2930 = vadd.f32 0.0, %v2929
  %v2931 = vpop.f32.mrf.mxu0
  %2932 = vmatprep.mubr.bf16.mxu0 0
  %2933 = vmatmul.mubr.bf16.gmra.mxu0 %v2890
  %v2934 = vpop.f32.mrf.mxu0
  %v2935 = vadd.f32 0.0, %v2934
  %v2936 = vpop.f32.mrf.mxu0
  %v2937 = vpop.f32.mrf.mxu0
  %v2938 = vadd.f32 0.0, %v2937
  %v2939 = vpop.f32.mrf.mxu0
  %2940 = vdwg.mxu0
  %v2941 = vpack.c.bf16 %v2930, %v2927
  %v2942 = vpack.c.bf16 %v2938, %v2935
  %v2944 = vsel %vm1368, %v2878, 0
  %2946 = vmatprep.subr.bf16.mxu0 0
  %2947 = vmatpush1.bf16.msra.mxu0 0
  %2948 = vmatprep.subr.bf16.mxu0 0
  %2949 = vmatpush1.bf16.msra.mxu0 0
  %2950 = vmatprep.subr.bf16.mxu0 0
  %2951 = vmatpush1.bf16.msra.mxu0 0
  %2952 = vmatprep.subr.bf16.mxu0 0
  %2953 = vmatpush1.bf16.msra.mxu0 0
  %2954 = vmatprep.subr.bf16.mxu0 0
  %2955 = vmatpush1.bf16.msra.mxu0 0
  %2956 = vmatprep.subr.bf16.mxu0 0
  %2957 = vmatpush1.bf16.msra.mxu0 0
  %2958 = vmatprep.subr.bf16.mxu0 0
  %2959 = vmatpush1.bf16.msra.mxu0 %v2885
  %2960 = vmatprep.subr.bf16.mxu0 0
  %2961 = vmatpush1.bf16.msra.mxu0 %v2884
  %2962 = vmatprep.subr.bf16.mxu0 0
  %2963 = vmatpush2.bf16.msra.mxu0 0
  %2964 = vmatprep.subr.bf16.mxu0 0
  %2965 = vmatpush2.bf16.msra.mxu0 0
  %2966 = vmatprep.subr.bf16.mxu0 0
  %2967 = vmatpush2.bf16.msra.mxu0 0
  %2968 = vmatprep.subr.bf16.mxu0 0
  %2969 = vmatpush2.bf16.msra.mxu0 0
  %2970 = vmatprep.subr.bf16.mxu0 0
  %2971 = vmatpush2.bf16.msra.mxu0 0
  %2972 = vmatprep.subr.bf16.mxu0 0
  %2973 = vmatpush2.bf16.msra.mxu0 0
  %2974 = vmatprep.subr.bf16.mxu0 0
  %2975 = vmatpush2.bf16.msra.mxu0 0
  %2976 = vmatprep.subr.bf16.mxu0 0
  %2977 = vmatpush2.bf16.msra.mxu0 0
  %2978 = vmatprep.mubr.bf16.mxu0 0
  %2979 = vmatmul.mubr.bf16.gmra.mxu0 %v2944
  %v2980 = vpop.f32.mrf.mxu0
  %v2981 = vadd.f32 0.0, %v2980
  %v2982 = vpop.f32.mrf.mxu0
  %v2983 = vpop.f32.mrf.mxu0
  %v2984 = vpop.f32.mrf.mxu0
  %2985 = vdwg.mxu0
  %v2987 = vsel %vm1368, %v2877, 0
  %2989 = vmatprep.subr.bf16.mxu0 0
  %2990 = vmatpush1.bf16.msra.mxu0 0
  %2991 = vmatprep.subr.bf16.mxu0 0
  %2992 = vmatpush1.bf16.msra.mxu0 0
  %2993 = vmatprep.subr.bf16.mxu0 0
  %2994 = vmatpush1.bf16.msra.mxu0 0
  %2995 = vmatprep.subr.bf16.mxu0 0
  %2996 = vmatpush1.bf16.msra.mxu0 0
  %2997 = vmatprep.subr.bf16.mxu0 0
  %2998 = vmatpush1.bf16.msra.mxu0 0
  %2999 = vmatprep.subr.bf16.mxu0 0
  %3000 = vmatpush1.bf16.msra.mxu0 0
  %3001 = vmatprep.subr.bf16.mxu0 0
  %3002 = vmatpush1.bf16.msra.mxu0 %v2942
  %3003 = vmatprep.subr.bf16.mxu0 0
  %3004 = vmatpush1.bf16.msra.mxu0 %v2941
  %3005 = vmatprep.subr.bf16.mxu0 0
  %3006 = vmatpush2.bf16.msra.mxu0 0
  %3007 = vmatprep.subr.bf16.mxu0 0
  %3008 = vmatpush2.bf16.msra.mxu0 0
  %3009 = vmatprep.subr.bf16.mxu0 0
  %3010 = vmatpush2.bf16.msra.mxu0 0
  %3011 = vmatprep.subr.bf16.mxu0 0
  %3012 = vmatpush2.bf16.msra.mxu0 0
  %3013 = vmatprep.subr.bf16.mxu0 0
  %3014 = vmatpush2.bf16.msra.mxu0 0
  %3015 = vmatprep.subr.bf16.mxu0 0
  %3016 = vmatpush2.bf16.msra.mxu0 0
  %3017 = vmatprep.subr.bf16.mxu0 0
  %3018 = vmatpush2.bf16.msra.mxu0 0
  %3019 = vmatprep.subr.bf16.mxu0 0
  %3020 = vmatpush2.bf16.msra.mxu0 0
  %3021 = vmatprep.mubr.bf16.mxu0 0
  %3022 = vmatmul.mubr.bf16.gmra.mxu0 %v2987
  %v3023 = vpop.f32.mrf.mxu0
  %v3024 = vadd.f32 %v2981, %v3023
  %v3025 = vpop.f32.mrf.mxu0
  %v3026 = vpop.f32.mrf.mxu0
  %v3027 = vpop.f32.mrf.mxu0
  %3028 = vdwg.mxu0
  %3029 = vmatprep.subr.bf16.mxu0 0
  %3030 = vmatpush1.bf16.msra.mxu0 0
  %3031 = vmatprep.subr.bf16.mxu0 0
  %3032 = vmatpush1.bf16.msra.mxu0 0
  %3033 = vmatprep.subr.bf16.mxu0 0
  %3034 = vmatpush1.bf16.msra.mxu0 0
  %3035 = vmatprep.subr.bf16.mxu0 0
  %3036 = vmatpush1.bf16.msra.mxu0 0
  %3037 = vmatprep.subr.bf16.mxu0 0
  %3038 = vmatpush1.bf16.msra.mxu0 0
  %3039 = vmatprep.subr.bf16.mxu0 0
  %3040 = vmatpush1.bf16.msra.mxu0 0
  %3041 = vmatprep.subr.bf16.mxu0 0
  %3042 = vmatpush1.bf16.msra.mxu0 0
  %3043 = vmatprep.subr.bf16.mxu0 0
  %3044 = vmatpush1.bf16.msra.mxu0 %v2722
  %3045 = vmatprep.subr.bf16.mxu0 0
  %3046 = vmatpush2.bf16.msra.mxu0 0
  %3047 = vmatprep.subr.bf16.mxu0 0
  %3048 = vmatpush2.bf16.msra.mxu0 0
  %3049 = vmatprep.subr.bf16.mxu0 0
  %3050 = vmatpush2.bf16.msra.mxu0 0
  %3051 = vmatprep.subr.bf16.mxu0 0
  %3052 = vmatpush2.bf16.msra.mxu0 0
  %3053 = vmatprep.subr.bf16.mxu0 0
  %3054 = vmatpush2.bf16.msra.mxu0 0
  %3055 = vmatprep.subr.bf16.mxu0 0
  %3056 = vmatpush2.bf16.msra.mxu0 0
  %3057 = vmatprep.subr.bf16.mxu0 0
  %3058 = vmatpush2.bf16.msra.mxu0 0
  %3059 = vmatprep.subr.bf16.mxu0 0
  %3060 = vmatpush2.bf16.msra.mxu0 0
  %3061 = vmatprep.mubr.bf16.mxu0 0
  %3062 = vmatmul.mubr.bf16.gmra.mxu0 %v2887
  %v3063 = vpop.f32.mrf.mxu0
  %v3064 = vadd.f32 0.0, %v3063
  %v3065 = vpop.f32.mrf.mxu0
  %v3066 = vpop.f32.mrf.mxu0
  %v3067 = vadd.f32 0.0, %v3066
  %v3068 = vpop.f32.mrf.mxu0
  %3069 = vmatprep.mubr.bf16.mxu0 0
  %3070 = vmatmul.mubr.bf16.gmra.mxu0 %v2890
  %v3071 = vpop.f32.mrf.mxu0
  %v3072 = vadd.f32 0.0, %v3071
  %v3073 = vpop.f32.mrf.mxu0
  %v3074 = vpop.f32.mrf.mxu0
  %v3075 = vadd.f32 0.0, %v3074
  %v3076 = vpop.f32.mrf.mxu0
  %3077 = vdwg.mxu0
  %v3078 = vpack.c.bf16 %v3067, %v3064
  %v3079 = vpack.c.bf16 %v3075, %v3072
  %v3081 = vsel %vm1368, %v2879, 0
  %3083 = vmatprep.subr.bf16.mxu0 0
  %3084 = vmatpush1.bf16.msra.mxu0 0
  %3085 = vmatprep.subr.bf16.mxu0 0
  %3086 = vmatpush1.bf16.msra.mxu0 0
  %3087 = vmatprep.subr.bf16.mxu0 0
  %3088 = vmatpush1.bf16.msra.mxu0 0
  %3089 = vmatprep.subr.bf16.mxu0 0
  %3090 = vmatpush1.bf16.msra.mxu0 0
  %3091 = vmatprep.subr.bf16.mxu0 0
  %3092 = vmatpush1.bf16.msra.mxu0 0
  %3093 = vmatprep.subr.bf16.mxu0 0
  %3094 = vmatpush1.bf16.msra.mxu0 0
  %3095 = vmatprep.subr.bf16.mxu0 0
  %3096 = vmatpush1.bf16.msra.mxu0 %v3079
  %3097 = vmatprep.subr.bf16.mxu0 0
  %3098 = vmatpush1.bf16.msra.mxu0 %v3078
  %3099 = vmatprep.subr.bf16.mxu0 0
  %3100 = vmatpush2.bf16.msra.mxu0 0
  %3101 = vmatprep.subr.bf16.mxu0 0
  %3102 = vmatpush2.bf16.msra.mxu0 0
  %3103 = vmatprep.subr.bf16.mxu0 0
  %3104 = vmatpush2.bf16.msra.mxu0 0
  %3105 = vmatprep.subr.bf16.mxu0 0
  %3106 = vmatpush2.bf16.msra.mxu0 0
  %3107 = vmatprep.subr.bf16.mxu0 0
  %3108 = vmatpush2.bf16.msra.mxu0 0
  %3109 = vmatprep.subr.bf16.mxu0 0
  %3110 = vmatpush2.bf16.msra.mxu0 0
  %3111 = vmatprep.subr.bf16.mxu0 0
  %3112 = vmatpush2.bf16.msra.mxu0 0
  %3113 = vmatprep.subr.bf16.mxu0 0
  %3114 = vmatpush2.bf16.msra.mxu0 0
  %3115 = vmatprep.mubr.bf16.mxu0 0
  %3116 = vmatmul.mubr.bf16.gmra.mxu0 %v3081
  %v3117 = vpop.f32.mrf.mxu0
  %v3118 = vadd.f32 0.0, %v3117
  %v3119 = vpop.f32.mrf.mxu0
  %v3120 = vpop.f32.mrf.mxu0
  %v3121 = vpop.f32.mrf.mxu0
  %3122 = vdwg.mxu0
  %v3123 = vadd.f32 %v3024, %v3118
  %v3124 = vmax.f32 %v3123, 0.0
  %v3125 = vpack.c.bf16 %v3124, %v3124
  %v3126 = vld [vmem:[%s17] sm:$0xf]
  %v3127 = vld [vmem:[%s17 + $0x4] sm:$0xf]
  %v3128 = vld [vmem:[%s17 + $0x8] sm:$0xf]
  %v3129 = vld [vmem:[%s17 + $0xc] sm:$0xf]
  %v3134 = vunpack.c.l.b16 %v3126
  %v3135 = vunpack.c.l.b16 %v3127
  %v3136 = vunpack.c.l.b16 %v3128
  %v3137 = vunpack.c.l.b16 %v3129
  %v3138 = vpack.c.b16 %v3135, %v3134
  %v3139 = vpack.c.b16 %v3137, %v3136
  %v3141 = vsel %vm2518, %v3138, 0
  %v3144 = vsel %vm2518, %v3139, 0
  %v3147 = vsel %vm2525, %v3125, 0
  %3149 = vmatprep.subr.bf16.mxu0 0
  %3150 = vmatpush1.bf16.msra.mxu0 0
  %3151 = vmatprep.subr.bf16.mxu0 0
  %3152 = vmatpush1.bf16.msra.mxu0 0
  %3153 = vmatprep.subr.bf16.mxu0 0
  %3154 = vmatpush1.bf16.msra.mxu0 0
  %3155 = vmatprep.subr.bf16.mxu0 0
  %3156 = vmatpush1.bf16.msra.mxu0 0
  %3157 = vmatprep.subr.bf16.mxu0 0
  %3158 = vmatpush1.bf16.msra.mxu0 0
  %3159 = vmatprep.subr.bf16.mxu0 0
  %3160 = vmatpush1.bf16.msra.mxu0 0
  %3161 = vmatprep.subr.bf16.mxu0 0
  %3162 = vmatpush1.bf16.msra.mxu0 0
  %3163 = vmatprep.subr.bf16.mxu0 0
  %3164 = vmatpush1.bf16.msra.mxu0 %v3147
  %3165 = vmatprep.subr.bf16.mxu0 0
  %3166 = vmatpush2.bf16.msra.mxu0 0
  %3167 = vmatprep.subr.bf16.mxu0 0
  %3168 = vmatpush2.bf16.msra.mxu0 0
  %3169 = vmatprep.subr.bf16.mxu0 0
  %3170 = vmatpush2.bf16.msra.mxu0 0
  %3171 = vmatprep.subr.bf16.mxu0 0
  %3172 = vmatpush2.bf16.msra.mxu0 0
  %3173 = vmatprep.subr.bf16.mxu0 0
  %3174 = vmatpush2.bf16.msra.mxu0 0
  %3175 = vmatprep.subr.bf16.mxu0 0
  %3176 = vmatpush2.bf16.msra.mxu0 0
  %3177 = vmatprep.subr.bf16.mxu0 0
  %3178 = vmatpush2.bf16.msra.mxu0 0
  %3179 = vmatprep.subr.bf16.mxu0 0
  %3180 = vmatpush2.bf16.msra.mxu0 0
  %3181 = vmatprep.mubr.bf16.mxu0 0
  %3182 = vmatmul.mubr.bf16.gmra.mxu0 %v3141
  %v3183 = vpop.f32.mrf.mxu0
  %v3184 = vadd.f32 0.0, %v3183
  %v3185 = vpop.f32.mrf.mxu0
  %v3186 = vpop.f32.mrf.mxu0
  %v3187 = vadd.f32 0.0, %v3186
  %v3188 = vpop.f32.mrf.mxu0
  %3189 = vmatprep.mubr.bf16.mxu0 0
  %3190 = vmatmul.mubr.bf16.gmra.mxu0 %v3144
  %v3191 = vpop.f32.mrf.mxu0
  %v3192 = vadd.f32 0.0, %v3191
  %v3193 = vpop.f32.mrf.mxu0
  %v3194 = vpop.f32.mrf.mxu0
  %v3195 = vadd.f32 0.0, %v3194
  %v3196 = vpop.f32.mrf.mxu0
  %3197 = vdwg.mxu0
  %v3198 = vadd.f32 %v2873, %v3184
  %v3199 = vadd.f32 %v2874, %v3187
  %v3200 = vadd.f32 %v2875, %v3192
  %v3201 = vadd.f32 %v2876, %v3195
  %s3202 = scalar_lea.vmem %s16, 12
  %v3203 = vld [vmem:[%s3202] sm:$0xf]
  %v3204 = vld [vmem:[%s3202 + $0x4] sm:$0xf]
  %v3205 = vld [vmem:[%s3202 + $0x8] sm:$0xf]
  %v3206 = vmax.f32 %v3198, 0.0
  %v3207 = vmax.f32 %v3199, 0.0
  %v3208 = vmax.f32 %v3200, 0.0
  %v3209 = vmax.f32 %v3201, 0.0
  %v3210 = vpack.c.bf16 %v3207, %v3206
  %v3211 = vpack.c.bf16 %v3209, %v3208
  %v3213 = vsel %vm2518, %v3210, 0
  %v3216 = vsel %vm2518, %v3211, 0
  %3218 = vmatprep.subr.bf16.mxu0 0
  %3219 = vmatpush1.bf16.msra.mxu0 0
  %3220 = vmatprep.subr.bf16.mxu0 0
  %3221 = vmatpush1.bf16.msra.mxu0 0
  %3222 = vmatprep.subr.bf16.mxu0 0
  %3223 = vmatpush1.bf16.msra.mxu0 0
  %3224 = vmatprep.subr.bf16.mxu0 0
  %3225 = vmatpush1.bf16.msra.mxu0 0
  %3226 = vmatprep.subr.bf16.mxu0 0
  %3227 = vmatpush1.bf16.msra.mxu0 0
  %3228 = vmatprep.subr.bf16.mxu0 0
  %3229 = vmatpush1.bf16.msra.mxu0 0
  %3230 = vmatprep.subr.bf16.mxu0 0
  %3231 = vmatpush1.bf16.msra.mxu0 0
  %3232 = vmatprep.subr.bf16.mxu0 0
  %3233 = vmatpush1.bf16.msra.mxu0 %v2527
  %3234 = vmatprep.subr.bf16.mxu0 0
  %3235 = vmatpush2.bf16.msra.mxu0 0
  %3236 = vmatprep.subr.bf16.mxu0 0
  %3237 = vmatpush2.bf16.msra.mxu0 0
  %3238 = vmatprep.subr.bf16.mxu0 0
  %3239 = vmatpush2.bf16.msra.mxu0 0
  %3240 = vmatprep.subr.bf16.mxu0 0
  %3241 = vmatpush2.bf16.msra.mxu0 0
  %3242 = vmatprep.subr.bf16.mxu0 0
  %3243 = vmatpush2.bf16.msra.mxu0 0
  %3244 = vmatprep.subr.bf16.mxu0 0
  %3245 = vmatpush2.bf16.msra.mxu0 0
  %3246 = vmatprep.subr.bf16.mxu0 0
  %3247 = vmatpush2.bf16.msra.mxu0 0
  %3248 = vmatprep.subr.bf16.mxu0 0
  %3249 = vmatpush2.bf16.msra.mxu0 0
  %3250 = vmatprep.mubr.bf16.mxu0 0
  %3251 = vmatmul.mubr.bf16.gmra.mxu0 %v3213
  %v3252 = vpop.f32.mrf.mxu0
  %v3253 = vadd.f32 0.0, %v3252
  %v3254 = vpop.f32.mrf.mxu0
  %v3255 = vpop.f32.mrf.mxu0
  %v3256 = vadd.f32 0.0, %v3255
  %v3257 = vpop.f32.mrf.mxu0
  %3258 = vmatprep.mubr.bf16.mxu0 0
  %3259 = vmatmul.mubr.bf16.gmra.mxu0 %v3216
  %v3260 = vpop.f32.mrf.mxu0
  %v3261 = vadd.f32 0.0, %v3260
  %v3262 = vpop.f32.mrf.mxu0
  %v3263 = vpop.f32.mrf.mxu0
  %v3264 = vadd.f32 0.0, %v3263
  %v3265 = vpop.f32.mrf.mxu0
  %3266 = vdwg.mxu0
  %v3267 = vpack.c.bf16 %v3256, %v3253
  %v3268 = vpack.c.bf16 %v3264, %v3261
  %v3270 = vsel %vm1368, %v3204, 0
  %3272 = vmatprep.subr.bf16.mxu0 0
  %3273 = vmatpush1.bf16.msra.mxu0 0
  %3274 = vmatprep.subr.bf16.mxu0 0
  %3275 = vmatpush1.bf16.msra.mxu0 0
  %3276 = vmatprep.subr.bf16.mxu0 0
  %3277 = vmatpush1.bf16.msra.mxu0 0
  %3278 = vmatprep.subr.bf16.mxu0 0
  %3279 = vmatpush1.bf16.msra.mxu0 0
  %3280 = vmatprep.subr.bf16.mxu0 0
  %3281 = vmatpush1.bf16.msra.mxu0 0
  %3282 = vmatprep.subr.bf16.mxu0 0
  %3283 = vmatpush1.bf16.msra.mxu0 0
  %3284 = vmatprep.subr.bf16.mxu0 0
  %3285 = vmatpush1.bf16.msra.mxu0 %v3211
  %3286 = vmatprep.subr.bf16.mxu0 0
  %3287 = vmatpush1.bf16.msra.mxu0 %v3210
  %3288 = vmatprep.subr.bf16.mxu0 0
  %3289 = vmatpush2.bf16.msra.mxu0 0
  %3290 = vmatprep.subr.bf16.mxu0 0
  %3291 = vmatpush2.bf16.msra.mxu0 0
  %3292 = vmatprep.subr.bf16.mxu0 0
  %3293 = vmatpush2.bf16.msra.mxu0 0
  %3294 = vmatprep.subr.bf16.mxu0 0
  %3295 = vmatpush2.bf16.msra.mxu0 0
  %3296 = vmatprep.subr.bf16.mxu0 0
  %3297 = vmatpush2.bf16.msra.mxu0 0
  %3298 = vmatprep.subr.bf16.mxu0 0
  %3299 = vmatpush2.bf16.msra.mxu0 0
  %3300 = vmatprep.subr.bf16.mxu0 0
  %3301 = vmatpush2.bf16.msra.mxu0 0
  %3302 = vmatprep.subr.bf16.mxu0 0
  %3303 = vmatpush2.bf16.msra.mxu0 0
  %3304 = vmatprep.mubr.bf16.mxu0 0
  %3305 = vmatmul.mubr.bf16.gmra.mxu0 %v3270
  %v3306 = vpop.f32.mrf.mxu0
  %v3307 = vadd.f32 0.0, %v3306
  %v3308 = vpop.f32.mrf.mxu0
  %v3309 = vpop.f32.mrf.mxu0
  %v3310 = vpop.f32.mrf.mxu0
  %3311 = vdwg.mxu0
  %v3313 = vsel %vm1368, %v3203, 0
  %3315 = vmatprep.subr.bf16.mxu0 0
  %3316 = vmatpush1.bf16.msra.mxu0 0
  %3317 = vmatprep.subr.bf16.mxu0 0
  %3318 = vmatpush1.bf16.msra.mxu0 0
  %3319 = vmatprep.subr.bf16.mxu0 0
  %3320 = vmatpush1.bf16.msra.mxu0 0
  %3321 = vmatprep.subr.bf16.mxu0 0
  %3322 = vmatpush1.bf16.msra.mxu0 0
  %3323 = vmatprep.subr.bf16.mxu0 0
  %3324 = vmatpush1.bf16.msra.mxu0 0
  %3325 = vmatprep.subr.bf16.mxu0 0
  %3326 = vmatpush1.bf16.msra.mxu0 0
  %3327 = vmatprep.subr.bf16.mxu0 0
  %3328 = vmatpush1.bf16.msra.mxu0 %v3268
  %3329 = vmatprep.subr.bf16.mxu0 0
  %3330 = vmatpush1.bf16.msra.mxu0 %v3267
  %3331 = vmatprep.subr.bf16.mxu0 0
  %3332 = vmatpush2.bf16.msra.mxu0 0
  %3333 = vmatprep.subr.bf16.mxu0 0
  %3334 = vmatpush2.bf16.msra.mxu0 0
  %3335 = vmatprep.subr.bf16.mxu0 0
  %3336 = vmatpush2.bf16.msra.mxu0 0
  %3337 = vmatprep.subr.bf16.mxu0 0
  %3338 = vmatpush2.bf16.msra.mxu0 0
  %3339 = vmatprep.subr.bf16.mxu0 0
  %3340 = vmatpush2.bf16.msra.mxu0 0
  %3341 = vmatprep.subr.bf16.mxu0 0
  %3342 = vmatpush2.bf16.msra.mxu0 0
  %3343 = vmatprep.subr.bf16.mxu0 0
  %3344 = vmatpush2.bf16.msra.mxu0 0
  %3345 = vmatprep.subr.bf16.mxu0 0
  %3346 = vmatpush2.bf16.msra.mxu0 0
  %3347 = vmatprep.mubr.bf16.mxu0 0
  %3348 = vmatmul.mubr.bf16.gmra.mxu0 %v3313
  %v3349 = vpop.f32.mrf.mxu0
  %v3350 = vadd.f32 %v3307, %v3349
  %v3351 = vpop.f32.mrf.mxu0
  %v3352 = vpop.f32.mrf.mxu0
  %v3353 = vpop.f32.mrf.mxu0
  %3354 = vdwg.mxu0
  %3355 = vmatprep.subr.bf16.mxu0 0
  %3356 = vmatpush1.bf16.msra.mxu0 0
  %3357 = vmatprep.subr.bf16.mxu0 0
  %3358 = vmatpush1.bf16.msra.mxu0 0
  %3359 = vmatprep.subr.bf16.mxu0 0
  %3360 = vmatpush1.bf16.msra.mxu0 0
  %3361 = vmatprep.subr.bf16.mxu0 0
  %3362 = vmatpush1.bf16.msra.mxu0 0
  %3363 = vmatprep.subr.bf16.mxu0 0
  %3364 = vmatpush1.bf16.msra.mxu0 0
  %3365 = vmatprep.subr.bf16.mxu0 0
  %3366 = vmatpush1.bf16.msra.mxu0 0
  %3367 = vmatprep.subr.bf16.mxu0 0
  %3368 = vmatpush1.bf16.msra.mxu0 0
  %3369 = vmatprep.subr.bf16.mxu0 0
  %3370 = vmatpush1.bf16.msra.mxu0 %v2722
  %3371 = vmatprep.subr.bf16.mxu0 0
  %3372 = vmatpush2.bf16.msra.mxu0 0
  %3373 = vmatprep.subr.bf16.mxu0 0
  %3374 = vmatpush2.bf16.msra.mxu0 0
  %3375 = vmatprep.subr.bf16.mxu0 0
  %3376 = vmatpush2.bf16.msra.mxu0 0
  %3377 = vmatprep.subr.bf16.mxu0 0
  %3378 = vmatpush2.bf16.msra.mxu0 0
  %3379 = vmatprep.subr.bf16.mxu0 0
  %3380 = vmatpush2.bf16.msra.mxu0 0
  %3381 = vmatprep.subr.bf16.mxu0 0
  %3382 = vmatpush2.bf16.msra.mxu0 0
  %3383 = vmatprep.subr.bf16.mxu0 0
  %3384 = vmatpush2.bf16.msra.mxu0 0
  %3385 = vmatprep.subr.bf16.mxu0 0
  %3386 = vmatpush2.bf16.msra.mxu0 0
  %3387 = vmatprep.mubr.bf16.mxu0 0
  %3388 = vmatmul.mubr.bf16.gmra.mxu0 %v3213
  %v3389 = vpop.f32.mrf.mxu0
  %v3390 = vadd.f32 0.0, %v3389
  %v3391 = vpop.f32.mrf.mxu0
  %v3392 = vpop.f32.mrf.mxu0
  %v3393 = vadd.f32 0.0, %v3392
  %v3394 = vpop.f32.mrf.mxu0
  %3395 = vmatprep.mubr.bf16.mxu0 0
  %3396 = vmatmul.mubr.bf16.gmra.mxu0 %v3216
  %v3397 = vpop.f32.mrf.mxu0
  %v3398 = vadd.f32 0.0, %v3397
  %v3399 = vpop.f32.mrf.mxu0
  %v3400 = vpop.f32.mrf.mxu0
  %v3401 = vadd.f32 0.0, %v3400
  %v3402 = vpop.f32.mrf.mxu0
  %3403 = vdwg.mxu0
  %v3404 = vpack.c.bf16 %v3393, %v3390
  %v3405 = vpack.c.bf16 %v3401, %v3398
  %v3407 = vsel %vm1368, %v3205, 0
  %3409 = vmatprep.subr.bf16.mxu0 0
  %3410 = vmatpush1.bf16.msra.mxu0 0
  %3411 = vmatprep.subr.bf16.mxu0 0
  %3412 = vmatpush1.bf16.msra.mxu0 0
  %3413 = vmatprep.subr.bf16.mxu0 0
  %3414 = vmatpush1.bf16.msra.mxu0 0
  %3415 = vmatprep.subr.bf16.mxu0 0
  %3416 = vmatpush1.bf16.msra.mxu0 0
  %3417 = vmatprep.subr.bf16.mxu0 0
  %3418 = vmatpush1.bf16.msra.mxu0 0
  %3419 = vmatprep.subr.bf16.mxu0 0
  %3420 = vmatpush1.bf16.msra.mxu0 0
  %3421 = vmatprep.subr.bf16.mxu0 0
  %3422 = vmatpush1.bf16.msra.mxu0 %v3405
  %3423 = vmatprep.subr.bf16.mxu0 0
  %3424 = vmatpush1.bf16.msra.mxu0 %v3404
  %3425 = vmatprep.subr.bf16.mxu0 0
  %3426 = vmatpush2.bf16.msra.mxu0 0
  %3427 = vmatprep.subr.bf16.mxu0 0
  %3428 = vmatpush2.bf16.msra.mxu0 0
  %3429 = vmatprep.subr.bf16.mxu0 0
  %3430 = vmatpush2.bf16.msra.mxu0 0
  %3431 = vmatprep.subr.bf16.mxu0 0
  %3432 = vmatpush2.bf16.msra.mxu0 0
  %3433 = vmatprep.subr.bf16.mxu0 0
  %3434 = vmatpush2.bf16.msra.mxu0 0
  %3435 = vmatprep.subr.bf16.mxu0 0
  %3436 = vmatpush2.bf16.msra.mxu0 0
  %3437 = vmatprep.subr.bf16.mxu0 0
  %3438 = vmatpush2.bf16.msra.mxu0 0
  %3439 = vmatprep.subr.bf16.mxu0 0
  %3440 = vmatpush2.bf16.msra.mxu0 0
  %3441 = vmatprep.mubr.bf16.mxu0 0
  %3442 = vmatmul.mubr.bf16.gmra.mxu0 %v3407
  %v3443 = vpop.f32.mrf.mxu0
  %v3444 = vadd.f32 0.0, %v3443
  %v3445 = vpop.f32.mrf.mxu0
  %v3446 = vpop.f32.mrf.mxu0
  %v3447 = vpop.f32.mrf.mxu0
  %3448 = vdwg.mxu0
  %v3449 = vadd.f32 %v3350, %v3444
  %v3450 = vmax.f32 %v3449, 0.0
  %v3451 = vpack.c.bf16 %v3450, %v3450
  %s3452 = scalar_lea.vmem %s17, 16
  %v3453 = vld [vmem:[%s3452] sm:$0xf]
  %v3454 = vld [vmem:[%s3452 + $0x4] sm:$0xf]
  %v3455 = vld [vmem:[%s3452 + $0x8] sm:$0xf]
  %v3456 = vld [vmem:[%s3452 + $0xc] sm:$0xf]
  %v3461 = vunpack.c.l.b16 %v3453
  %v3462 = vunpack.c.l.b16 %v3454
  %v3463 = vunpack.c.l.b16 %v3455
  %v3464 = vunpack.c.l.b16 %v3456
  %v3465 = vpack.c.b16 %v3462, %v3461
  %v3466 = vpack.c.b16 %v3464, %v3463
  %v3468 = vsel %vm2518, %v3465, 0
  %v3471 = vsel %vm2518, %v3466, 0
  %v3474 = vsel %vm2525, %v3451, 0
  %3476 = vmatprep.subr.bf16.mxu0 0
  %3477 = vmatpush1.bf16.msra.mxu0 0
  %3478 = vmatprep.subr.bf16.mxu0 0
  %3479 = vmatpush1.bf16.msra.mxu0 0
  %3480 = vmatprep.subr.bf16.mxu0 0
  %3481 = vmatpush1.bf16.msra.mxu0 0
  %3482 = vmatprep.subr.bf16.mxu0 0
  %3483 = vmatpush1.bf16.msra.mxu0 0
  %3484 = vmatprep.subr.bf16.mxu0 0
  %3485 = vmatpush1.bf16.msra.mxu0 0
  %3486 = vmatprep.subr.bf16.mxu0 0
  %3487 = vmatpush1.bf16.msra.mxu0 0
  %3488 = vmatprep.subr.bf16.mxu0 0
  %3489 = vmatpush1.bf16.msra.mxu0 0
  %3490 = vmatprep.subr.bf16.mxu0 0
  %3491 = vmatpush1.bf16.msra.mxu0 %v3474
  %3492 = vmatprep.subr.bf16.mxu0 0
  %3493 = vmatpush2.bf16.msra.mxu0 0
  %3494 = vmatprep.subr.bf16.mxu0 0
  %3495 = vmatpush2.bf16.msra.mxu0 0
  %3496 = vmatprep.subr.bf16.mxu0 0
  %3497 = vmatpush2.bf16.msra.mxu0 0
  %3498 = vmatprep.subr.bf16.mxu0 0
  %3499 = vmatpush2.bf16.msra.mxu0 0
  %3500 = vmatprep.subr.bf16.mxu0 0
  %3501 = vmatpush2.bf16.msra.mxu0 0
  %3502 = vmatprep.subr.bf16.mxu0 0
  %3503 = vmatpush2.bf16.msra.mxu0 0
  %3504 = vmatprep.subr.bf16.mxu0 0
  %3505 = vmatpush2.bf16.msra.mxu0 0
  %3506 = vmatprep.subr.bf16.mxu0 0
  %3507 = vmatpush2.bf16.msra.mxu0 0
  %3508 = vmatprep.mubr.bf16.mxu0 0
  %3509 = vmatmul.mubr.bf16.gmra.mxu0 %v3468
  %v3510 = vpop.f32.mrf.mxu0
  %v3511 = vadd.f32 0.0, %v3510
  %v3512 = vpop.f32.mrf.mxu0
  %v3513 = vpop.f32.mrf.mxu0
  %v3514 = vadd.f32 0.0, %v3513
  %v3515 = vpop.f32.mrf.mxu0
  %3516 = vmatprep.mubr.bf16.mxu0 0
  %3517 = vmatmul.mubr.bf16.gmra.mxu0 %v3471
  %v3518 = vpop.f32.mrf.mxu0
  %v3519 = vadd.f32 0.0, %v3518
  %v3520 = vpop.f32.mrf.mxu0
  %v3521 = vpop.f32.mrf.mxu0
  %v3522 = vadd.f32 0.0, %v3521
  %v3523 = vpop.f32.mrf.mxu0
  %3524 = vdwg.mxu0
  %v3525 = vadd.f32 %v3198, %v3511
  %v3526 = vadd.f32 %v3199, %v3514
  %v3527 = vadd.f32 %v3200, %v3519
  %v3528 = vadd.f32 %v3201, %v3522
  %v3529 = vmax.f32 %v3525, 0.0
  %v3530 = vmax.f32 %v3526, 0.0
  %v3531 = vmax.f32 %v3527, 0.0
  %v3532 = vmax.f32 %v3528, 0.0
  %3533 = vst.msk [vmem:[%s18] sm:$0xff] %vm2518, %v3529
  %3534 = vst.msk [vmem:[%s18 + $0x8] sm:$0xff] %vm2518, %v3530
  %3535 = vst.msk [vmem:[%s18 + $0x10] sm:$0xff] %vm2518, %v3531
  %3536 = vst.msk [vmem:[%s18 + $0x18] sm:$0xff] %vm2518, %v3532
  // Predicated region
  $region74: #{tpu_custom_call.1} parent=0 // pred_check
    _
  $region75: #{tpu_custom_call.1} parent=0 // pred_check_branch
    %3538 = sbr.rel (0) target = $region77
  $region76: #{tpu_custom_call.1} parent=0 // pred_region
    _
  $region77: #{tpu_custom_call.1} parent=0 // pred_fallthru
    _
  // Predicated region
  $region78: #{tpu_custom_call.1} parent=0 // pred_check
    _
  $region79: #{tpu_custom_call.1} parent=0 // pred_check_branch
    %3540 = sbr.rel (0) target = $region81
  $region80: #{tpu_custom_call.1} parent=0 // pred_region
    _
  $region81: #{tpu_custom_call.1} parent=0 // pred_fallthru
    _

</llo_original>
